<compile_context>
chip_gen: v5e
topology: v5e:2x2
jax: 0.10.0
libtpu: 0.0.40
codegen_flags: <defaults>
</compile_context>

<pallas_src>
import functools

import jax
import jax.numpy as jnp
from jax.experimental import pallas as pl
from jax.experimental.pallas import tpu as pltpu

_MIB = 1024 * 1024


# ------------------------------------------------------------------------------------
# tiling / compiler-param helpers
# ------------------------------------------------------------------------------------

def _pick_lane_tile(s, min_blocks):
    """Lane (last-dim) tile: as large as possible (mem-bound roofline) while keeping at
    least `min_blocks` grid blocks when the spatial extent is splittable.  Falling back
    to the full extent is always legal (full-array dims are exempt from the 128 rule)."""
    if s % 128 != 0:
        return s
    for t in (4096, 2048, 1024, 512, 256, 128):
        if s % t == 0 and s // t >= min_blocks:
            return t
    return s


def _compiler_params(grid_rank, block_bytes):
    # v7x has only 64 MiB VMEM per TensorCore: size the scoped limit from the actual tile
    # footprint (double-buffered) instead of a hard-coded 48 MiB, and cap it at 32 MiB.
    limit = int(min(32 * _MIB, max(8 * _MIB, 4 * block_bytes)))
    return pltpu.CompilerParams(
        dimension_semantics=("parallel",) * grid_rank,
        vmem_limit_bytes=limit)


# ------------------------------------------------------------------------------------
# Pallas kernels
# ------------------------------------------------------------------------------------

def _conv1x1_bn_stats_kernel(x_ref, w_ref, y_ref, sum_ref, sq_ref):
    """1x1 conv as W[Cout,Cin] @ X[Cin,ts] on the MXU (bf16 operands, f32 accumulation),
    with the per-block BN partial statistics fused into the epilogue so the conv output
    is not re-read from HBM by a separate stats pass."""
    x = x_ref[0]                                                   # (Cin, ts)
    y = jnp.dot(w_ref[...], x.astype(jnp.bfloat16),
                preferred_element_type=jnp.float32)                # (Cout, ts) f32
    y_ref[0] = y
    ps = jnp.sum(y, axis=1, keepdims=True)                         # (Cout, 1)
    ss = jnp.sum(y * y, axis=1, keepdims=True)
    # Lane-dense partial-stat blocks: every lane carries the same per-channel scalar;
    # the wrapper reads lane 0 of each block and finishes the tiny reduction in XLA.
    sum_ref[0] = jnp.broadcast_to(ps, sum_ref.shape[1:])
    sq_ref[0] = jnp.broadcast_to(ss, sq_ref.shape[1:])


def _conv1x1_sum_kernel(*refs, n_ops):
    """1x1 conv applied to the sum of n_ops activation tiles (the x + fu + lfu add of
    SpectralTransform fused into conv2).  The sum is done in f32 and cast to bf16 once
    for the MXU (avoids bf16 VALU adds, which v5e lacks)."""
    x_refs = refs[:n_ops]
    w_ref = refs[n_ops]
    o_ref = refs[n_ops + 1]
    acc = x_refs[0][0].astype(jnp.float32)
    for r in x_refs[1:]:
        acc = acc + r[0].astype(jnp.float32)
    o_ref[0] = jnp.dot(w_ref[...], acc.astype(jnp.bfloat16),
                       preferred_element_type=jnp.float32)


def _bn_relu_kernel(y_ref, scale_ref, shift_ref, o_ref):
    """Fused BatchNorm affine (y*scale + shift) + ReLU."""
    o_ref[0] = jnp.maximum(y_ref[0] * scale_ref[...] + shift_ref[...], 0.0)


# ------------------------------------------------------------------------------------
# Pallas wrappers
# ------------------------------------------------------------------------------------

def conv1x1_bn_stats(x, w_bf16):
    """x: (N, Cin, S)  ->  y: (N, Cout, S) f32, plus per-channel (sum, sum-of-squares)."""
    n, cin, s = x.shape
    cout = w_bf16.shape[0]
    ts = _pick_lane_tile(s, min_blocks=1 if n >= 2 else 2)
    ns = s // ts
    block_bytes = (cin * ts * x.dtype.itemsize + cout * cin * 2
                   + cout * ts * 4 + 2 * cout * 128 * 4)

    y, psum, psq = pl.pallas_call(
        _conv1x1_bn_stats_kernel,
        out_shape=(jax.ShapeDtypeStruct((n, cout, s), jnp.float32),
                   jax.ShapeDtypeStruct((n, cout, ns * 128), jnp.float32),
                   jax.ShapeDtypeStruct((n, cout, ns * 128), jnp.float32)),
        grid_spec=pltpu.PrefetchScalarGridSpec(
            num_scalar_prefetch=0,
            grid=(n, ns),
            in_specs=[pl.BlockSpec((1, cin, ts), lambda i, j: (i, 0, j)),
                      pl.BlockSpec((cout, cin), lambda i, j: (0, 0))],
            out_specs=(pl.BlockSpec((1, cout, ts), lambda i, j: (i, 0, j)),
                       pl.BlockSpec((1, cout, 128), lambda i, j: (i, 0, j)),
                       pl.BlockSpec((1, cout, 128), lambda i, j: (i, 0, j)))),
        compiler_params=_compiler_params(2, block_bytes),
    )(x, w_bf16)

    sums = jnp.sum(psum[:, :, ::128], axis=(0, 2))                 # (Cout,)
    sqs = jnp.sum(psq[:, :, ::128], axis=(0, 2))
    return y, sums, sqs


def bn_relu_apply(y, scale, shift):
    """Fused BN affine + ReLU over (N, C, S); output stays f32 (feeds XLA's FFT / next conv,
    which casts to bf16 in-register inside the matmul kernel)."""
    n, c, s = y.shape
    ts = _pick_lane_tile(s, min_blocks=1 if n >= 2 else 2)
    ns = s // ts
    block_bytes = 2 * c * ts * 4 + 2 * c * 4
    return pl.pallas_call(
        _bn_relu_kernel,
        out_shape=jax.ShapeDtypeStruct((n, c, s), jnp.float32),
        grid_spec=pltpu.PrefetchScalarGridSpec(
            num_scalar_prefetch=0,
            grid=(n, ns),
            in_specs=[pl.BlockSpec((1, c, ts), lambda i, j: (i, 0, j)),
                      pl.BlockSpec((c, 1), lambda i, j: (0, 0)),
                      pl.BlockSpec((c, 1), lambda i, j: (0, 0))],
            out_specs=pl.BlockSpec((1, c, ts), lambda i, j: (i, 0, j))),
        compiler_params=_compiler_params(2, block_bytes),
    )(y, scale.reshape(c, 1), shift.reshape(c, 1))


def conv1x1_sum(x_list, w_bf16):
    """(x_1 + ... + x_m) -> 1x1 conv.  x_i: (N, Cin, S); returns (N, Cout, S) f32."""
    n, cin, s = x_list[0].shape
    cout = w_bf16.shape[0]
    ts = _pick_lane_tile(s, min_blocks=1 if n >= 2 else 2)
    ns = s // ts
    n_ops = len(x_list)
    block_bytes = (sum(cin * ts * xi.dtype.itemsize for xi in x_list)
                   + cout * cin * 2 + cout * ts * 4)
    return pl.pallas_call(
        functools.partial(_conv1x1_sum_kernel, n_ops=n_ops),
        out_shape=jax.ShapeDtypeStruct((n, cout, s), jnp.float32),
        grid_spec=pltpu.PrefetchScalarGridSpec(
            num_scalar_prefetch=0,
            grid=(n, ns),
            in_specs=[pl.BlockSpec((1, cin, ts), lambda i, j: (i, 0, j))
                      for _ in range(n_ops)]
                     + [pl.BlockSpec((cout, cin), lambda i, j: (0, 0))],
            out_specs=pl.BlockSpec((1, cout, ts), lambda i, j: (i, 0, j))),
        compiler_params=_compiler_params(2, block_bytes),
    )(*x_list, w_bf16)


def _bn_affine(sums, sqs, count, gamma, beta, eps):
    """Train-mode batch statistics (biased variance) -> fused affine scale/shift."""
    mean = sums / count
    # Single-pass E[x^2]-E[x]^2 in f32; clamp to >=0 to guard against cancellation.
    var = jnp.maximum(sqs / count - mean * mean, 0.0)
    scale = gamma * jax.lax.rsqrt(var + eps)
    shift = beta - mean * scale
    return scale, shift


def conv_bn_relu(x, w_bf16, gamma, beta, eps=1e-5):
    """1x1 conv (with fused BN-stats epilogue) -> BN affine -> ReLU.  x: (N, Cin, S)."""
    n, _, s = x.shape
    y, sums, sqs = conv1x1_bn_stats(x, w_bf16)
    scale, shift = _bn_affine(sums, sqs, n * s, gamma, beta, eps)
    return bn_relu_apply(y, scale, shift)


# ------------------------------------------------------------------------------------
# FourierUnit / SpectralTransform forward (NCHW end-to-end)
# ------------------------------------------------------------------------------------

def fourier_unit(x, w_bf16, gamma, beta, eps=1e-5):
    """FourierUnit: rfft2 -> 1x1 conv on stacked (re,im) channels -> BN+ReLU -> irfft2."""
    n, c, h, w = x.shape
    # TODO(synk): rfft2/irfft2 have no Pallas primitive; they go through XLA's native FFT.
    f = jnp.fft.rfft2(x, axes=(-2, -1), norm="ortho")              # (n, c, h, wf) complex64
    wf = f.shape[-1]
    # channel layout matches PyTorch: channel 2*k is real, 2*k+1 is imag of channel k
    ri = jnp.stack([jnp.real(f), jnp.imag(f)], axis=2).reshape(n, 2 * c, h * wf)
    y = conv_bn_relu(ri, w_bf16, gamma, beta, eps=eps)             # (n, 2c, h*wf) f32
    y = y.reshape(n, c, 2, h, wf)
    comp = jax.lax.complex(y[:, :, 0], y[:, :, 1])
    return jnp.fft.irfft2(comp, s=(h, w), axes=(-2, -1), norm="ortho")   # (n, c, h, w)


def build_spectral_transform_params(key, in_channels, out_channels):
    c = out_channels // 2
    ks = jax.random.split(key, 7)

    def conv_w(k, cin, cout):
        # 1x1-conv weight stored as [Cout, Cin], pre-cast to bf16 once at build time.
        w = jax.random.normal(k, (cout, cin), jnp.float32) / jnp.sqrt(float(cin))
        return w.astype(jnp.bfloat16)

    def bn(k, ch):
        kg, kb = jax.random.split(k)
        return (1.0 + 0.05 * jax.random.normal(kg, (ch,), jnp.float32),
                0.05 * jax.random.normal(kb, (ch,), jnp.float32))

    return {
        "conv1": conv_w(ks[0], in_channels, c),
        "bn1": bn(ks[1], c),
        "fu_conv": conv_w(ks[2], 2 * c, 2 * c),
        "fu_bn": bn(ks[3], 2 * c),
        "lfu_conv": conv_w(ks[4], 2 * c, 2 * c),
        "lfu_bn": bn(ks[5], 2 * c),
        "conv2": conv_w(ks[6], c, out_channels),
    }


def spectral_transform_forward(params, x_nchw, *, stride=1, enable_lfu=True, eps=1e-5):
    x = x_nchw                                                     # NCHW throughout
    if stride == 2:                                                # nn.AvgPool2d(2, 2)
        n0, c0, h0, w0 = x.shape
        x = x.reshape(n0, c0, h0 // 2, 2, w0 // 2, 2).mean(axis=(3, 5))

    n, cin, h, w = x.shape
    s = h * w

    # conv1: 1x1 conv (+ fused BN stats) -> BN affine + ReLU
    x_c = conv_bn_relu(x.reshape(n, cin, s), params["conv1"], *params["bn1"], eps=eps)
    c = x_c.shape[1]
    x_img = x_c.reshape(n, c, h, w)

    # global Fourier unit
    fu_out = fourier_unit(x_img, params["fu_conv"], *params["fu_bn"], eps=eps)

    addends = [x_c, fu_out.reshape(n, c, s)]

    # local Fourier unit (enable_lfu=True path of the reference)
    if enable_lfu:
        c4, h2, w2 = c // 4, h // 2, w // 2
        xs = x_img[:, :c4]
        xs = jnp.concatenate([xs[:, :, :h2], xs[:, :, h2:]], axis=1)         # H halves -> channels
        xs = jnp.concatenate([xs[:, :, :, :w2], xs[:, :, :, w2:]], axis=1)   # W halves -> channels
        xs = fourier_unit(xs, params["lfu_conv"], *params["lfu_bn"], eps=eps)  # (n, c, h2, w2)
        # TODO(synk): fold the 2x2 spatial repeat into the conv2 index_map (modular block
        # indices) instead of materializing it; tiled in bf16 to halve the extra HBM traffic.
        xs = jnp.tile(xs.astype(jnp.bfloat16), (1, 1, 2, 2))
        addends.append(xs.reshape(n, c, s))

    # conv2 on (x + fu + lfu): the multi-way f32 add is fused into the conv2 Pallas kernel
    out = conv1x1_sum(addends, params["conv2"])
    cout = out.shape[1]
    return out.reshape(n, cout, h, w)


# ------------------------------------------------------------------------------------
# main
# ------------------------------------------------------------------------------------

if __name__ == "__main__":
    key = jax.random.PRNGKey(0)
    k_params, k_x = jax.random.split(key)

    # Small but structurally faithful config: C = out_channels//2 = 16, C//4 = 4 (lfu path OK)
    in_channels, out_channels = 8, 32
    N, H, W = 2, 16, 16

    params = build_spectral_transform_params(k_params, in_channels, out_channels)
    x = jax.random.normal(k_x, (N, in_channels, H, W), jnp.float32)

    fwd = jax.jit(lambda xx: spectral_transform_forward(params, xx,
                                                        stride=1, enable_lfu=True))
    y = fwd(x)
    jax.block_until_ready(y)

    assert y.shape == (N, out_channels, H, W), y.shape
    assert y.dtype == jnp.float32
    assert bool(jnp.all(jnp.isfinite(y)))
    print("KERNEL_OK")
</pallas_src>

<mosaic_0001>
module attributes {stable_mosaic.version = 11 : i64} {
  func.func @_conv1x1_bn_stats_kernel(%arg0: i32, %arg1: i32, %arg2: memref<1x8x256xf32, #tpu.memory_space<vmem>>, %arg3: memref<16x8xbf16, #tpu.memory_space<vmem>>, %arg4: memref<1x16x256xf32, #tpu.memory_space<vmem>>, %arg5: memref<1x16x128xf32, #tpu.memory_space<vmem>>, %arg6: memref<1x16x128xf32, #tpu.memory_space<vmem>>) attributes {dimension_semantics = [#tpu.dimension_semantics<parallel>, #tpu.dimension_semantics<parallel>], iteration_bounds = array<i64: 2, 1>, scalar_prefetch = 0 : i64, scratch_operands = 0 : i64, tpu.core_type = #tpu.core_type<tc>, window_params = [{transform_indices = @transform_0, window_bounds = array<i64: 1, 8, 256>}, {pipeline_mode = #tpu.pipeline_mode<synchronous>, transform_indices = @transform_1, window_bounds = array<i64: 16, 8>}, {transform_indices = @transform_2, window_bounds = array<i64: 1, 16, 256>}, {transform_indices = @transform_3, window_bounds = array<i64: 1, 16, 128>}, {transform_indices = @transform_4, window_bounds = array<i64: 1, 16, 128>}]} {
    %c0 = arith.constant 0 : index
    %c0_0 = arith.constant 0 : index
    %c0_1 = arith.constant 0 : index
    %0 = vector.load %arg2[%c0, %c0_0, %c0_1] : memref<1x8x256xf32, #tpu.memory_space<vmem>>, vector<1x8x256xf32>
    %1 = vector.shape_cast %0 : vector<1x8x256xf32> to vector<8x256xf32>
    %c0_2 = arith.constant 0 : index
    %c0_3 = arith.constant 0 : index
    %2 = vector.load %arg3[%c0_2, %c0_3] : memref<16x8xbf16, #tpu.memory_space<vmem>>, vector<16x8xbf16>
    %3 = arith.truncf %1 : vector<8x256xf32> to vector<8x256xbf16>
    %cst = arith.constant dense<0.000000e+00> : vector<16x256xf32>
    %4 = tpu.matmul %2, %3, %cst {dimension_numbers = #tpu.dot_dimension_numbers<[1], [0], [0], [1], [0, 0, 1, 1], [], []>} : vector<16x8xbf16>, vector<8x256xbf16>, vector<16x256xf32> -> vector<16x256xf32>
    %c0_4 = arith.constant 0 : index
    %c0_5 = arith.constant 0 : index
    %c0_6 = arith.constant 0 : index
    %5 = vector.load %arg4[%c0_4, %c0_5, %c0_6] : memref<1x16x256xf32, #tpu.memory_space<vmem>>, vector<1x16x256xf32>
    %6 = vector.shape_cast %5 : vector<1x16x256xf32> to vector<16x256xf32>
    %7 = vector.shape_cast %4 : vector<16x256xf32> to vector<1x16x256xf32>
    tpu.vector_store %arg4[%c0_4, %c0_5, %c0_6], %7 {strides = array<i32>} : memref<1x16x256xf32, #tpu.memory_space<vmem>>, vector<1x16x256xf32>,
    %cst_7 = arith.constant dense<0.000000e+00> : vector<16xf32>
    %8 = vector.multi_reduction <add>, %4, %cst_7 [1] : vector<16x256xf32> to vector<16xf32>
    %9 = vector.shape_cast %8 : vector<16xf32> to vector<16x1xf32>
    %10 = arith.mulf %4, %4 : vector<16x256xf32>
    %cst_8 = arith.constant dense<0.000000e+00> : vector<16xf32>
    %11 = vector.multi_reduction <add>, %10, %cst_8 [1] : vector<16x256xf32> to vector<16xf32>
    %12 = vector.shape_cast %11 : vector<16xf32> to vector<16x1xf32>
    %13 = vector.shape_cast %9 : vector<16x1xf32> to vector<16x1xf32>
    %14 = vector.broadcast %13 : vector<16x1xf32> to vector<16x128xf32>
    %c0_9 = arith.constant 0 : index
    %c0_10 = arith.constant 0 : index
    %c0_11 = arith.constant 0 : index
    %15 = vector.load %arg5[%c0_9, %c0_10, %c0_11] : memref<1x16x128xf32, #tpu.memory_space<vmem>>, vector<1x16x128xf32>
    %16 = vector.shape_cast %15 : vector<1x16x128xf32> to vector<16x128xf32>
    %17 = vector.shape_cast %14 : vector<16x128xf32> to vector<1x16x128xf32>
    tpu.vector_store %arg5[%c0_9, %c0_10, %c0_11], %17 {strides = array<i32>} : memref<1x16x128xf32, #tpu.memory_space<vmem>>, vector<1x16x128xf32>,
    %18 = vector.shape_cast %12 : vector<16x1xf32> to vector<16x1xf32>
    %19 = vector.broadcast %18 : vector<16x1xf32> to vector<16x128xf32>
    %c0_12 = arith.constant 0 : index
    %c0_13 = arith.constant 0 : index
    %c0_14 = arith.constant 0 : index
    %20 = vector.load %arg6[%c0_12, %c0_13, %c0_14] : memref<1x16x128xf32, #tpu.memory_space<vmem>>, vector<1x16x128xf32>
    %21 = vector.shape_cast %20 : vector<1x16x128xf32> to vector<16x128xf32>
    %22 = vector.shape_cast %19 : vector<16x128xf32> to vector<1x16x128xf32>
    tpu.vector_store %arg6[%c0_12, %c0_13, %c0_14], %22 {strides = array<i32>} : memref<1x16x128xf32, #tpu.memory_space<vmem>>, vector<1x16x128xf32>,
    return
  }
  func.func @transform_0(%arg0: i32, %arg1: i32) -> (i32, i32, i32) {
    %c0_i32 = arith.constant 0 : i32
    %c0_i32_0 = arith.constant 0 : i32
    return %arg0, %c0_i32, %arg1 : i32, i32, i32
  }
  func.func @transform_1(%arg0: i32, %arg1: i32) -> (i32, i32) {
    %c0_i32 = arith.constant 0 : i32
    %c0_i32_0 = arith.constant 0 : i32
    %c0_i32_1 = arith.constant 0 : i32
    return %c0_i32, %c0_i32_0 : i32, i32
  }
  func.func @transform_2(%arg0: i32, %arg1: i32) -> (i32, i32, i32) {
    %c0_i32 = arith.constant 0 : i32
    %c0_i32_0 = arith.constant 0 : i32
    return %arg0, %c0_i32, %arg1 : i32, i32, i32
  }
  func.func @transform_3(%arg0: i32, %arg1: i32) -> (i32, i32, i32) {
    %c0_i32 = arith.constant 0 : i32
    %c0_i32_0 = arith.constant 0 : i32
    return %arg0, %c0_i32, %arg1 : i32, i32, i32
  }
  func.func @transform_4(%arg0: i32, %arg1: i32) -> (i32, i32, i32) {
    %c0_i32 = arith.constant 0 : i32
    %c0_i32_0 = arith.constant 0 : i32
    return %arg0, %c0_i32, %arg1 : i32, i32, i32
  }
}

module attributes {stable_mosaic.version = 11 : i64} {
  func.func @_bn_relu_kernel(%arg0: i32, %arg1: i32, %arg2: memref<1x16x256xf32, #tpu.memory_space<vmem>>, %arg3: memref<16x1xf32, #tpu.memory_space<vmem>>, %arg4: memref<16x1xf32, #tpu.memory_space<vmem>>, %arg5: memref<1x16x256xf32, #tpu.memory_space<vmem>>) attributes {dimension_semantics = [#tpu.dimension_semantics<parallel>, #tpu.dimension_semantics<parallel>], iteration_bounds = array<i64: 2, 1>, scalar_prefetch = 0 : i64, scratch_operands = 0 : i64, tpu.core_type = #tpu.core_type<tc>, window_params = [{transform_indices = @transform_0, window_bounds = array<i64: 1, 16, 256>}, {pipeline_mode = #tpu.pipeline_mode<synchronous>, transform_indices = @transform_1, window_bounds = array<i64: 16, 1>}, {pipeline_mode = #tpu.pipeline_mode<synchronous>, transform_indices = @transform_2, window_bounds = array<i64: 16, 1>}, {transform_indices = @transform_3, window_bounds = array<i64: 1, 16, 256>}]} {
    %c0 = arith.constant 0 : index
    %c0_0 = arith.constant 0 : index
    %c0_1 = arith.constant 0 : index
    %0 = vector.load %arg2[%c0, %c0_0, %c0_1] : memref<1x16x256xf32, #tpu.memory_space<vmem>>, vector<1x16x256xf32>
    %1 = vector.shape_cast %0 : vector<1x16x256xf32> to vector<16x256xf32>
    %c0_2 = arith.constant 0 : index
    %c0_3 = arith.constant 0 : index
    %2 = vector.load %arg3[%c0_2, %c0_3] : memref<16x1xf32, #tpu.memory_space<vmem>>, vector<16x1xf32>
    %3 = vector.broadcast %2 : vector<16x1xf32> to vector<16x256xf32>
    %4 = arith.mulf %1, %3 : vector<16x256xf32>
    %c0_4 = arith.constant 0 : index
    %c0_5 = arith.constant 0 : index
    %5 = vector.load %arg4[%c0_4, %c0_5] : memref<16x1xf32, #tpu.memory_space<vmem>>, vector<16x1xf32>
    %6 = vector.broadcast %5 : vector<16x1xf32> to vector<16x256xf32>
    %7 = arith.addf %4, %6 : vector<16x256xf32>
    %cst = arith.constant 0.000000e+00 : f32
    %8 = vector.broadcast %cst : f32 to vector<16x256xf32>
    %9 = arith.maximumf %7, %8 : vector<16x256xf32>
    %c0_6 = arith.constant 0 : index
    %c0_7 = arith.constant 0 : index
    %c0_8 = arith.constant 0 : index
    %10 = vector.load %arg5[%c0_6, %c0_7, %c0_8] : memref<1x16x256xf32, #tpu.memory_space<vmem>>, vector<1x16x256xf32>
    %11 = vector.shape_cast %10 : vector<1x16x256xf32> to vector<16x256xf32>
    %12 = vector.shape_cast %9 : vector<16x256xf32> to vector<1x16x256xf32>
    tpu.vector_store %arg5[%c0_6, %c0_7, %c0_8], %12 {strides = array<i32>} : memref<1x16x256xf32, #tpu.memory_space<vmem>>, vector<1x16x256xf32>,
    return
  }
  func.func @transform_0(%arg0: i32, %arg1: i32) -> (i32, i32, i32) {
    %c0_i32 = arith.constant 0 : i32
    %c0_i32_0 = arith.constant 0 : i32
    return %arg0, %c0_i32, %arg1 : i32, i32, i32
  }
  func.func @transform_1(%arg0: i32, %arg1: i32) -> (i32, i32) {
    %c0_i32 = arith.constant 0 : i32
    %c0_i32_0 = arith.constant 0 : i32
    %c0_i32_1 = arith.constant 0 : i32
    return %c0_i32, %c0_i32_0 : i32, i32
  }
  func.func @transform_2(%arg0: i32, %arg1: i32) -> (i32, i32) {
    %c0_i32 = arith.constant 0 : i32
    %c0_i32_0 = arith.constant 0 : i32
    %c0_i32_1 = arith.constant 0 : i32
    return %c0_i32, %c0_i32_0 : i32, i32
  }
  func.func @transform_3(%arg0: i32, %arg1: i32) -> (i32, i32, i32) {
    %c0_i32 = arith.constant 0 : i32
    %c0_i32_0 = arith.constant 0 : i32
    return %arg0, %c0_i32, %arg1 : i32, i32, i32
  }
}

module attributes {stable_mosaic.version = 11 : i64} {
  func.func @_conv1x1_bn_stats_kernel(%arg0: i32, %arg1: i32, %arg2: memref<1x32x40xf32, #tpu.memory_space<vmem>>, %arg3: memref<32x32xbf16, #tpu.memory_space<vmem>>, %arg4: memref<1x32x40xf32, #tpu.memory_space<vmem>>, %arg5: memref<1x32x128xf32, #tpu.memory_space<vmem>>, %arg6: memref<1x32x128xf32, #tpu.memory_space<vmem>>) attributes {dimension_semantics = [#tpu.dimension_semantics<parallel>, #tpu.dimension_semantics<parallel>], iteration_bounds = array<i64: 2, 1>, scalar_prefetch = 0 : i64, scratch_operands = 0 : i64, tpu.core_type = #tpu.core_type<tc>, window_params = [{transform_indices = @transform_0, window_bounds = array<i64: 1, 32, 40>}, {pipeline_mode = #tpu.pipeline_mode<synchronous>, transform_indices = @transform_1, window_bounds = array<i64: 32, 32>}, {transform_indices = @transform_2, window_bounds = array<i64: 1, 32, 40>}, {transform_indices = @transform_3, window_bounds = array<i64: 1, 32, 128>}, {transform_indices = @transform_4, window_bounds = array<i64: 1, 32, 128>}]} {
    %c0 = arith.constant 0 : index
    %c0_0 = arith.constant 0 : index
    %c0_1 = arith.constant 0 : index
    %0 = vector.load %arg2[%c0, %c0_0, %c0_1] : memref<1x32x40xf32, #tpu.memory_space<vmem>>, vector<1x32x40xf32>
    %1 = vector.shape_cast %0 : vector<1x32x40xf32> to vector<32x40xf32>
    %c0_2 = arith.constant 0 : index
    %c0_3 = arith.constant 0 : index
    %2 = vector.load %arg3[%c0_2, %c0_3] : memref<32x32xbf16, #tpu.memory_space<vmem>>, vector<32x32xbf16>
    %3 = arith.truncf %1 : vector<32x40xf32> to vector<32x40xbf16>
    %cst = arith.constant dense<0.000000e+00> : vector<32x40xf32>
    %4 = tpu.matmul %2, %3, %cst {dimension_numbers = #tpu.dot_dimension_numbers<[1], [0], [0], [1], [0, 0, 1, 1], [], []>} : vector<32x32xbf16>, vector<32x40xbf16>, vector<32x40xf32> -> vector<32x40xf32>
    %c0_4 = arith.constant 0 : index
    %c0_5 = arith.constant 0 : index
    %c0_6 = arith.constant 0 : index
    %5 = vector.load %arg4[%c0_4, %c0_5, %c0_6] : memref<1x32x40xf32, #tpu.memory_space<vmem>>, vector<1x32x40xf32>
    %6 = vector.shape_cast %5 : vector<1x32x40xf32> to vector<32x40xf32>
    %7 = vector.shape_cast %4 : vector<32x40xf32> to vector<1x32x40xf32>
    tpu.vector_store %arg4[%c0_4, %c0_5, %c0_6], %7 {strides = array<i32>} : memref<1x32x40xf32, #tpu.memory_space<vmem>>, vector<1x32x40xf32>,
    %cst_7 = arith.constant dense<0.000000e+00> : vector<32xf32>
    %8 = vector.multi_reduction <add>, %4, %cst_7 [1] : vector<32x40xf32> to vector<32xf32>
    %9 = vector.shape_cast %8 : vector<32xf32> to vector<32x1xf32>
    %10 = arith.mulf %4, %4 : vector<32x40xf32>
    %cst_8 = arith.constant dense<0.000000e+00> : vector<32xf32>
    %11 = vector.multi_reduction <add>, %10, %cst_8 [1] : vector<32x40xf32> to vector<32xf32>
    %12 = vector.shape_cast %11 : vector<32xf32> to vector<32x1xf32>
    %13 = vector.shape_cast %9 : vector<32x1xf32> to vector<32x1xf32>
    %14 = vector.broadcast %13 : vector<32x1xf32> to vector<32x128xf32>
    %c0_9 = arith.constant 0 : index
    %c0_10 = arith.constant 0 : index
    %c0_11 = arith.constant 0 : index
    %15 = vector.load %arg5[%c0_9, %c0_10, %c0_11] : memref<1x32x128xf32, #tpu.memory_space<vmem>>, vector<1x32x128xf32>
    %16 = vector.shape_cast %15 : vector<1x32x128xf32> to vector<32x128xf32>
    %17 = vector.shape_cast %14 : vector<32x128xf32> to vector<1x32x128xf32>
    tpu.vector_store %arg5[%c0_9, %c0_10, %c0_11], %17 {strides = array<i32>} : memref<1x32x128xf32, #tpu.memory_space<vmem>>, vector<1x32x128xf32>,
    %18 = vector.shape_cast %12 : vector<32x1xf32> to vector<32x1xf32>
    %19 = vector.broadcast %18 : vector<32x1xf32> to vector<32x128xf32>
    %c0_12 = arith.constant 0 : index
    %c0_13 = arith.constant 0 : index
    %c0_14 = arith.constant 0 : index
    %20 = vector.load %arg6[%c0_12, %c0_13, %c0_14] : memref<1x32x128xf32, #tpu.memory_space<vmem>>, vector<1x32x128xf32>
    %21 = vector.shape_cast %20 : vector<1x32x128xf32> to vector<32x128xf32>
    %22 = vector.shape_cast %19 : vector<32x128xf32> to vector<1x32x128xf32>
    tpu.vector_store %arg6[%c0_12, %c0_13, %c0_14], %22 {strides = array<i32>} : memref<1x32x128xf32, #tpu.memory_space<vmem>>, vector<1x32x128xf32>,
    return
  }
  func.func @transform_0(%arg0: i32, %arg1: i32) -> (i32, i32, i32) {
    %c0_i32 = arith.constant 0 : i32
    %c0_i32_0 = arith.constant 0 : i32
    return %arg0, %c0_i32, %arg1 : i32, i32, i32
  }
  func.func @transform_1(%arg0: i32, %arg1: i32) -> (i32, i32) {
    %c0_i32 = arith.constant 0 : i32
    %c0_i32_0 = arith.constant 0 : i32
    %c0_i32_1 = arith.constant 0 : i32
    return %c0_i32, %c0_i32_0 : i32, i32
  }
  func.func @transform_2(%arg0: i32, %arg1: i32) -> (i32, i32, i32) {
    %c0_i32 = arith.constant 0 : i32
    %c0_i32_0 = arith.constant 0 : i32
    return %arg0, %c0_i32, %arg1 : i32, i32, i32
  }
  func.func @transform_3(%arg0: i32, %arg1: i32) -> (i32, i32, i32) {
    %c0_i32 = arith.constant 0 : i32
    %c0_i32_0 = arith.constant 0 : i32
    return %arg0, %c0_i32, %arg1 : i32, i32, i32
  }
  func.func @transform_4(%arg0: i32, %arg1: i32) -> (i32, i32, i32) {
    %c0_i32 = arith.constant 0 : i32
    %c0_i32_0 = arith.constant 0 : i32
    return %arg0, %c0_i32, %arg1 : i32, i32, i32
  }
}

module attributes {stable_mosaic.version = 11 : i64} {
  func.func @_bn_relu_kernel(%arg0: i32, %arg1: i32, %arg2: memref<1x32x40xf32, #tpu.memory_space<vmem>>, %arg3: memref<32x1xf32, #tpu.memory_space<vmem>>, %arg4: memref<32x1xf32, #tpu.memory_space<vmem>>, %arg5: memref<1x32x40xf32, #tpu.memory_space<vmem>>) attributes {dimension_semantics = [#tpu.dimension_semantics<parallel>, #tpu.dimension_semantics<parallel>], iteration_bounds = array<i64: 2, 1>, scalar_prefetch = 0 : i64, scratch_operands = 0 : i64, tpu.core_type = #tpu.core_type<tc>, window_params = [{transform_indices = @transform_0, window_bounds = array<i64: 1, 32, 40>}, {pipeline_mode = #tpu.pipeline_mode<synchronous>, transform_indices = @transform_1, window_bounds = array<i64: 32, 1>}, {pipeline_mode = #tpu.pipeline_mode<synchronous>, transform_indices = @transform_2, window_bounds = array<i64: 32, 1>}, {transform_indices = @transform_3, window_bounds = array<i64: 1, 32, 40>}]} {
    %c0 = arith.constant 0 : index
    %c0_0 = arith.constant 0 : index
    %c0_1 = arith.constant 0 : index
    %0 = vector.load %arg2[%c0, %c0_0, %c0_1] : memref<1x32x40xf32, #tpu.memory_space<vmem>>, vector<1x32x40xf32>
    %1 = vector.shape_cast %0 : vector<1x32x40xf32> to vector<32x40xf32>
    %c0_2 = arith.constant 0 : index
    %c0_3 = arith.constant 0 : index
    %2 = vector.load %arg3[%c0_2, %c0_3] : memref<32x1xf32, #tpu.memory_space<vmem>>, vector<32x1xf32>
    %3 = vector.broadcast %2 : vector<32x1xf32> to vector<32x40xf32>
    %4 = arith.mulf %1, %3 : vector<32x40xf32>
    %c0_4 = arith.constant 0 : index
    %c0_5 = arith.constant 0 : index
    %5 = vector.load %arg4[%c0_4, %c0_5] : memref<32x1xf32, #tpu.memory_space<vmem>>, vector<32x1xf32>
    %6 = vector.broadcast %5 : vector<32x1xf32> to vector<32x40xf32>
    %7 = arith.addf %4, %6 : vector<32x40xf32>
    %cst = arith.constant 0.000000e+00 : f32
    %8 = vector.broadcast %cst : f32 to vector<32x40xf32>
    %9 = arith.maximumf %7, %8 : vector<32x40xf32>
    %c0_6 = arith.constant 0 : index
    %c0_7 = arith.constant 0 : index
    %c0_8 = arith.constant 0 : index
    %10 = vector.load %arg5[%c0_6, %c0_7, %c0_8] : memref<1x32x40xf32, #tpu.memory_space<vmem>>, vector<1x32x40xf32>
    %11 = vector.shape_cast %10 : vector<1x32x40xf32> to vector<32x40xf32>
    %12 = vector.shape_cast %9 : vector<32x40xf32> to vector<1x32x40xf32>
    tpu.vector_store %arg5[%c0_6, %c0_7, %c0_8], %12 {strides = array<i32>} : memref<1x32x40xf32, #tpu.memory_space<vmem>>, vector<1x32x40xf32>,
    return
  }
  func.func @transform_0(%arg0: i32, %arg1: i32) -> (i32, i32, i32) {
    %c0_i32 = arith.constant 0 : i32
    %c0_i32_0 = arith.constant 0 : i32
    return %arg0, %c0_i32, %arg1 : i32, i32, i32
  }
  func.func @transform_1(%arg0: i32, %arg1: i32) -> (i32, i32) {
    %c0_i32 = arith.constant 0 : i32
    %c0_i32_0 = arith.constant 0 : i32
    %c0_i32_1 = arith.constant 0 : i32
    return %c0_i32, %c0_i32_0 : i32, i32
  }
  func.func @transform_2(%arg0: i32, %arg1: i32) -> (i32, i32) {
    %c0_i32 = arith.constant 0 : i32
    %c0_i32_0 = arith.constant 0 : i32
    %c0_i32_1 = arith.constant 0 : i32
    return %c0_i32, %c0_i32_0 : i32, i32
  }
  func.func @transform_3(%arg0: i32, %arg1: i32) -> (i32, i32, i32) {
    %c0_i32 = arith.constant 0 : i32
    %c0_i32_0 = arith.constant 0 : i32
    return %arg0, %c0_i32, %arg1 : i32, i32, i32
  }
}

module attributes {stable_mosaic.version = 11 : i64} {
  func.func @_conv1x1_bn_stats_kernel(%arg0: i32, %arg1: i32, %arg2: memref<1x32x144xf32, #tpu.memory_space<vmem>>, %arg3: memref<32x32xbf16, #tpu.memory_space<vmem>>, %arg4: memref<1x32x144xf32, #tpu.memory_space<vmem>>, %arg5: memref<1x32x128xf32, #tpu.memory_space<vmem>>, %arg6: memref<1x32x128xf32, #tpu.memory_space<vmem>>) attributes {dimension_semantics = [#tpu.dimension_semantics<parallel>, #tpu.dimension_semantics<parallel>], iteration_bounds = array<i64: 2, 1>, scalar_prefetch = 0 : i64, scratch_operands = 0 : i64, tpu.core_type = #tpu.core_type<tc>, window_params = [{transform_indices = @transform_0, window_bounds = array<i64: 1, 32, 144>}, {pipeline_mode = #tpu.pipeline_mode<synchronous>, transform_indices = @transform_1, window_bounds = array<i64: 32, 32>}, {transform_indices = @transform_2, window_bounds = array<i64: 1, 32, 144>}, {transform_indices = @transform_3, window_bounds = array<i64: 1, 32, 128>}, {transform_indices = @transform_4, window_bounds = array<i64: 1, 32, 128>}]} {
    %c0 = arith.constant 0 : index
    %c0_0 = arith.constant 0 : index
    %c0_1 = arith.constant 0 : index
    %0 = vector.load %arg2[%c0, %c0_0, %c0_1] : memref<1x32x144xf32, #tpu.memory_space<vmem>>, vector<1x32x144xf32>
    %1 = vector.shape_cast %0 : vector<1x32x144xf32> to vector<32x144xf32>
    %c0_2 = arith.constant 0 : index
    %c0_3 = arith.constant 0 : index
    %2 = vector.load %arg3[%c0_2, %c0_3] : memref<32x32xbf16, #tpu.memory_space<vmem>>, vector<32x32xbf16>
    %3 = arith.truncf %1 : vector<32x144xf32> to vector<32x144xbf16>
    %cst = arith.constant dense<0.000000e+00> : vector<32x144xf32>
    %4 = tpu.matmul %2, %3, %cst {dimension_numbers = #tpu.dot_dimension_numbers<[1], [0], [0], [1], [0, 0, 1, 1], [], []>} : vector<32x32xbf16>, vector<32x144xbf16>, vector<32x144xf32> -> vector<32x144xf32>
    %c0_4 = arith.constant 0 : index
    %c0_5 = arith.constant 0 : index
    %c0_6 = arith.constant 0 : index
    %5 = vector.load %arg4[%c0_4, %c0_5, %c0_6] : memref<1x32x144xf32, #tpu.memory_space<vmem>>, vector<1x32x144xf32>
    %6 = vector.shape_cast %5 : vector<1x32x144xf32> to vector<32x144xf32>
    %7 = vector.shape_cast %4 : vector<32x144xf32> to vector<1x32x144xf32>
    tpu.vector_store %arg4[%c0_4, %c0_5, %c0_6], %7 {strides = array<i32>} : memref<1x32x144xf32, #tpu.memory_space<vmem>>, vector<1x32x144xf32>,
    %cst_7 = arith.constant dense<0.000000e+00> : vector<32xf32>
    %8 = vector.multi_reduction <add>, %4, %cst_7 [1] : vector<32x144xf32> to vector<32xf32>
    %9 = vector.shape_cast %8 : vector<32xf32> to vector<32x1xf32>
    %10 = arith.mulf %4, %4 : vector<32x144xf32>
    %cst_8 = arith.constant dense<0.000000e+00> : vector<32xf32>
    %11 = vector.multi_reduction <add>, %10, %cst_8 [1] : vector<32x144xf32> to vector<32xf32>
    %12 = vector.shape_cast %11 : vector<32xf32> to vector<32x1xf32>
    %13 = vector.shape_cast %9 : vector<32x1xf32> to vector<32x1xf32>
    %14 = vector.broadcast %13 : vector<32x1xf32> to vector<32x128xf32>
    %c0_9 = arith.constant 0 : index
    %c0_10 = arith.constant 0 : index
    %c0_11 = arith.constant 0 : index
    %15 = vector.load %arg5[%c0_9, %c0_10, %c0_11] : memref<1x32x128xf32, #tpu.memory_space<vmem>>, vector<1x32x128xf32>
    %16 = vector.shape_cast %15 : vector<1x32x128xf32> to vector<32x128xf32>
    %17 = vector.shape_cast %14 : vector<32x128xf32> to vector<1x32x128xf32>
    tpu.vector_store %arg5[%c0_9, %c0_10, %c0_11], %17 {strides = array<i32>} : memref<1x32x128xf32, #tpu.memory_space<vmem>>, vector<1x32x128xf32>,
    %18 = vector.shape_cast %12 : vector<32x1xf32> to vector<32x1xf32>
    %19 = vector.broadcast %18 : vector<32x1xf32> to vector<32x128xf32>
    %c0_12 = arith.constant 0 : index
    %c0_13 = arith.constant 0 : index
    %c0_14 = arith.constant 0 : index
    %20 = vector.load %arg6[%c0_12, %c0_13, %c0_14] : memref<1x32x128xf32, #tpu.memory_space<vmem>>, vector<1x32x128xf32>
    %21 = vector.shape_cast %20 : vector<1x32x128xf32> to vector<32x128xf32>
    %22 = vector.shape_cast %19 : vector<32x128xf32> to vector<1x32x128xf32>
    tpu.vector_store %arg6[%c0_12, %c0_13, %c0_14], %22 {strides = array<i32>} : memref<1x32x128xf32, #tpu.memory_space<vmem>>, vector<1x32x128xf32>,
    return
  }
  func.func @transform_0(%arg0: i32, %arg1: i32) -> (i32, i32, i32) {
    %c0_i32 = arith.constant 0 : i32
    %c0_i32_0 = arith.constant 0 : i32
    return %arg0, %c0_i32, %arg1 : i32, i32, i32
  }
  func.func @transform_1(%arg0: i32, %arg1: i32) -> (i32, i32) {
    %c0_i32 = arith.constant 0 : i32
    %c0_i32_0 = arith.constant 0 : i32
    %c0_i32_1 = arith.constant 0 : i32
    return %c0_i32, %c0_i32_0 : i32, i32
  }
  func.func @transform_2(%arg0: i32, %arg1: i32) -> (i32, i32, i32) {
    %c0_i32 = arith.constant 0 : i32
    %c0_i32_0 = arith.constant 0 : i32
    return %arg0, %c0_i32, %arg1 : i32, i32, i32
  }
  func.func @transform_3(%arg0: i32, %arg1: i32) -> (i32, i32, i32) {
    %c0_i32 = arith.constant 0 : i32
    %c0_i32_0 = arith.constant 0 : i32
    return %arg0, %c0_i32, %arg1 : i32, i32, i32
  }
  func.func @transform_4(%arg0: i32, %arg1: i32) -> (i32, i32, i32) {
    %c0_i32 = arith.constant 0 : i32
    %c0_i32_0 = arith.constant 0 : i32
    return %arg0, %c0_i32, %arg1 : i32, i32, i32
  }
}

module attributes {stable_mosaic.version = 11 : i64} {
  func.func @_bn_relu_kernel(%arg0: i32, %arg1: i32, %arg2: memref<1x32x144xf32, #tpu.memory_space<vmem>>, %arg3: memref<32x1xf32, #tpu.memory_space<vmem>>, %arg4: memref<32x1xf32, #tpu.memory_space<vmem>>, %arg5: memref<1x32x144xf32, #tpu.memory_space<vmem>>) attributes {dimension_semantics = [#tpu.dimension_semantics<parallel>, #tpu.dimension_semantics<parallel>], iteration_bounds = array<i64: 2, 1>, scalar_prefetch = 0 : i64, scratch_operands = 0 : i64, tpu.core_type = #tpu.core_type<tc>, window_params = [{transform_indices = @transform_0, window_bounds = array<i64: 1, 32, 144>}, {pipeline_mode = #tpu.pipeline_mode<synchronous>, transform_indices = @transform_1, window_bounds = array<i64: 32, 1>}, {pipeline_mode = #tpu.pipeline_mode<synchronous>, transform_indices = @transform_2, window_bounds = array<i64: 32, 1>}, {transform_indices = @transform_3, window_bounds = array<i64: 1, 32, 144>}]} {
    %c0 = arith.constant 0 : index
    %c0_0 = arith.constant 0 : index
    %c0_1 = arith.constant 0 : index
    %0 = vector.load %arg2[%c0, %c0_0, %c0_1] : memref<1x32x144xf32, #tpu.memory_space<vmem>>, vector<1x32x144xf32>
    %1 = vector.shape_cast %0 : vector<1x32x144xf32> to vector<32x144xf32>
    %c0_2 = arith.constant 0 : index
    %c0_3 = arith.constant 0 : index
    %2 = vector.load %arg3[%c0_2, %c0_3] : memref<32x1xf32, #tpu.memory_space<vmem>>, vector<32x1xf32>
    %3 = vector.broadcast %2 : vector<32x1xf32> to vector<32x144xf32>
    %4 = arith.mulf %1, %3 : vector<32x144xf32>
    %c0_4 = arith.constant 0 : index
    %c0_5 = arith.constant 0 : index
    %5 = vector.load %arg4[%c0_4, %c0_5] : memref<32x1xf32, #tpu.memory_space<vmem>>, vector<32x1xf32>
    %6 = vector.broadcast %5 : vector<32x1xf32> to vector<32x144xf32>
    %7 = arith.addf %4, %6 : vector<32x144xf32>
    %cst = arith.constant 0.000000e+00 : f32
    %8 = vector.broadcast %cst : f32 to vector<32x144xf32>
    %9 = arith.maximumf %7, %8 : vector<32x144xf32>
    %c0_6 = arith.constant 0 : index
    %c0_7 = arith.constant 0 : index
    %c0_8 = arith.constant 0 : index
    %10 = vector.load %arg5[%c0_6, %c0_7, %c0_8] : memref<1x32x144xf32, #tpu.memory_space<vmem>>, vector<1x32x144xf32>
    %11 = vector.shape_cast %10 : vector<1x32x144xf32> to vector<32x144xf32>
    %12 = vector.shape_cast %9 : vector<32x144xf32> to vector<1x32x144xf32>
    tpu.vector_store %arg5[%c0_6, %c0_7, %c0_8], %12 {strides = array<i32>} : memref<1x32x144xf32, #tpu.memory_space<vmem>>, vector<1x32x144xf32>,
    return
  }
  func.func @transform_0(%arg0: i32, %arg1: i32) -> (i32, i32, i32) {
    %c0_i32 = arith.constant 0 : i32
    %c0_i32_0 = arith.constant 0 : i32
    return %arg0, %c0_i32, %arg1 : i32, i32, i32
  }
  func.func @transform_1(%arg0: i32, %arg1: i32) -> (i32, i32) {
    %c0_i32 = arith.constant 0 : i32
    %c0_i32_0 = arith.constant 0 : i32
    %c0_i32_1 = arith.constant 0 : i32
    return %c0_i32, %c0_i32_0 : i32, i32
  }
  func.func @transform_2(%arg0: i32, %arg1: i32) -> (i32, i32) {
    %c0_i32 = arith.constant 0 : i32
    %c0_i32_0 = arith.constant 0 : i32
    %c0_i32_1 = arith.constant 0 : i32
    return %c0_i32, %c0_i32_0 : i32, i32
  }
  func.func @transform_3(%arg0: i32, %arg1: i32) -> (i32, i32, i32) {
    %c0_i32 = arith.constant 0 : i32
    %c0_i32_0 = arith.constant 0 : i32
    return %arg0, %c0_i32, %arg1 : i32, i32, i32
  }
}

module attributes {stable_mosaic.version = 11 : i64} {
  func.func @_conv1x1_sum_kernel(%arg0: i32, %arg1: i32, %arg2: memref<1x16x256xf32, #tpu.memory_space<vmem>>, %arg3: memref<1x16x256xf32, #tpu.memory_space<vmem>>, %arg4: memref<1x16x256xbf16, #tpu.memory_space<vmem>>, %arg5: memref<32x16xbf16, #tpu.memory_space<vmem>>, %arg6: memref<1x32x256xf32, #tpu.memory_space<vmem>>) attributes {dimension_semantics = [#tpu.dimension_semantics<parallel>, #tpu.dimension_semantics<parallel>], iteration_bounds = array<i64: 2, 1>, scalar_prefetch = 0 : i64, scratch_operands = 0 : i64, tpu.core_type = #tpu.core_type<tc>, window_params = [{transform_indices = @transform_0, window_bounds = array<i64: 1, 16, 256>}, {transform_indices = @transform_1, window_bounds = array<i64: 1, 16, 256>}, {transform_indices = @transform_2, window_bounds = array<i64: 1, 16, 256>}, {pipeline_mode = #tpu.pipeline_mode<synchronous>, transform_indices = @transform_3, window_bounds = array<i64: 32, 16>}, {transform_indices = @transform_4, window_bounds = array<i64: 1, 32, 256>}]} {
    %c0 = arith.constant 0 : index
    %c0_0 = arith.constant 0 : index
    %c0_1 = arith.constant 0 : index
    %0 = vector.load %arg2[%c0, %c0_0, %c0_1] : memref<1x16x256xf32, #tpu.memory_space<vmem>>, vector<1x16x256xf32>
    %1 = vector.shape_cast %0 : vector<1x16x256xf32> to vector<16x256xf32>
    %c0_2 = arith.constant 0 : index
    %c0_3 = arith.constant 0 : index
    %c0_4 = arith.constant 0 : index
    %2 = vector.load %arg3[%c0_2, %c0_3, %c0_4] : memref<1x16x256xf32, #tpu.memory_space<vmem>>, vector<1x16x256xf32>
    %3 = vector.shape_cast %2 : vector<1x16x256xf32> to vector<16x256xf32>
    %4 = arith.addf %1, %3 : vector<16x256xf32>
    %c0_5 = arith.constant 0 : index
    %c0_6 = arith.constant 0 : index
    %c0_7 = arith.constant 0 : index
    %5 = vector.load %arg4[%c0_5, %c0_6, %c0_7] : memref<1x16x256xbf16, #tpu.memory_space<vmem>>, vector<1x16x256xbf16>
    %6 = vector.shape_cast %5 : vector<1x16x256xbf16> to vector<16x256xbf16>
    %7 = arith.extf %6 : vector<16x256xbf16> to vector<16x256xf32>
    %8 = arith.addf %4, %7 : vector<16x256xf32>
    %c0_8 = arith.constant 0 : index
    %c0_9 = arith.constant 0 : index
    %9 = vector.load %arg5[%c0_8, %c0_9] : memref<32x16xbf16, #tpu.memory_space<vmem>>, vector<32x16xbf16>
    %10 = arith.truncf %8 : vector<16x256xf32> to vector<16x256xbf16>
    %cst = arith.constant dense<0.000000e+00> : vector<32x256xf32>
    %11 = tpu.matmul %9, %10, %cst {dimension_numbers = #tpu.dot_dimension_numbers<[1], [0], [0], [1], [0, 0, 1, 1], [], []>} : vector<32x16xbf16>, vector<16x256xbf16>, vector<32x256xf32> -> vector<32x256xf32>
    %c0_10 = arith.constant 0 : index
    %c0_11 = arith.constant 0 : index
    %c0_12 = arith.constant 0 : index
    %12 = vector.load %arg6[%c0_10, %c0_11, %c0_12] : memref<1x32x256xf32, #tpu.memory_space<vmem>>, vector<1x32x256xf32>
    %13 = vector.shape_cast %12 : vector<1x32x256xf32> to vector<32x256xf32>
    %14 = vector.shape_cast %11 : vector<32x256xf32> to vector<1x32x256xf32>
    tpu.vector_store %arg6[%c0_10, %c0_11, %c0_12], %14 {strides = array<i32>} : memref<1x32x256xf32, #tpu.memory_space<vmem>>, vector<1x32x256xf32>,
    return
  }
  func.func @transform_0(%arg0: i32, %arg1: i32) -> (i32, i32, i32) {
    %c0_i32 = arith.constant 0 : i32
    %c0_i32_0 = arith.constant 0 : i32
    return %arg0, %c0_i32, %arg1 : i32, i32, i32
  }
  func.func @transform_1(%arg0: i32, %arg1: i32) -> (i32, i32, i32) {
    %c0_i32 = arith.constant 0 : i32
    %c0_i32_0 = arith.constant 0 : i32
    return %arg0, %c0_i32, %arg1 : i32, i32, i32
  }
  func.func @transform_2(%arg0: i32, %arg1: i32) -> (i32, i32, i32) {
    %c0_i32 = arith.constant 0 : i32
    %c0_i32_0 = arith.constant 0 : i32
    return %arg0, %c0_i32, %arg1 : i32, i32, i32
  }
  func.func @transform_3(%arg0: i32, %arg1: i32) -> (i32, i32) {
    %c0_i32 = arith.constant 0 : i32
    %c0_i32_0 = arith.constant 0 : i32
    %c0_i32_1 = arith.constant 0 : i32
    return %c0_i32, %c0_i32_0 : i32, i32
  }
  func.func @transform_4(%arg0: i32, %arg1: i32) -> (i32, i32, i32) {
    %c0_i32 = arith.constant 0 : i32
    %c0_i32_0 = arith.constant 0 : i32
    return %arg0, %c0_i32, %arg1 : i32, i32, i32
  }
}

</mosaic_0001>

<llo_original>
// kernel: _lambda_.7
$region0: #{_lambda_.7}
  #allocation0 [shape = 'u32[]', space=smem, size = 0x4, offset = 0x4, fixed_abs, tag = 'smem constant byte address 0x4 - core index']
  #allocation1 [shape = 'u32[72,128]{1,0:T(1,128)}', space=vmem, size = 0x9000, scoped, tag = 'internal scratch']
  %s0 = inlined_call_operand.vmem [shape: f32[2,8,256], index: 0, kind: input, shape index: {}]
  %s1 = inlined_call_operand.vmem [shape: bf16[16,8], index: 1, kind: input, shape index: {}]
  %s2 = inlined_call_operand.vmem [shape: f32[2,16,256], index: 2, kind: output, shape index: {0}]
  %s3 = inlined_call_operand.vmem [shape: f32[2,16,128], index: 3, kind: output, shape index: {1}]
  %s4 = inlined_call_operand.vmem [shape: f32[2,16,128], index: 4, kind: output, shape index: {2}]
  %5 = xla_tuple %s2, %s3, %s4
  %s6 = sld [smem:[#allocation0]]
  $region57: #{_lambda_.7} parent=0
    _
  %s8 = ssub.s32 1, %s6
  %s9 = scalar_select 0, %s8, %s6
  loop: start=0, step=1, limit=4
  $region2: #{_lambda_.7} parent=0 // loop_pre_header
    _
  $region3: #{_lambda_.7} parent=0 // loop_header
    %s11 = sphi 0, %s15
    %p12 = scmp.ge.s32.totalorder %s11, 4
    %s18 = sphi 0, %s30
    %s19 = sphi 0, %s26
    %s20 = sphi 0, %s18
    %s21 = sphi 0, %s19
    %s22 = sphi 0, %s20
    %s23 = sphi 0, %s21
    %s35 = sphi 0, %s37
    %s38 = sphi 0, %s35
    %s39 = sphi 0, %s38
    %s55 = sphi 0, %s39
    %s59 = sphi 0, %s59
    %s61 = sphi 0, %s59
    %s62 = sphi 0, %s61
    %s76 = sphi 0, %s62
    %s84 = sphi 0, %s86
    %s87 = sphi 0, %s84
    %s88 = sphi 0, %s87
    %s104 = sphi 0, %s88
    %s112 = sphi 0, %s114
    %s115 = sphi 0, %s112
    %s116 = sphi 0, %s115
    %s132 = sphi 0, %s116
    %s140 = sphi 0, %s142
    %s143 = sphi 0, %s140
    %s144 = sphi 0, %s143
    %s160 = sphi 0, %s144
  $region4: #{_lambda_.7} parent=0 // loop_header_branch
    %14 = sbr.rel (%p12) target = $region8
  $region5: #{_lambda_.7} parent=0 // loop_body
    %s16 = ssub.s32 %s11, 1
    %s17 = ssub.s32 %s11, 2
    %s24 = sadd.s32 1, %s19
    %p25 = scmp.ge.s32.totalorder %s24, 1
    %s26 = scalar_select %p25, 0, %s24
    %s27 = sadd.s32 1, %s18
    %s28 = scalar_select %p25, %s27, %s18
    %p29 = scmp.ge.s32.totalorder %s28, 2
    %s30 = scalar_select %p29, 0, %s28
    %s31 = ssub.s32 %s18, %s30
    %s32 = ssub.s32 %s19, %s26
    %s33 = sor.u32 %s31, %s32
    %p34 = scmp.eq.s32.totalorder %s33, 0
    %s36 = sadd.s32 %s35, 1
    %s37 = scalar_select %p34, %s35, %s36
    %p40 = pneg %p34
    %p41 = scmp.eq.s32.totalorder %s11, 1
    %p42 = por %p40, %p41
    %p43 = scmp.ne.s32.totalorder %s35, %s38
    %p44 = scmp.eq.s32.totalorder %s11, 0
    %p45 = por %p43, %p44
    %p46 = scmp.ne.s32.totalorder %s35, %s38
    %p47 = scmp.eq.s32.totalorder %s16, 1
    %p48 = por %p46, %p47
    %p49 = scmp.ne.s32.totalorder %s38, %s39
    %p50 = scmp.eq.s32.totalorder %s16, 0
    %p51 = por %p49, %p50
    %p52 = scmp.ne.s32.totalorder %s38, %s39
    %p53 = scmp.eq.s32.totalorder %s17, 1
    %p54 = por %p52, %p53
    %p56 = scmp.ne.s32.totalorder %s39, %s55
    %p57 = scmp.eq.s32.totalorder %s17, 0
    %p58 = por %p56, %p57
    %s60 = sadd.s32 %s59, 1
    %p63 = scmp.eq.s32.totalorder %s11, 1
    %p64 = scmp.ne.s32.totalorder %s59, %s61
    %p65 = scmp.eq.s32.totalorder %s11, 0
    %p66 = por %p64, %p65
    %p67 = scmp.ne.s32.totalorder %s59, %s61
    %p68 = scmp.eq.s32.totalorder %s16, 1
    %p69 = por %p67, %p68
    %p70 = scmp.ne.s32.totalorder %s61, %s62
    %p71 = scmp.eq.s32.totalorder %s16, 0
    %p72 = por %p70, %p71
    %p73 = scmp.ne.s32.totalorder %s61, %s62
    %p74 = scmp.eq.s32.totalorder %s17, 1
    %p75 = por %p73, %p74
    %p77 = scmp.ne.s32.totalorder %s62, %s76
    %p78 = scmp.eq.s32.totalorder %s17, 0
    %p79 = por %p77, %p78
    %s80 = ssub.s32 %s18, %s30
    %s81 = ssub.s32 %s19, %s26
    %s82 = sor.u32 %s80, %s81
    %p83 = scmp.eq.s32.totalorder %s82, 0
    %s85 = sadd.s32 %s84, 1
    %s86 = scalar_select %p83, %s84, %s85
    %p89 = pneg %p83
    %p90 = scmp.eq.s32.totalorder %s11, 1
    %p91 = por %p89, %p90
    %p92 = scmp.ne.s32.totalorder %s84, %s87
    %p93 = scmp.eq.s32.totalorder %s11, 0
    %p94 = por %p92, %p93
    %p95 = scmp.ne.s32.totalorder %s84, %s87
    %p96 = scmp.eq.s32.totalorder %s16, 1
    %p97 = por %p95, %p96
    %p98 = scmp.ne.s32.totalorder %s87, %s88
    %p99 = scmp.eq.s32.totalorder %s16, 0
    %p100 = por %p98, %p99
    %p101 = scmp.ne.s32.totalorder %s87, %s88
    %p102 = scmp.eq.s32.totalorder %s17, 1
    %p103 = por %p101, %p102
    %p105 = scmp.ne.s32.totalorder %s88, %s104
    %p106 = scmp.eq.s32.totalorder %s17, 0
    %p107 = por %p105, %p106
    %s108 = ssub.s32 %s18, %s30
    %s109 = ssub.s32 %s19, %s26
    %s110 = sor.u32 %s108, %s109
    %p111 = scmp.eq.s32.totalorder %s110, 0
    %s113 = sadd.s32 %s112, 1
    %s114 = scalar_select %p111, %s112, %s113
    %p117 = pneg %p111
    %p118 = scmp.eq.s32.totalorder %s11, 1
    %p119 = por %p117, %p118
    %p120 = scmp.ne.s32.totalorder %s112, %s115
    %p121 = scmp.eq.s32.totalorder %s11, 0
    %p122 = por %p120, %p121
    %p123 = scmp.ne.s32.totalorder %s112, %s115
    %p124 = scmp.eq.s32.totalorder %s16, 1
    %p125 = por %p123, %p124
    %p126 = scmp.ne.s32.totalorder %s115, %s116
    %p127 = scmp.eq.s32.totalorder %s16, 0
    %p128 = por %p126, %p127
    %p129 = scmp.ne.s32.totalorder %s115, %s116
    %p130 = scmp.eq.s32.totalorder %s17, 1
    %p131 = por %p129, %p130
    %p133 = scmp.ne.s32.totalorder %s116, %s132
    %p134 = scmp.eq.s32.totalorder %s17, 0
    %p135 = por %p133, %p134
    %s136 = ssub.s32 %s18, %s30
    %s137 = ssub.s32 %s19, %s26
    %s138 = sor.u32 %s136, %s137
    %p139 = scmp.eq.s32.totalorder %s138, 0
    %s141 = sadd.s32 %s140, 1
    %s142 = scalar_select %p139, %s140, %s141
    %p145 = pneg %p139
    %p146 = scmp.eq.s32.totalorder %s11, 1
    %p147 = por %p145, %p146
    %p148 = scmp.ne.s32.totalorder %s140, %s143
    %p149 = scmp.eq.s32.totalorder %s11, 0
    %p150 = por %p148, %p149
    %p151 = scmp.ne.s32.totalorder %s140, %s143
    %p152 = scmp.eq.s32.totalorder %s16, 1
    %p153 = por %p151, %p152
    %p154 = scmp.ne.s32.totalorder %s143, %s144
    %p155 = scmp.eq.s32.totalorder %s16, 0
    %p156 = por %p154, %p155
    %p157 = scmp.ne.s32.totalorder %s143, %s144
    %p158 = scmp.eq.s32.totalorder %s17, 1
    %p159 = por %p157, %p158
    %p161 = scmp.ne.s32.totalorder %s144, %s160
    %p162 = scmp.eq.s32.totalorder %s17, 0
    %p163 = por %p161, %p162
    %p164 = scmp.le.s32.totalorder 1, %s11
    %p165 = scmp.lt.s32.totalorder %s11, 3
    %p166 = pnand %p164, %p165
    %p167 = pneg %p166
    // Predicated region
    $region9: #{_lambda_.7} parent=5 // pred_check
      _
    $region10: #{_lambda_.7} parent=5 // pred_check_branch
      %169 = sbr.rel (%p166) target = $region12
    $region11: #{_lambda_.7} parent=5 // pred_region
      %s170 = ssub.s32 %s11, 1
      // Predicated region
      $region13: #{_lambda_.7} parent=11 // pred_check
        %p171 = pneg %p72
      $region14: #{_lambda_.7} parent=11 // pred_check_branch
        %173 = sbr.rel (%p171) target = $region16
      $region15: #{_lambda_.7} parent=11 // pred_region
        _
      $region16: #{_lambda_.7} parent=11 // pred_fallthru
        _
    $region12: #{_lambda_.7} parent=5 // pred_fallthru
      _
    %p174 = scmp.lt.s32.totalorder %s11, 2
    // Predicated region
    $region17: #{_lambda_.7} parent=5 // pred_check
      %p175 = pneg %p174
    $region18: #{_lambda_.7} parent=5 // pred_check_branch
      %177 = sbr.rel (%p175) target = $region20
    $region19: #{_lambda_.7} parent=5 // pred_region
      // Predicated region
      $region21: #{_lambda_.7} parent=19 // pred_check
        %p178 = pneg %p45
      $region22: #{_lambda_.7} parent=19 // pred_check_branch
        %180 = sbr.rel (%p178) target = $region24
      $region23: #{_lambda_.7} parent=19 // pred_region
        %s181 = smul.u32 2, %s19
        %p182 = scmp.lt.s32.totalorder %s18, 1
        %s183 = scalar_select %p182, %s18, 1
        %p184 = scmp.lt.s32.totalorder %s181, 1
        %s185 = scalar_select %p184, %s181, 1
        %s186 = smul.addr %s183, 2
        %s187 = sadd.s32 %s185, %s186
        %s188 = smul.addr %s187, 8
        %s189 = scalar_lea.vmem %s0, %s188
        %s190 = smul.u32 2, %s19
      $region24: #{_lambda_.7} parent=19 // pred_fallthru
        _
    $region20: #{_lambda_.7} parent=5 // pred_fallthru
      _
    %p191 = scmp.le.s32.totalorder 1, %s11
    %p192 = scmp.lt.s32.totalorder %s11, 3
    %p193 = pnand %p191, %p192
    %p194 = pneg %p193
    // Predicated region
    $region25: #{_lambda_.7} parent=5 // pred_check
      _
    $region26: #{_lambda_.7} parent=5 // pred_check_branch
      %196 = sbr.rel (%p193) target = $region28
    $region27: #{_lambda_.7} parent=5 // pred_region
      %s197 = ssub.s32 %s11, 1
      %s198 = smul.u32 2, %s21
      %p199 = scmp.lt.s32.totalorder %s20, 1
      %s200 = scalar_select %p199, %s20, 1
      %p201 = scmp.lt.s32.totalorder %s198, 1
      %s202 = scalar_select %p201, %s198, 1
      %s203 = smul.addr %s200, 2
      %s204 = sadd.s32 %s202, %s203
      %s205 = smul.addr %s204, 8
      %s206 = scalar_lea.vmem %s0, %s205
      %p207 = pneg %p51
      %p208 = pneg %p48
      %p209 = pneg %p72
      %p210 = pneg %p69
      %p211 = pneg %p100
      %p212 = pneg %p97
      %s213 = smul.u32 2, %s21
      %p214 = scmp.lt.s32.totalorder %s20, 1
      %s215 = scalar_select %p214, %s20, 1
      %p216 = scmp.lt.s32.totalorder %s213, 1
      %s217 = scalar_select %p216, %s213, 1
      %s218 = smul.addr %s215, 4
      %s219 = sadd.s32 %s217, %s218
      %s220 = smul.addr %s219, 8
      %s221 = scalar_lea.vmem %s2, %s220
      %p222 = pneg %p128
      %p223 = pneg %p125
      %p224 = scmp.lt.s32.totalorder %s20, 1
      %s225 = scalar_select %p224, %s20, 1
      %p226 = scmp.lt.s32.totalorder %s21, 0
      %s227 = scalar_select %p226, %s21, 0
      %s228 = smul.addr %s225, 2
      %s229 = sadd.s32 %s227, %s228
      %s230 = smul.addr %s229, 8
      %s231 = scalar_lea.vmem %s3, %s230
      %p232 = pneg %p156
      %p233 = pneg %p153
      %p234 = scmp.lt.s32.totalorder %s20, 1
      %s235 = scalar_select %p234, %s20, 1
      %p236 = scmp.lt.s32.totalorder %s21, 0
      %s237 = scalar_select %p236, %s21, 0
      %s238 = smul.addr %s235, 2
      %s239 = sadd.s32 %s237, %s238
      %s240 = smul.addr %s239, 8
      %s241 = scalar_lea.vmem %s4, %s240
      %s242 = smul.u32 2, %s21
      %p243 = scmp.lt.s32.totalorder %s20, 1
      %s244 = scalar_select %p243, %s20, 1
      %p245 = scmp.lt.s32.totalorder %s242, 1
      %s246 = scalar_select %p245, %s242, 1
      %s247 = smul.addr %s244, 2
      %s248 = sadd.s32 %s246, %s247
      %s249 = smul.addr %s248, 8
      %s250 = scalar_lea.vmem %s0, %s249
      %s251 = smul.u32 2, %s21
      %s252 = smul.u32 2, %s21
      %p253 = scmp.lt.s32.totalorder %s20, 1
      %s254 = scalar_select %p253, %s20, 1
      %p255 = scmp.lt.s32.totalorder %s252, 1
      %s256 = scalar_select %p255, %s252, 1
      %s257 = smul.addr %s254, 4
      %s258 = sadd.s32 %s256, %s257
      %s259 = smul.addr %s258, 8
      %s260 = scalar_lea.vmem %s2, %s259
      %s261 = smul.u32 2, %s21
      %p262 = scmp.lt.s32.totalorder %s20, 1
      %s263 = scalar_select %p262, %s20, 1
      %p264 = scmp.lt.s32.totalorder %s21, 0
      %s265 = scalar_select %p264, %s21, 0
      %s266 = smul.addr %s263, 2
      %s267 = sadd.s32 %s265, %s266
      %s268 = smul.addr %s267, 8
      %s269 = scalar_lea.vmem %s3, %s268
      %p270 = scmp.lt.s32.totalorder %s20, 1
      %s271 = scalar_select %p270, %s20, 1
      %p272 = scmp.lt.s32.totalorder %s21, 0
      %s273 = scalar_select %p272, %s21, 0
      %s274 = smul.addr %s271, 2
      %s275 = sadd.s32 %s273, %s274
      %s276 = smul.addr %s275, 8
      %s277 = scalar_lea.vmem %s4, %s276
      %v279 = vld [vmem:[%s250] sm:$0xff]
      %v280 = vld [vmem:[%s250 + $0x8] sm:$0xff]
      %v281 = vld [vmem:[%s1] sm:$0xf]
      %v282 = vld [vmem:[%s1 + $0x4] sm:$0xf]
      %v283 = vpack.c.bf16 %v279, %v279
      %v284 = vpack.c.bf16 %v280, %v280
      %v287 = vunpack.c.l.b16 %v281
      %v288 = vunpack.c.l.b16 %v282
      %v289 = vpack.c.b16 %v288, %v287
      %vm290 = vcmask 64512
      %v292 = vsel %vm290, %v289, 0
      %vm294 = vcmask 1043456
      %v296 = vsel %vm294, %v283, 0
      %v299 = vsel %vm294, %v284, 0
      %301 = vmatpush.bf16.msra.mxu0 0
      %302 = vmatpush.bf16.msra.mxu0 0
      %303 = vmatpush.bf16.msra.mxu0 0
      %304 = vmatpush.bf16.msra.mxu0 0
      %305 = vmatpush.bf16.msra.mxu0 0
      %306 = vmatpush.bf16.msra.mxu0 0
      %307 = vmatpush.bf16.msra.mxu0 0
      %308 = vmatpush.bf16.msra.mxu0 %v296
      %309 = vmatmul.bf16.gmra.mxu0 %v292
      %v310 = vpop.f32.mrf.mxu0
      %v311 = vadd.f32 0.0, %v310
      %v312 = vpop.f32.mrf.mxu0
      %v313 = vadd.f32 0.0, %v312
      %314 = vdwg.mxu0
      %315 = vmatpush.bf16.msra.mxu0 0
      %316 = vmatpush.bf16.msra.mxu0 0
      %317 = vmatpush.bf16.msra.mxu0 0
      %318 = vmatpush.bf16.msra.mxu0 0
      %319 = vmatpush.bf16.msra.mxu0 0
      %320 = vmatpush.bf16.msra.mxu0 0
      %321 = vmatpush.bf16.msra.mxu0 0
      %322 = vmatpush.bf16.msra.mxu0 %v299
      %323 = vmatmul.bf16.gmra.mxu0 %v292
      %v324 = vpop.f32.mrf.mxu0
      %v325 = vadd.f32 0.0, %v324
      %v326 = vpop.f32.mrf.mxu0
      %v327 = vadd.f32 0.0, %v326
      %328 = vdwg.mxu0
      %329 = vst [vmem:[%s260] sm:$0xff] %v311
      %330 = vst [vmem:[%s260 + $0x8] sm:$0xff] %v325
      %331 = vst [vmem:[%s260 + $0x10] sm:$0xff] %v313
      %332 = vst [vmem:[%s260 + $0x18] sm:$0xff] %v327
      %v333 = vadd.f32 %v311, %v325
      %334 = vadd.xlane.f32.xlu0 %v333
      %v335 = vpop.xlane.xlu0 %334
      %v336 = vadd.f32 %v313, %v327
      %337 = vadd.xlane.f32.xlu0 %v336
      %v338 = vpop.xlane.xlu0 %337
      %v339 = vmul.f32 %v311, %v311
      %v340 = vmul.f32 %v325, %v325
      %v341 = vmul.f32 %v313, %v313
      %v342 = vmul.f32 %v327, %v327
      %v343 = vadd.f32 %v339, %v340
      %344 = vadd.xlane.f32.xlu0 %v343
      %v345 = vpop.xlane.xlu0 %344
      %v346 = vadd.f32 %v341, %v342
      %347 = vadd.xlane.f32.xlu0 %v346
      %v348 = vpop.xlane.xlu0 %347
      %349 = vst [vmem:[%s269] sm:$0xff] %v335
      %350 = vst [vmem:[%s269 + $0x8] sm:$0xff] %v338
      %351 = vst [vmem:[%s277] sm:$0xff] %v345
      %352 = vst [vmem:[%s277 + $0x8] sm:$0xff] %v348
      %s353 = smul.u32 2, %s21
      %p354 = scmp.lt.s32.totalorder %s20, 1
      %s355 = scalar_select %p354, %s20, 1
      %p356 = scmp.lt.s32.totalorder %s353, 1
      %s357 = scalar_select %p356, %s353, 1
      %s358 = smul.addr %s355, 4
      %s359 = sadd.s32 %s357, %s358
      %s360 = smul.addr %s359, 8
      %s361 = scalar_lea.vmem %s2, %s360
      %p362 = scmp.lt.s32.totalorder %s20, 1
      %s363 = scalar_select %p362, %s20, 1
      %p364 = scmp.lt.s32.totalorder %s21, 0
      %s365 = scalar_select %p364, %s21, 0
      %s366 = smul.addr %s363, 2
      %s367 = sadd.s32 %s365, %s366
      %s368 = smul.addr %s367, 8
      %s369 = scalar_lea.vmem %s3, %s368
      %p370 = scmp.lt.s32.totalorder %s20, 1
      %s371 = scalar_select %p370, %s20, 1
      %p372 = scmp.lt.s32.totalorder %s21, 0
      %s373 = scalar_select %p372, %s21, 0
      %s374 = smul.addr %s371, 2
      %s375 = sadd.s32 %s373, %s374
      %s376 = smul.addr %s375, 8
      %s377 = scalar_lea.vmem %s4, %s376
      // Predicated region
      $region29: #{_lambda_.7} parent=27 // pred_check
        %p378 = pneg %p97
      $region30: #{_lambda_.7} parent=27 // pred_check_branch
        %380 = sbr.rel (%p378) target = $region32
      $region31: #{_lambda_.7} parent=27 // pred_region
        %s381 = smul.u32 2, %s21
      $region32: #{_lambda_.7} parent=27 // pred_fallthru
        _
      // Predicated region
      $region33: #{_lambda_.7} parent=27 // pred_check
        %p382 = pneg %p125
      $region34: #{_lambda_.7} parent=27 // pred_check_branch
        %384 = sbr.rel (%p382) target = $region36
      $region35: #{_lambda_.7} parent=27 // pred_region
        _
      $region36: #{_lambda_.7} parent=27 // pred_fallthru
        _
      // Predicated region
      $region37: #{_lambda_.7} parent=27 // pred_check
        %p385 = pneg %p153
      $region38: #{_lambda_.7} parent=27 // pred_check_branch
        %387 = sbr.rel (%p385) target = $region40
      $region39: #{_lambda_.7} parent=27 // pred_region
        _
      $region40: #{_lambda_.7} parent=27 // pred_fallthru
        _
    $region28: #{_lambda_.7} parent=5 // pred_fallthru
      _
    %p388 = scmp.le.s32.totalorder 2, %s11
    // Predicated region
    $region41: #{_lambda_.7} parent=5 // pred_check
      %p389 = pneg %p388
    $region42: #{_lambda_.7} parent=5 // pred_check_branch
      %391 = sbr.rel (%p389) target = $region44
    $region43: #{_lambda_.7} parent=5 // pred_region
      %s392 = ssub.s32 %s11, 2
      // Predicated region
      $region45: #{_lambda_.7} parent=43 // pred_check
        %p393 = pneg %p103
      $region46: #{_lambda_.7} parent=43 // pred_check_branch
        %395 = sbr.rel (%p393) target = $region48
      $region47: #{_lambda_.7} parent=43 // pred_region
        %s396 = smul.u32 2, %s23
        %p397 = scmp.lt.s32.totalorder %s22, 1
        %s398 = scalar_select %p397, %s22, 1
        %p399 = scmp.lt.s32.totalorder %s396, 1
        %s400 = scalar_select %p399, %s396, 1
        %s401 = smul.addr %s398, 4
        %s402 = sadd.s32 %s400, %s401
        %s403 = smul.addr %s402, 8
        %s404 = scalar_lea.vmem %s2, %s403
      $region48: #{_lambda_.7} parent=43 // pred_fallthru
        _
      // Predicated region
      $region49: #{_lambda_.7} parent=43 // pred_check
        %p405 = pneg %p131
      $region50: #{_lambda_.7} parent=43 // pred_check_branch
        %407 = sbr.rel (%p405) target = $region52
      $region51: #{_lambda_.7} parent=43 // pred_region
        %p408 = scmp.lt.s32.totalorder %s22, 1
        %s409 = scalar_select %p408, %s22, 1
        %p410 = scmp.lt.s32.totalorder %s23, 0
        %s411 = scalar_select %p410, %s23, 0
        %s412 = smul.addr %s409, 2
        %s413 = sadd.s32 %s411, %s412
        %s414 = smul.addr %s413, 8
        %s415 = scalar_lea.vmem %s3, %s414
      $region52: #{_lambda_.7} parent=43 // pred_fallthru
        _
      // Predicated region
      $region53: #{_lambda_.7} parent=43 // pred_check
        %p416 = pneg %p159
      $region54: #{_lambda_.7} parent=43 // pred_check_branch
        %418 = sbr.rel (%p416) target = $region56
      $region55: #{_lambda_.7} parent=43 // pred_region
        %p419 = scmp.lt.s32.totalorder %s22, 1
        %s420 = scalar_select %p419, %s22, 1
        %p421 = scmp.lt.s32.totalorder %s23, 0
        %s422 = scalar_select %p421, %s23, 0
        %s423 = smul.addr %s420, 2
        %s424 = sadd.s32 %s422, %s423
        %s425 = smul.addr %s424, 8
        %s426 = scalar_lea.vmem %s4, %s425
      $region56: #{_lambda_.7} parent=43 // pred_fallthru
        _
    $region44: #{_lambda_.7} parent=5 // pred_fallthru
      _
  $region6: #{_lambda_.7} parent=0 // loop_footer
    %s15 = sadd.s32 1, %s11
  $region7: #{_lambda_.7} parent=0 // loop_footer_branch
    %10 = sbr.rel target = $region3
  $region8: #{_lambda_.7} parent=0 // loop_exit
    _

// kernel: _lambda_.8
$region0: #{_lambda_.8}
  #allocation0 [shape = 'u32[]', space=smem, size = 0x4, offset = 0x4, fixed_abs, tag = 'smem constant byte address 0x4 - core index']
  #allocation1 [shape = 'u32[72,128]{1,0:T(1,128)}', space=vmem, size = 0x9000, scoped, tag = 'internal scratch']
  %s0 = inlined_call_operand.vmem [shape: f32[2,16,256], index: 0, kind: input, shape index: {}]
  %s1 = inlined_call_operand.vmem [shape: f32[16,1], index: 1, kind: input, shape index: {}]
  %s2 = inlined_call_operand.vmem [shape: f32[16,1], index: 2, kind: input, shape index: {}]
  %s3 = inlined_call_operand.vmem [shape: f32[2,16,256], index: 3, kind: output, shape index: {}]
  %s4 = sld [smem:[#allocation0]]
  $region45: #{_lambda_.8} parent=0
    _
  %s6 = ssub.s32 1, %s4
  %s7 = scalar_select 0, %s6, %s4
  loop: start=0, step=1, limit=4
  $region2: #{_lambda_.8} parent=0 // loop_pre_header
    _
  $region3: #{_lambda_.8} parent=0 // loop_header
    %s9 = sphi 0, %s13
    %p10 = scmp.ge.s32.totalorder %s9, 4
    %s16 = sphi 0, %s28
    %s17 = sphi 0, %s24
    %s18 = sphi 0, %s16
    %s19 = sphi 0, %s17
    %s20 = sphi 0, %s18
    %s21 = sphi 0, %s19
    %s33 = sphi 0, %s35
    %s36 = sphi 0, %s33
    %s37 = sphi 0, %s36
    %s53 = sphi 0, %s37
    %s57 = sphi 0, %s57
    %s59 = sphi 0, %s57
    %s60 = sphi 0, %s59
    %s74 = sphi 0, %s60
    %s78 = sphi 0, %s78
    %s80 = sphi 0, %s78
    %s81 = sphi 0, %s80
    %s95 = sphi 0, %s81
    %s103 = sphi 0, %s105
    %s106 = sphi 0, %s103
    %s107 = sphi 0, %s106
    %s123 = sphi 0, %s107
  $region4: #{_lambda_.8} parent=0 // loop_header_branch
    %12 = sbr.rel (%p10) target = $region8
  $region5: #{_lambda_.8} parent=0 // loop_body
    %s14 = ssub.s32 %s9, 1
    %s15 = ssub.s32 %s9, 2
    %s22 = sadd.s32 1, %s17
    %p23 = scmp.ge.s32.totalorder %s22, 1
    %s24 = scalar_select %p23, 0, %s22
    %s25 = sadd.s32 1, %s16
    %s26 = scalar_select %p23, %s25, %s16
    %p27 = scmp.ge.s32.totalorder %s26, 2
    %s28 = scalar_select %p27, 0, %s26
    %s29 = ssub.s32 %s16, %s28
    %s30 = ssub.s32 %s17, %s24
    %s31 = sor.u32 %s29, %s30
    %p32 = scmp.eq.s32.totalorder %s31, 0
    %s34 = sadd.s32 %s33, 1
    %s35 = scalar_select %p32, %s33, %s34
    %p38 = pneg %p32
    %p39 = scmp.eq.s32.totalorder %s9, 1
    %p40 = por %p38, %p39
    %p41 = scmp.ne.s32.totalorder %s33, %s36
    %p42 = scmp.eq.s32.totalorder %s9, 0
    %p43 = por %p41, %p42
    %p44 = scmp.ne.s32.totalorder %s33, %s36
    %p45 = scmp.eq.s32.totalorder %s14, 1
    %p46 = por %p44, %p45
    %p47 = scmp.ne.s32.totalorder %s36, %s37
    %p48 = scmp.eq.s32.totalorder %s14, 0
    %p49 = por %p47, %p48
    %p50 = scmp.ne.s32.totalorder %s36, %s37
    %p51 = scmp.eq.s32.totalorder %s15, 1
    %p52 = por %p50, %p51
    %p54 = scmp.ne.s32.totalorder %s37, %s53
    %p55 = scmp.eq.s32.totalorder %s15, 0
    %p56 = por %p54, %p55
    %s58 = sadd.s32 %s57, 1
    %p61 = scmp.eq.s32.totalorder %s9, 1
    %p62 = scmp.ne.s32.totalorder %s57, %s59
    %p63 = scmp.eq.s32.totalorder %s9, 0
    %p64 = por %p62, %p63
    %p65 = scmp.ne.s32.totalorder %s57, %s59
    %p66 = scmp.eq.s32.totalorder %s14, 1
    %p67 = por %p65, %p66
    %p68 = scmp.ne.s32.totalorder %s59, %s60
    %p69 = scmp.eq.s32.totalorder %s14, 0
    %p70 = por %p68, %p69
    %p71 = scmp.ne.s32.totalorder %s59, %s60
    %p72 = scmp.eq.s32.totalorder %s15, 1
    %p73 = por %p71, %p72
    %p75 = scmp.ne.s32.totalorder %s60, %s74
    %p76 = scmp.eq.s32.totalorder %s15, 0
    %p77 = por %p75, %p76
    %s79 = sadd.s32 %s78, 1
    %p82 = scmp.eq.s32.totalorder %s9, 1
    %p83 = scmp.ne.s32.totalorder %s78, %s80
    %p84 = scmp.eq.s32.totalorder %s9, 0
    %p85 = por %p83, %p84
    %p86 = scmp.ne.s32.totalorder %s78, %s80
    %p87 = scmp.eq.s32.totalorder %s14, 1
    %p88 = por %p86, %p87
    %p89 = scmp.ne.s32.totalorder %s80, %s81
    %p90 = scmp.eq.s32.totalorder %s14, 0
    %p91 = por %p89, %p90
    %p92 = scmp.ne.s32.totalorder %s80, %s81
    %p93 = scmp.eq.s32.totalorder %s15, 1
    %p94 = por %p92, %p93
    %p96 = scmp.ne.s32.totalorder %s81, %s95
    %p97 = scmp.eq.s32.totalorder %s15, 0
    %p98 = por %p96, %p97
    %s99 = ssub.s32 %s16, %s28
    %s100 = ssub.s32 %s17, %s24
    %s101 = sor.u32 %s99, %s100
    %p102 = scmp.eq.s32.totalorder %s101, 0
    %s104 = sadd.s32 %s103, 1
    %s105 = scalar_select %p102, %s103, %s104
    %p108 = pneg %p102
    %p109 = scmp.eq.s32.totalorder %s9, 1
    %p110 = por %p108, %p109
    %p111 = scmp.ne.s32.totalorder %s103, %s106
    %p112 = scmp.eq.s32.totalorder %s9, 0
    %p113 = por %p111, %p112
    %p114 = scmp.ne.s32.totalorder %s103, %s106
    %p115 = scmp.eq.s32.totalorder %s14, 1
    %p116 = por %p114, %p115
    %p117 = scmp.ne.s32.totalorder %s106, %s107
    %p118 = scmp.eq.s32.totalorder %s14, 0
    %p119 = por %p117, %p118
    %p120 = scmp.ne.s32.totalorder %s106, %s107
    %p121 = scmp.eq.s32.totalorder %s15, 1
    %p122 = por %p120, %p121
    %p124 = scmp.ne.s32.totalorder %s107, %s123
    %p125 = scmp.eq.s32.totalorder %s15, 0
    %p126 = por %p124, %p125
    %p127 = scmp.le.s32.totalorder 1, %s9
    %p128 = scmp.lt.s32.totalorder %s9, 3
    %p129 = pnand %p127, %p128
    %p130 = pneg %p129
    // Predicated region
    $region9: #{_lambda_.8} parent=5 // pred_check
      _
    $region10: #{_lambda_.8} parent=5 // pred_check_branch
      %132 = sbr.rel (%p129) target = $region12
    $region11: #{_lambda_.8} parent=5 // pred_region
      %s133 = ssub.s32 %s9, 1
      // Predicated region
      $region13: #{_lambda_.8} parent=11 // pred_check
        %p134 = pneg %p70
      $region14: #{_lambda_.8} parent=11 // pred_check_branch
        %136 = sbr.rel (%p134) target = $region16
      $region15: #{_lambda_.8} parent=11 // pred_region
        _
      $region16: #{_lambda_.8} parent=11 // pred_fallthru
        _
      // Predicated region
      $region17: #{_lambda_.8} parent=11 // pred_check
        %p137 = pneg %p91
      $region18: #{_lambda_.8} parent=11 // pred_check_branch
        %139 = sbr.rel (%p137) target = $region20
      $region19: #{_lambda_.8} parent=11 // pred_region
        _
      $region20: #{_lambda_.8} parent=11 // pred_fallthru
        _
    $region12: #{_lambda_.8} parent=5 // pred_fallthru
      _
    %p140 = scmp.lt.s32.totalorder %s9, 2
    // Predicated region
    $region21: #{_lambda_.8} parent=5 // pred_check
      %p141 = pneg %p140
    $region22: #{_lambda_.8} parent=5 // pred_check_branch
      %143 = sbr.rel (%p141) target = $region24
    $region23: #{_lambda_.8} parent=5 // pred_region
      // Predicated region
      $region25: #{_lambda_.8} parent=23 // pred_check
        %p144 = pneg %p43
      $region26: #{_lambda_.8} parent=23 // pred_check_branch
        %146 = sbr.rel (%p144) target = $region28
      $region27: #{_lambda_.8} parent=23 // pred_region
        %s147 = smul.u32 2, %s17
        %p148 = scmp.lt.s32.totalorder %s16, 1
        %s149 = scalar_select %p148, %s16, 1
        %p150 = scmp.lt.s32.totalorder %s147, 1
        %s151 = scalar_select %p150, %s147, 1
        %s152 = smul.addr %s149, 4
        %s153 = sadd.s32 %s151, %s152
        %s154 = smul.addr %s153, 8
        %s155 = scalar_lea.vmem %s0, %s154
        %s156 = smul.u32 2, %s17
      $region28: #{_lambda_.8} parent=23 // pred_fallthru
        _
    $region24: #{_lambda_.8} parent=5 // pred_fallthru
      _
    %p157 = scmp.le.s32.totalorder 1, %s9
    %p158 = scmp.lt.s32.totalorder %s9, 3
    %p159 = pnand %p157, %p158
    %p160 = pneg %p159
    // Predicated region
    $region29: #{_lambda_.8} parent=5 // pred_check
      _
    $region30: #{_lambda_.8} parent=5 // pred_check_branch
      %162 = sbr.rel (%p159) target = $region32
    $region31: #{_lambda_.8} parent=5 // pred_region
      %s163 = ssub.s32 %s9, 1
      %s164 = smul.u32 2, %s19
      %p165 = scmp.lt.s32.totalorder %s18, 1
      %s166 = scalar_select %p165, %s18, 1
      %p167 = scmp.lt.s32.totalorder %s164, 1
      %s168 = scalar_select %p167, %s164, 1
      %s169 = smul.addr %s166, 4
      %s170 = sadd.s32 %s168, %s169
      %s171 = smul.addr %s170, 8
      %s172 = scalar_lea.vmem %s0, %s171
      %p173 = pneg %p49
      %p174 = pneg %p46
      %p175 = pneg %p70
      %p176 = pneg %p67
      %p177 = pneg %p91
      %p178 = pneg %p88
      %p179 = pneg %p119
      %p180 = pneg %p116
      %s181 = smul.u32 2, %s19
      %p182 = scmp.lt.s32.totalorder %s18, 1
      %s183 = scalar_select %p182, %s18, 1
      %p184 = scmp.lt.s32.totalorder %s181, 1
      %s185 = scalar_select %p184, %s181, 1
      %s186 = smul.addr %s183, 4
      %s187 = sadd.s32 %s185, %s186
      %s188 = smul.addr %s187, 8
      %s189 = scalar_lea.vmem %s3, %s188
      %s190 = smul.u32 2, %s19
      %p191 = scmp.lt.s32.totalorder %s18, 1
      %s192 = scalar_select %p191, %s18, 1
      %p193 = scmp.lt.s32.totalorder %s190, 1
      %s194 = scalar_select %p193, %s190, 1
      %s195 = smul.addr %s192, 4
      %s196 = sadd.s32 %s194, %s195
      %s197 = smul.addr %s196, 8
      %s198 = scalar_lea.vmem %s0, %s197
      %s199 = smul.u32 2, %s19
      %s200 = smul.u32 2, %s19
      %p201 = scmp.lt.s32.totalorder %s18, 1
      %s202 = scalar_select %p201, %s18, 1
      %p203 = scmp.lt.s32.totalorder %s200, 1
      %s204 = scalar_select %p203, %s200, 1
      %s205 = smul.addr %s202, 4
      %s206 = sadd.s32 %s204, %s205
      %s207 = smul.addr %s206, 8
      %s208 = scalar_lea.vmem %s3, %s207
      %s209 = smul.u32 2, %s19
      %v210 = vld [vmem:[%s198] sm:$0xff]
      %v211 = vld [vmem:[%s198 + $0x8] sm:$0xff]
      %v212 = vld [vmem:[%s198 + $0x10] sm:$0xff]
      %v213 = vld [vmem:[%s198 + $0x18] sm:$0xff]
      %v214 = vld [vmem:[%s1] sm:$0xff]
      %v215 = vld [vmem:[%s1 + $0x8] sm:$0xff]
      %217 = vset.pattern.permute.xlu0 0
      %218 = vperm.xlu0 %217, %v214
      %v219 = vpop.permute.xlu0 %218
      %222 = vset.pattern.permute.xlu0 0
      %223 = vperm.xlu0 %222, %v215
      %v224 = vpop.permute.xlu0 %223
      %v226 = vmul.f32 %v210, %v219
      %v227 = vmul.f32 %v211, %v219
      %v228 = vmul.f32 %v212, %v224
      %v229 = vmul.f32 %v213, %v224
      %v230 = vld [vmem:[%s2] sm:$0xff]
      %v231 = vld [vmem:[%s2 + $0x8] sm:$0xff]
      %233 = vset.pattern.permute.xlu0 0
      %234 = vperm.xlu0 %233, %v230
      %v235 = vpop.permute.xlu0 %234
      %238 = vset.pattern.permute.xlu0 0
      %239 = vperm.xlu0 %238, %v231
      %v240 = vpop.permute.xlu0 %239
      %v242 = vadd.f32 %v226, %v235
      %v243 = vadd.f32 %v227, %v235
      %v244 = vadd.f32 %v228, %v240
      %v245 = vadd.f32 %v229, %v240
      %v246 = vmax.f32 %v242, 0.0
      %v247 = vmax.f32 %v243, 0.0
      %v248 = vmax.f32 %v244, 0.0
      %v249 = vmax.f32 %v245, 0.0
      %250 = vst [vmem:[%s208] sm:$0xff] %v246
      %251 = vst [vmem:[%s208 + $0x8] sm:$0xff] %v247
      %252 = vst [vmem:[%s208 + $0x10] sm:$0xff] %v248
      %253 = vst [vmem:[%s208 + $0x18] sm:$0xff] %v249
      %s254 = smul.u32 2, %s19
      %p255 = scmp.lt.s32.totalorder %s18, 1
      %s256 = scalar_select %p255, %s18, 1
      %p257 = scmp.lt.s32.totalorder %s254, 1
      %s258 = scalar_select %p257, %s254, 1
      %s259 = smul.addr %s256, 4
      %s260 = sadd.s32 %s258, %s259
      %s261 = smul.addr %s260, 8
      %s262 = scalar_lea.vmem %s3, %s261
      // Predicated region
      $region33: #{_lambda_.8} parent=31 // pred_check
        %p263 = pneg %p116
      $region34: #{_lambda_.8} parent=31 // pred_check_branch
        %265 = sbr.rel (%p263) target = $region36
      $region35: #{_lambda_.8} parent=31 // pred_region
        %s266 = smul.u32 2, %s19
      $region36: #{_lambda_.8} parent=31 // pred_fallthru
        _
    $region32: #{_lambda_.8} parent=5 // pred_fallthru
      _
    %p267 = scmp.le.s32.totalorder 2, %s9
    // Predicated region
    $region37: #{_lambda_.8} parent=5 // pred_check
      %p268 = pneg %p267
    $region38: #{_lambda_.8} parent=5 // pred_check_branch
      %270 = sbr.rel (%p268) target = $region40
    $region39: #{_lambda_.8} parent=5 // pred_region
      %s271 = ssub.s32 %s9, 2
      // Predicated region
      $region41: #{_lambda_.8} parent=39 // pred_check
        %p272 = pneg %p122
      $region42: #{_lambda_.8} parent=39 // pred_check_branch
        %274 = sbr.rel (%p272) target = $region44
      $region43: #{_lambda_.8} parent=39 // pred_region
        %s275 = smul.u32 2, %s21
        %p276 = scmp.lt.s32.totalorder %s20, 1
        %s277 = scalar_select %p276, %s20, 1
        %p278 = scmp.lt.s32.totalorder %s275, 1
        %s279 = scalar_select %p278, %s275, 1
        %s280 = smul.addr %s277, 4
        %s281 = sadd.s32 %s279, %s280
        %s282 = smul.addr %s281, 8
        %s283 = scalar_lea.vmem %s3, %s282
      $region44: #{_lambda_.8} parent=39 // pred_fallthru
        _
    $region40: #{_lambda_.8} parent=5 // pred_fallthru
      _
  $region6: #{_lambda_.8} parent=0 // loop_footer
    %s13 = sadd.s32 1, %s9
  $region7: #{_lambda_.8} parent=0 // loop_footer_branch
    %8 = sbr.rel target = $region3
  $region8: #{_lambda_.8} parent=0 // loop_exit
    _

// kernel: _lambda_.11
$region0: #{_lambda_.11}
  #allocation0 [shape = 'u32[]', space=smem, size = 0x4, offset = 0x4, fixed_abs, tag = 'smem constant byte address 0x4 - core index']
  #allocation1 [shape = 'u32[72,128]{1,0:T(1,128)}', space=vmem, size = 0x9000, scoped, tag = 'internal scratch']
  %s0 = inlined_call_operand.vmem [shape: f32[2,32,40], index: 0, kind: input, shape index: {}]
  %s1 = inlined_call_operand.vmem [shape: bf16[32,32], index: 1, kind: input, shape index: {}]
  %s2 = inlined_call_operand.vmem [shape: f32[2,32,40], index: 2, kind: output, shape index: {0}]
  %s3 = inlined_call_operand.vmem [shape: f32[2,32,128], index: 3, kind: output, shape index: {1}]
  %s4 = inlined_call_operand.vmem [shape: f32[2,32,128], index: 4, kind: output, shape index: {2}]
  %5 = xla_tuple %s2, %s3, %s4
  %s6 = sld [smem:[#allocation0]]
  $region57: #{_lambda_.11} parent=0
    _
  %s8 = ssub.s32 1, %s6
  %s9 = scalar_select 0, %s8, %s6
  loop: start=0, step=1, limit=4
  $region2: #{_lambda_.11} parent=0 // loop_pre_header
    _
  $region3: #{_lambda_.11} parent=0 // loop_header
    %s11 = sphi 0, %s15
    %p12 = scmp.ge.s32.totalorder %s11, 4
    %s18 = sphi 0, %s30
    %s19 = sphi 0, %s26
    %s20 = sphi 0, %s18
    %s21 = sphi 0, %s19
    %s22 = sphi 0, %s20
    %s23 = sphi 0, %s21
    %s35 = sphi 0, %s37
    %s38 = sphi 0, %s35
    %s39 = sphi 0, %s38
    %s55 = sphi 0, %s39
    %s59 = sphi 0, %s59
    %s61 = sphi 0, %s59
    %s62 = sphi 0, %s61
    %s76 = sphi 0, %s62
    %s84 = sphi 0, %s86
    %s87 = sphi 0, %s84
    %s88 = sphi 0, %s87
    %s104 = sphi 0, %s88
    %s112 = sphi 0, %s114
    %s115 = sphi 0, %s112
    %s116 = sphi 0, %s115
    %s132 = sphi 0, %s116
    %s140 = sphi 0, %s142
    %s143 = sphi 0, %s140
    %s144 = sphi 0, %s143
    %s160 = sphi 0, %s144
  $region4: #{_lambda_.11} parent=0 // loop_header_branch
    %14 = sbr.rel (%p12) target = $region8
  $region5: #{_lambda_.11} parent=0 // loop_body
    %s16 = ssub.s32 %s11, 1
    %s17 = ssub.s32 %s11, 2
    %s24 = sadd.s32 1, %s19
    %p25 = scmp.ge.s32.totalorder %s24, 1
    %s26 = scalar_select %p25, 0, %s24
    %s27 = sadd.s32 1, %s18
    %s28 = scalar_select %p25, %s27, %s18
    %p29 = scmp.ge.s32.totalorder %s28, 2
    %s30 = scalar_select %p29, 0, %s28
    %s31 = ssub.s32 %s18, %s30
    %s32 = ssub.s32 %s19, %s26
    %s33 = sor.u32 %s31, %s32
    %p34 = scmp.eq.s32.totalorder %s33, 0
    %s36 = sadd.s32 %s35, 1
    %s37 = scalar_select %p34, %s35, %s36
    %p40 = pneg %p34
    %p41 = scmp.eq.s32.totalorder %s11, 1
    %p42 = por %p40, %p41
    %p43 = scmp.ne.s32.totalorder %s35, %s38
    %p44 = scmp.eq.s32.totalorder %s11, 0
    %p45 = por %p43, %p44
    %p46 = scmp.ne.s32.totalorder %s35, %s38
    %p47 = scmp.eq.s32.totalorder %s16, 1
    %p48 = por %p46, %p47
    %p49 = scmp.ne.s32.totalorder %s38, %s39
    %p50 = scmp.eq.s32.totalorder %s16, 0
    %p51 = por %p49, %p50
    %p52 = scmp.ne.s32.totalorder %s38, %s39
    %p53 = scmp.eq.s32.totalorder %s17, 1
    %p54 = por %p52, %p53
    %p56 = scmp.ne.s32.totalorder %s39, %s55
    %p57 = scmp.eq.s32.totalorder %s17, 0
    %p58 = por %p56, %p57
    %s60 = sadd.s32 %s59, 1
    %p63 = scmp.eq.s32.totalorder %s11, 1
    %p64 = scmp.ne.s32.totalorder %s59, %s61
    %p65 = scmp.eq.s32.totalorder %s11, 0
    %p66 = por %p64, %p65
    %p67 = scmp.ne.s32.totalorder %s59, %s61
    %p68 = scmp.eq.s32.totalorder %s16, 1
    %p69 = por %p67, %p68
    %p70 = scmp.ne.s32.totalorder %s61, %s62
    %p71 = scmp.eq.s32.totalorder %s16, 0
    %p72 = por %p70, %p71
    %p73 = scmp.ne.s32.totalorder %s61, %s62
    %p74 = scmp.eq.s32.totalorder %s17, 1
    %p75 = por %p73, %p74
    %p77 = scmp.ne.s32.totalorder %s62, %s76
    %p78 = scmp.eq.s32.totalorder %s17, 0
    %p79 = por %p77, %p78
    %s80 = ssub.s32 %s18, %s30
    %s81 = ssub.s32 %s19, %s26
    %s82 = sor.u32 %s80, %s81
    %p83 = scmp.eq.s32.totalorder %s82, 0
    %s85 = sadd.s32 %s84, 1
    %s86 = scalar_select %p83, %s84, %s85
    %p89 = pneg %p83
    %p90 = scmp.eq.s32.totalorder %s11, 1
    %p91 = por %p89, %p90
    %p92 = scmp.ne.s32.totalorder %s84, %s87
    %p93 = scmp.eq.s32.totalorder %s11, 0
    %p94 = por %p92, %p93
    %p95 = scmp.ne.s32.totalorder %s84, %s87
    %p96 = scmp.eq.s32.totalorder %s16, 1
    %p97 = por %p95, %p96
    %p98 = scmp.ne.s32.totalorder %s87, %s88
    %p99 = scmp.eq.s32.totalorder %s16, 0
    %p100 = por %p98, %p99
    %p101 = scmp.ne.s32.totalorder %s87, %s88
    %p102 = scmp.eq.s32.totalorder %s17, 1
    %p103 = por %p101, %p102
    %p105 = scmp.ne.s32.totalorder %s88, %s104
    %p106 = scmp.eq.s32.totalorder %s17, 0
    %p107 = por %p105, %p106
    %s108 = ssub.s32 %s18, %s30
    %s109 = ssub.s32 %s19, %s26
    %s110 = sor.u32 %s108, %s109
    %p111 = scmp.eq.s32.totalorder %s110, 0
    %s113 = sadd.s32 %s112, 1
    %s114 = scalar_select %p111, %s112, %s113
    %p117 = pneg %p111
    %p118 = scmp.eq.s32.totalorder %s11, 1
    %p119 = por %p117, %p118
    %p120 = scmp.ne.s32.totalorder %s112, %s115
    %p121 = scmp.eq.s32.totalorder %s11, 0
    %p122 = por %p120, %p121
    %p123 = scmp.ne.s32.totalorder %s112, %s115
    %p124 = scmp.eq.s32.totalorder %s16, 1
    %p125 = por %p123, %p124
    %p126 = scmp.ne.s32.totalorder %s115, %s116
    %p127 = scmp.eq.s32.totalorder %s16, 0
    %p128 = por %p126, %p127
    %p129 = scmp.ne.s32.totalorder %s115, %s116
    %p130 = scmp.eq.s32.totalorder %s17, 1
    %p131 = por %p129, %p130
    %p133 = scmp.ne.s32.totalorder %s116, %s132
    %p134 = scmp.eq.s32.totalorder %s17, 0
    %p135 = por %p133, %p134
    %s136 = ssub.s32 %s18, %s30
    %s137 = ssub.s32 %s19, %s26
    %s138 = sor.u32 %s136, %s137
    %p139 = scmp.eq.s32.totalorder %s138, 0
    %s141 = sadd.s32 %s140, 1
    %s142 = scalar_select %p139, %s140, %s141
    %p145 = pneg %p139
    %p146 = scmp.eq.s32.totalorder %s11, 1
    %p147 = por %p145, %p146
    %p148 = scmp.ne.s32.totalorder %s140, %s143
    %p149 = scmp.eq.s32.totalorder %s11, 0
    %p150 = por %p148, %p149
    %p151 = scmp.ne.s32.totalorder %s140, %s143
    %p152 = scmp.eq.s32.totalorder %s16, 1
    %p153 = por %p151, %p152
    %p154 = scmp.ne.s32.totalorder %s143, %s144
    %p155 = scmp.eq.s32.totalorder %s16, 0
    %p156 = por %p154, %p155
    %p157 = scmp.ne.s32.totalorder %s143, %s144
    %p158 = scmp.eq.s32.totalorder %s17, 1
    %p159 = por %p157, %p158
    %p161 = scmp.ne.s32.totalorder %s144, %s160
    %p162 = scmp.eq.s32.totalorder %s17, 0
    %p163 = por %p161, %p162
    %p164 = scmp.le.s32.totalorder 1, %s11
    %p165 = scmp.lt.s32.totalorder %s11, 3
    %p166 = pnand %p164, %p165
    %p167 = pneg %p166
    // Predicated region
    $region9: #{_lambda_.11} parent=5 // pred_check
      _
    $region10: #{_lambda_.11} parent=5 // pred_check_branch
      %169 = sbr.rel (%p166) target = $region12
    $region11: #{_lambda_.11} parent=5 // pred_region
      %s170 = ssub.s32 %s11, 1
      // Predicated region
      $region13: #{_lambda_.11} parent=11 // pred_check
        %p171 = pneg %p72
      $region14: #{_lambda_.11} parent=11 // pred_check_branch
        %173 = sbr.rel (%p171) target = $region16
      $region15: #{_lambda_.11} parent=11 // pred_region
        _
      $region16: #{_lambda_.11} parent=11 // pred_fallthru
        _
    $region12: #{_lambda_.11} parent=5 // pred_fallthru
      _
    %p174 = scmp.lt.s32.totalorder %s11, 2
    // Predicated region
    $region17: #{_lambda_.11} parent=5 // pred_check
      %p175 = pneg %p174
    $region18: #{_lambda_.11} parent=5 // pred_check_branch
      %177 = sbr.rel (%p175) target = $region20
    $region19: #{_lambda_.11} parent=5 // pred_region
      // Predicated region
      $region21: #{_lambda_.11} parent=19 // pred_check
        %p178 = pneg %p45
      $region22: #{_lambda_.11} parent=19 // pred_check_branch
        %180 = sbr.rel (%p178) target = $region24
      $region23: #{_lambda_.11} parent=19 // pred_region
        %p181 = scmp.lt.s32.totalorder %s18, 1
        %s182 = scalar_select %p181, %s18, 1
        %p183 = scmp.lt.s32.totalorder %s19, 0
        %s184 = scalar_select %p183, %s19, 0
        %s185 = smul.addr %s182, 4
        %s186 = sadd.s32 %s184, %s185
        %s187 = smul.addr %s186, 8
        %s188 = scalar_lea.vmem %s0, %s187
      $region24: #{_lambda_.11} parent=19 // pred_fallthru
        _
    $region20: #{_lambda_.11} parent=5 // pred_fallthru
      _
    %p189 = scmp.le.s32.totalorder 1, %s11
    %p190 = scmp.lt.s32.totalorder %s11, 3
    %p191 = pnand %p189, %p190
    %p192 = pneg %p191
    // Predicated region
    $region25: #{_lambda_.11} parent=5 // pred_check
      _
    $region26: #{_lambda_.11} parent=5 // pred_check_branch
      %194 = sbr.rel (%p191) target = $region28
    $region27: #{_lambda_.11} parent=5 // pred_region
      %s195 = ssub.s32 %s11, 1
      %p196 = scmp.lt.s32.totalorder %s20, 1
      %s197 = scalar_select %p196, %s20, 1
      %p198 = scmp.lt.s32.totalorder %s21, 0
      %s199 = scalar_select %p198, %s21, 0
      %s200 = smul.addr %s197, 4
      %s201 = sadd.s32 %s199, %s200
      %s202 = smul.addr %s201, 8
      %s203 = scalar_lea.vmem %s0, %s202
      %p204 = pneg %p51
      %p205 = pneg %p48
      %p206 = pneg %p72
      %p207 = pneg %p69
      %p208 = pneg %p100
      %p209 = pneg %p97
      %p210 = scmp.lt.s32.totalorder %s20, 1
      %s211 = scalar_select %p210, %s20, 1
      %p212 = scmp.lt.s32.totalorder %s21, 0
      %s213 = scalar_select %p212, %s21, 0
      %s214 = smul.addr %s211, 4
      %s215 = sadd.s32 %s213, %s214
      %s216 = smul.addr %s215, 8
      %s217 = scalar_lea.vmem %s2, %s216
      %p218 = pneg %p128
      %p219 = pneg %p125
      %p220 = scmp.lt.s32.totalorder %s20, 1
      %s221 = scalar_select %p220, %s20, 1
      %p222 = scmp.lt.s32.totalorder %s21, 0
      %s223 = scalar_select %p222, %s21, 0
      %s224 = smul.addr %s221, 4
      %s225 = sadd.s32 %s223, %s224
      %s226 = smul.addr %s225, 8
      %s227 = scalar_lea.vmem %s3, %s226
      %p228 = pneg %p156
      %p229 = pneg %p153
      %p230 = scmp.lt.s32.totalorder %s20, 1
      %s231 = scalar_select %p230, %s20, 1
      %p232 = scmp.lt.s32.totalorder %s21, 0
      %s233 = scalar_select %p232, %s21, 0
      %s234 = smul.addr %s231, 4
      %s235 = sadd.s32 %s233, %s234
      %s236 = smul.addr %s235, 8
      %s237 = scalar_lea.vmem %s4, %s236
      %p238 = scmp.lt.s32.totalorder %s20, 1
      %s239 = scalar_select %p238, %s20, 1
      %p240 = scmp.lt.s32.totalorder %s21, 0
      %s241 = scalar_select %p240, %s21, 0
      %s242 = smul.addr %s239, 4
      %s243 = sadd.s32 %s241, %s242
      %s244 = smul.addr %s243, 8
      %s245 = scalar_lea.vmem %s0, %s244
      %p246 = scmp.lt.s32.totalorder %s20, 1
      %s247 = scalar_select %p246, %s20, 1
      %p248 = scmp.lt.s32.totalorder %s21, 0
      %s249 = scalar_select %p248, %s21, 0
      %s250 = smul.addr %s247, 4
      %s251 = sadd.s32 %s249, %s250
      %s252 = smul.addr %s251, 8
      %s253 = scalar_lea.vmem %s2, %s252
      %p254 = scmp.lt.s32.totalorder %s20, 1
      %s255 = scalar_select %p254, %s20, 1
      %p256 = scmp.lt.s32.totalorder %s21, 0
      %s257 = scalar_select %p256, %s21, 0
      %s258 = smul.addr %s255, 4
      %s259 = sadd.s32 %s257, %s258
      %s260 = smul.addr %s259, 8
      %s261 = scalar_lea.vmem %s3, %s260
      %p262 = scmp.lt.s32.totalorder %s20, 1
      %s263 = scalar_select %p262, %s20, 1
      %p264 = scmp.lt.s32.totalorder %s21, 0
      %s265 = scalar_select %p264, %s21, 0
      %s266 = smul.addr %s263, 4
      %s267 = sadd.s32 %s265, %s266
      %s268 = smul.addr %s267, 8
      %s269 = scalar_lea.vmem %s4, %s268
      %v271 = vld [vmem:[%s245] sm:$0xff]
      %v272 = vld [vmem:[%s245 + $0x8] sm:$0xff]
      %v273 = vld [vmem:[%s245 + $0x10] sm:$0xff]
      %v274 = vld [vmem:[%s245 + $0x18] sm:$0xff]
      %v275 = vld [vmem:[%s1] sm:$0xf]
      %v276 = vld [vmem:[%s1 + $0x4] sm:$0xf]
      %v277 = vld [vmem:[%s1 + $0x8] sm:$0xf]
      %v278 = vld [vmem:[%s1 + $0xc] sm:$0xf]
      %v279 = vpack.c.bf16 %v272, %v271
      %v280 = vpack.c.bf16 %v274, %v273
      %v285 = vunpack.c.l.b16 %v275
      %v286 = vunpack.c.l.b16 %v276
      %v287 = vunpack.c.l.b16 %v277
      %v288 = vunpack.c.l.b16 %v278
      %v289 = vpack.c.b16 %v286, %v285
      %v290 = vpack.c.b16 %v288, %v287
      %vm291 = vcmask 261120
      %v293 = vsel %vm291, %v289, 0
      %v296 = vsel %vm291, %v290, 0
      %298 = vmatpush.bf16.msra.mxu0 0
      %299 = vmatpush.bf16.msra.mxu0 0
      %300 = vmatpush.bf16.msra.mxu0 0
      %301 = vmatpush.bf16.msra.mxu0 0
      %302 = vmatpush.bf16.msra.mxu0 0
      %303 = vmatpush.bf16.msra.mxu0 0
      %304 = vmatpush.bf16.msra.mxu0 %v280
      %305 = vmatpush.bf16.msra.mxu0 %v279
      %306 = vmatmul.bf16.gmra.mxu0 %v293
      %v307 = vpop.f32.mrf.mxu0
      %v308 = vadd.f32 0.0, %v307
      %v309 = vpop.f32.mrf.mxu0
      %v310 = vadd.f32 0.0, %v309
      %311 = vmatmul.bf16.gmra.mxu0 %v296
      %v312 = vpop.f32.mrf.mxu0
      %v313 = vadd.f32 0.0, %v312
      %v314 = vpop.f32.mrf.mxu0
      %v315 = vadd.f32 0.0, %v314
      %316 = vdwg.mxu0
      %vm317 = vcmask 326656
      %318 = vst.msk [vmem:[%s253] sm:$0xff] %vm317, %v308
      %319 = vst.msk [vmem:[%s253 + $0x8] sm:$0xff] %vm317, %v310
      %320 = vst.msk [vmem:[%s253 + $0x10] sm:$0xff] %vm317, %v313
      %321 = vst.msk [vmem:[%s253 + $0x18] sm:$0xff] %vm317, %v315
      %v322 = vsel %vm317, %v308, 0.0
      %323 = vadd.xlane.f32.xlu0 %v322
      %v324 = vpop.xlane.xlu0 %323
      %v325 = vsel %vm317, %v310, 0.0
      %326 = vadd.xlane.f32.xlu0 %v325
      %v327 = vpop.xlane.xlu0 %326
      %v328 = vsel %vm317, %v313, 0.0
      %329 = vadd.xlane.f32.xlu0 %v328
      %v330 = vpop.xlane.xlu0 %329
      %v331 = vsel %vm317, %v315, 0.0
      %332 = vadd.xlane.f32.xlu0 %v331
      %v333 = vpop.xlane.xlu0 %332
      %v334 = vmul.f32 %v308, %v308
      %v335 = vmul.f32 %v310, %v310
      %v336 = vmul.f32 %v313, %v313
      %v337 = vmul.f32 %v315, %v315
      %v338 = vsel %vm317, %v334, 0.0
      %339 = vadd.xlane.f32.xlu0 %v338
      %v340 = vpop.xlane.xlu0 %339
      %v341 = vsel %vm317, %v335, 0.0
      %342 = vadd.xlane.f32.xlu0 %v341
      %v343 = vpop.xlane.xlu0 %342
      %v344 = vsel %vm317, %v336, 0.0
      %345 = vadd.xlane.f32.xlu0 %v344
      %v346 = vpop.xlane.xlu0 %345
      %v347 = vsel %vm317, %v337, 0.0
      %348 = vadd.xlane.f32.xlu0 %v347
      %v349 = vpop.xlane.xlu0 %348
      %350 = vst [vmem:[%s261] sm:$0xff] %v324
      %351 = vst [vmem:[%s261 + $0x8] sm:$0xff] %v327
      %352 = vst [vmem:[%s261 + $0x10] sm:$0xff] %v330
      %353 = vst [vmem:[%s261 + $0x18] sm:$0xff] %v333
      %354 = vst [vmem:[%s269] sm:$0xff] %v340
      %355 = vst [vmem:[%s269 + $0x8] sm:$0xff] %v343
      %356 = vst [vmem:[%s269 + $0x10] sm:$0xff] %v346
      %357 = vst [vmem:[%s269 + $0x18] sm:$0xff] %v349
      %p358 = scmp.lt.s32.totalorder %s20, 1
      %s359 = scalar_select %p358, %s20, 1
      %p360 = scmp.lt.s32.totalorder %s21, 0
      %s361 = scalar_select %p360, %s21, 0
      %s362 = smul.addr %s359, 4
      %s363 = sadd.s32 %s361, %s362
      %s364 = smul.addr %s363, 8
      %s365 = scalar_lea.vmem %s2, %s364
      %p366 = scmp.lt.s32.totalorder %s20, 1
      %s367 = scalar_select %p366, %s20, 1
      %p368 = scmp.lt.s32.totalorder %s21, 0
      %s369 = scalar_select %p368, %s21, 0
      %s370 = smul.addr %s367, 4
      %s371 = sadd.s32 %s369, %s370
      %s372 = smul.addr %s371, 8
      %s373 = scalar_lea.vmem %s3, %s372
      %p374 = scmp.lt.s32.totalorder %s20, 1
      %s375 = scalar_select %p374, %s20, 1
      %p376 = scmp.lt.s32.totalorder %s21, 0
      %s377 = scalar_select %p376, %s21, 0
      %s378 = smul.addr %s375, 4
      %s379 = sadd.s32 %s377, %s378
      %s380 = smul.addr %s379, 8
      %s381 = scalar_lea.vmem %s4, %s380
      // Predicated region
      $region29: #{_lambda_.11} parent=27 // pred_check
        %p382 = pneg %p97
      $region30: #{_lambda_.11} parent=27 // pred_check_branch
        %384 = sbr.rel (%p382) target = $region32
      $region31: #{_lambda_.11} parent=27 // pred_region
        _
      $region32: #{_lambda_.11} parent=27 // pred_fallthru
        _
      // Predicated region
      $region33: #{_lambda_.11} parent=27 // pred_check
        %p385 = pneg %p125
      $region34: #{_lambda_.11} parent=27 // pred_check_branch
        %387 = sbr.rel (%p385) target = $region36
      $region35: #{_lambda_.11} parent=27 // pred_region
        _
      $region36: #{_lambda_.11} parent=27 // pred_fallthru
        _
      // Predicated region
      $region37: #{_lambda_.11} parent=27 // pred_check
        %p388 = pneg %p153
      $region38: #{_lambda_.11} parent=27 // pred_check_branch
        %390 = sbr.rel (%p388) target = $region40
      $region39: #{_lambda_.11} parent=27 // pred_region
        _
      $region40: #{_lambda_.11} parent=27 // pred_fallthru
        _
    $region28: #{_lambda_.11} parent=5 // pred_fallthru
      _
    %p391 = scmp.le.s32.totalorder 2, %s11
    // Predicated region
    $region41: #{_lambda_.11} parent=5 // pred_check
      %p392 = pneg %p391
    $region42: #{_lambda_.11} parent=5 // pred_check_branch
      %394 = sbr.rel (%p392) target = $region44
    $region43: #{_lambda_.11} parent=5 // pred_region
      %s395 = ssub.s32 %s11, 2
      // Predicated region
      $region45: #{_lambda_.11} parent=43 // pred_check
        %p396 = pneg %p103
      $region46: #{_lambda_.11} parent=43 // pred_check_branch
        %398 = sbr.rel (%p396) target = $region48
      $region47: #{_lambda_.11} parent=43 // pred_region
        %p399 = scmp.lt.s32.totalorder %s22, 1
        %s400 = scalar_select %p399, %s22, 1
        %p401 = scmp.lt.s32.totalorder %s23, 0
        %s402 = scalar_select %p401, %s23, 0
        %s403 = smul.addr %s400, 4
        %s404 = sadd.s32 %s402, %s403
        %s405 = smul.addr %s404, 8
        %s406 = scalar_lea.vmem %s2, %s405
      $region48: #{_lambda_.11} parent=43 // pred_fallthru
        _
      // Predicated region
      $region49: #{_lambda_.11} parent=43 // pred_check
        %p407 = pneg %p131
      $region50: #{_lambda_.11} parent=43 // pred_check_branch
        %409 = sbr.rel (%p407) target = $region52
      $region51: #{_lambda_.11} parent=43 // pred_region
        %p410 = scmp.lt.s32.totalorder %s22, 1
        %s411 = scalar_select %p410, %s22, 1
        %p412 = scmp.lt.s32.totalorder %s23, 0
        %s413 = scalar_select %p412, %s23, 0
        %s414 = smul.addr %s411, 4
        %s415 = sadd.s32 %s413, %s414
        %s416 = smul.addr %s415, 8
        %s417 = scalar_lea.vmem %s3, %s416
      $region52: #{_lambda_.11} parent=43 // pred_fallthru
        _
      // Predicated region
      $region53: #{_lambda_.11} parent=43 // pred_check
        %p418 = pneg %p159
      $region54: #{_lambda_.11} parent=43 // pred_check_branch
        %420 = sbr.rel (%p418) target = $region56
      $region55: #{_lambda_.11} parent=43 // pred_region
        %p421 = scmp.lt.s32.totalorder %s22, 1
        %s422 = scalar_select %p421, %s22, 1
        %p423 = scmp.lt.s32.totalorder %s23, 0
        %s424 = scalar_select %p423, %s23, 0
        %s425 = smul.addr %s422, 4
        %s426 = sadd.s32 %s424, %s425
        %s427 = smul.addr %s426, 8
        %s428 = scalar_lea.vmem %s4, %s427
      $region56: #{_lambda_.11} parent=43 // pred_fallthru
        _
    $region44: #{_lambda_.11} parent=5 // pred_fallthru
      _
  $region6: #{_lambda_.11} parent=0 // loop_footer
    %s15 = sadd.s32 1, %s11
  $region7: #{_lambda_.11} parent=0 // loop_footer_branch
    %10 = sbr.rel target = $region3
  $region8: #{_lambda_.11} parent=0 // loop_exit
    _

// kernel: _lambda_.12
$region0: #{_lambda_.12}
  #allocation0 [shape = 'u32[]', space=smem, size = 0x4, offset = 0x4, fixed_abs, tag = 'smem constant byte address 0x4 - core index']
  #allocation1 [shape = 'u32[72,128]{1,0:T(1,128)}', space=vmem, size = 0x9000, scoped, tag = 'internal scratch']
  %s0 = inlined_call_operand.vmem [shape: f32[2,32,40], index: 0, kind: input, shape index: {}]
  %s1 = inlined_call_operand.vmem [shape: f32[32,1], index: 1, kind: input, shape index: {}]
  %s2 = inlined_call_operand.vmem [shape: f32[32,1], index: 2, kind: input, shape index: {}]
  %s3 = inlined_call_operand.vmem [shape: f32[2,32,40], index: 3, kind: output, shape index: {}]
  %s4 = sld [smem:[#allocation0]]
  $region45: #{_lambda_.12} parent=0
    _
  %s6 = ssub.s32 1, %s4
  %s7 = scalar_select 0, %s6, %s4
  loop: start=0, step=1, limit=4
  $region2: #{_lambda_.12} parent=0 // loop_pre_header
    _
  $region3: #{_lambda_.12} parent=0 // loop_header
    %s9 = sphi 0, %s13
    %p10 = scmp.ge.s32.totalorder %s9, 4
    %s16 = sphi 0, %s28
    %s17 = sphi 0, %s24
    %s18 = sphi 0, %s16
    %s19 = sphi 0, %s17
    %s20 = sphi 0, %s18
    %s21 = sphi 0, %s19
    %s33 = sphi 0, %s35
    %s36 = sphi 0, %s33
    %s37 = sphi 0, %s36
    %s53 = sphi 0, %s37
    %s57 = sphi 0, %s57
    %s59 = sphi 0, %s57
    %s60 = sphi 0, %s59
    %s74 = sphi 0, %s60
    %s78 = sphi 0, %s78
    %s80 = sphi 0, %s78
    %s81 = sphi 0, %s80
    %s95 = sphi 0, %s81
    %s103 = sphi 0, %s105
    %s106 = sphi 0, %s103
    %s107 = sphi 0, %s106
    %s123 = sphi 0, %s107
  $region4: #{_lambda_.12} parent=0 // loop_header_branch
    %12 = sbr.rel (%p10) target = $region8
  $region5: #{_lambda_.12} parent=0 // loop_body
    %s14 = ssub.s32 %s9, 1
    %s15 = ssub.s32 %s9, 2
    %s22 = sadd.s32 1, %s17
    %p23 = scmp.ge.s32.totalorder %s22, 1
    %s24 = scalar_select %p23, 0, %s22
    %s25 = sadd.s32 1, %s16
    %s26 = scalar_select %p23, %s25, %s16
    %p27 = scmp.ge.s32.totalorder %s26, 2
    %s28 = scalar_select %p27, 0, %s26
    %s29 = ssub.s32 %s16, %s28
    %s30 = ssub.s32 %s17, %s24
    %s31 = sor.u32 %s29, %s30
    %p32 = scmp.eq.s32.totalorder %s31, 0
    %s34 = sadd.s32 %s33, 1
    %s35 = scalar_select %p32, %s33, %s34
    %p38 = pneg %p32
    %p39 = scmp.eq.s32.totalorder %s9, 1
    %p40 = por %p38, %p39
    %p41 = scmp.ne.s32.totalorder %s33, %s36
    %p42 = scmp.eq.s32.totalorder %s9, 0
    %p43 = por %p41, %p42
    %p44 = scmp.ne.s32.totalorder %s33, %s36
    %p45 = scmp.eq.s32.totalorder %s14, 1
    %p46 = por %p44, %p45
    %p47 = scmp.ne.s32.totalorder %s36, %s37
    %p48 = scmp.eq.s32.totalorder %s14, 0
    %p49 = por %p47, %p48
    %p50 = scmp.ne.s32.totalorder %s36, %s37
    %p51 = scmp.eq.s32.totalorder %s15, 1
    %p52 = por %p50, %p51
    %p54 = scmp.ne.s32.totalorder %s37, %s53
    %p55 = scmp.eq.s32.totalorder %s15, 0
    %p56 = por %p54, %p55
    %s58 = sadd.s32 %s57, 1
    %p61 = scmp.eq.s32.totalorder %s9, 1
    %p62 = scmp.ne.s32.totalorder %s57, %s59
    %p63 = scmp.eq.s32.totalorder %s9, 0
    %p64 = por %p62, %p63
    %p65 = scmp.ne.s32.totalorder %s57, %s59
    %p66 = scmp.eq.s32.totalorder %s14, 1
    %p67 = por %p65, %p66
    %p68 = scmp.ne.s32.totalorder %s59, %s60
    %p69 = scmp.eq.s32.totalorder %s14, 0
    %p70 = por %p68, %p69
    %p71 = scmp.ne.s32.totalorder %s59, %s60
    %p72 = scmp.eq.s32.totalorder %s15, 1
    %p73 = por %p71, %p72
    %p75 = scmp.ne.s32.totalorder %s60, %s74
    %p76 = scmp.eq.s32.totalorder %s15, 0
    %p77 = por %p75, %p76
    %s79 = sadd.s32 %s78, 1
    %p82 = scmp.eq.s32.totalorder %s9, 1
    %p83 = scmp.ne.s32.totalorder %s78, %s80
    %p84 = scmp.eq.s32.totalorder %s9, 0
    %p85 = por %p83, %p84
    %p86 = scmp.ne.s32.totalorder %s78, %s80
    %p87 = scmp.eq.s32.totalorder %s14, 1
    %p88 = por %p86, %p87
    %p89 = scmp.ne.s32.totalorder %s80, %s81
    %p90 = scmp.eq.s32.totalorder %s14, 0
    %p91 = por %p89, %p90
    %p92 = scmp.ne.s32.totalorder %s80, %s81
    %p93 = scmp.eq.s32.totalorder %s15, 1
    %p94 = por %p92, %p93
    %p96 = scmp.ne.s32.totalorder %s81, %s95
    %p97 = scmp.eq.s32.totalorder %s15, 0
    %p98 = por %p96, %p97
    %s99 = ssub.s32 %s16, %s28
    %s100 = ssub.s32 %s17, %s24
    %s101 = sor.u32 %s99, %s100
    %p102 = scmp.eq.s32.totalorder %s101, 0
    %s104 = sadd.s32 %s103, 1
    %s105 = scalar_select %p102, %s103, %s104
    %p108 = pneg %p102
    %p109 = scmp.eq.s32.totalorder %s9, 1
    %p110 = por %p108, %p109
    %p111 = scmp.ne.s32.totalorder %s103, %s106
    %p112 = scmp.eq.s32.totalorder %s9, 0
    %p113 = por %p111, %p112
    %p114 = scmp.ne.s32.totalorder %s103, %s106
    %p115 = scmp.eq.s32.totalorder %s14, 1
    %p116 = por %p114, %p115
    %p117 = scmp.ne.s32.totalorder %s106, %s107
    %p118 = scmp.eq.s32.totalorder %s14, 0
    %p119 = por %p117, %p118
    %p120 = scmp.ne.s32.totalorder %s106, %s107
    %p121 = scmp.eq.s32.totalorder %s15, 1
    %p122 = por %p120, %p121
    %p124 = scmp.ne.s32.totalorder %s107, %s123
    %p125 = scmp.eq.s32.totalorder %s15, 0
    %p126 = por %p124, %p125
    %p127 = scmp.le.s32.totalorder 1, %s9
    %p128 = scmp.lt.s32.totalorder %s9, 3
    %p129 = pnand %p127, %p128
    %p130 = pneg %p129
    // Predicated region
    $region9: #{_lambda_.12} parent=5 // pred_check
      _
    $region10: #{_lambda_.12} parent=5 // pred_check_branch
      %132 = sbr.rel (%p129) target = $region12
    $region11: #{_lambda_.12} parent=5 // pred_region
      %s133 = ssub.s32 %s9, 1
      // Predicated region
      $region13: #{_lambda_.12} parent=11 // pred_check
        %p134 = pneg %p70
      $region14: #{_lambda_.12} parent=11 // pred_check_branch
        %136 = sbr.rel (%p134) target = $region16
      $region15: #{_lambda_.12} parent=11 // pred_region
        _
      $region16: #{_lambda_.12} parent=11 // pred_fallthru
        _
      // Predicated region
      $region17: #{_lambda_.12} parent=11 // pred_check
        %p137 = pneg %p91
      $region18: #{_lambda_.12} parent=11 // pred_check_branch
        %139 = sbr.rel (%p137) target = $region20
      $region19: #{_lambda_.12} parent=11 // pred_region
        _
      $region20: #{_lambda_.12} parent=11 // pred_fallthru
        _
    $region12: #{_lambda_.12} parent=5 // pred_fallthru
      _
    %p140 = scmp.lt.s32.totalorder %s9, 2
    // Predicated region
    $region21: #{_lambda_.12} parent=5 // pred_check
      %p141 = pneg %p140
    $region22: #{_lambda_.12} parent=5 // pred_check_branch
      %143 = sbr.rel (%p141) target = $region24
    $region23: #{_lambda_.12} parent=5 // pred_region
      // Predicated region
      $region25: #{_lambda_.12} parent=23 // pred_check
        %p144 = pneg %p43
      $region26: #{_lambda_.12} parent=23 // pred_check_branch
        %146 = sbr.rel (%p144) target = $region28
      $region27: #{_lambda_.12} parent=23 // pred_region
        %p147 = scmp.lt.s32.totalorder %s16, 1
        %s148 = scalar_select %p147, %s16, 1
        %p149 = scmp.lt.s32.totalorder %s17, 0
        %s150 = scalar_select %p149, %s17, 0
        %s151 = smul.addr %s148, 4
        %s152 = sadd.s32 %s150, %s151
        %s153 = smul.addr %s152, 8
        %s154 = scalar_lea.vmem %s0, %s153
      $region28: #{_lambda_.12} parent=23 // pred_fallthru
        _
    $region24: #{_lambda_.12} parent=5 // pred_fallthru
      _
    %p155 = scmp.le.s32.totalorder 1, %s9
    %p156 = scmp.lt.s32.totalorder %s9, 3
    %p157 = pnand %p155, %p156
    %p158 = pneg %p157
    // Predicated region
    $region29: #{_lambda_.12} parent=5 // pred_check
      _
    $region30: #{_lambda_.12} parent=5 // pred_check_branch
      %160 = sbr.rel (%p157) target = $region32
    $region31: #{_lambda_.12} parent=5 // pred_region
      %s161 = ssub.s32 %s9, 1
      %p162 = scmp.lt.s32.totalorder %s18, 1
      %s163 = scalar_select %p162, %s18, 1
      %p164 = scmp.lt.s32.totalorder %s19, 0
      %s165 = scalar_select %p164, %s19, 0
      %s166 = smul.addr %s163, 4
      %s167 = sadd.s32 %s165, %s166
      %s168 = smul.addr %s167, 8
      %s169 = scalar_lea.vmem %s0, %s168
      %p170 = pneg %p49
      %p171 = pneg %p46
      %p172 = pneg %p70
      %p173 = pneg %p67
      %p174 = pneg %p91
      %p175 = pneg %p88
      %p176 = pneg %p119
      %p177 = pneg %p116
      %p178 = scmp.lt.s32.totalorder %s18, 1
      %s179 = scalar_select %p178, %s18, 1
      %p180 = scmp.lt.s32.totalorder %s19, 0
      %s181 = scalar_select %p180, %s19, 0
      %s182 = smul.addr %s179, 4
      %s183 = sadd.s32 %s181, %s182
      %s184 = smul.addr %s183, 8
      %s185 = scalar_lea.vmem %s3, %s184
      %p186 = scmp.lt.s32.totalorder %s18, 1
      %s187 = scalar_select %p186, %s18, 1
      %p188 = scmp.lt.s32.totalorder %s19, 0
      %s189 = scalar_select %p188, %s19, 0
      %s190 = smul.addr %s187, 4
      %s191 = sadd.s32 %s189, %s190
      %s192 = smul.addr %s191, 8
      %s193 = scalar_lea.vmem %s0, %s192
      %p194 = scmp.lt.s32.totalorder %s18, 1
      %s195 = scalar_select %p194, %s18, 1
      %p196 = scmp.lt.s32.totalorder %s19, 0
      %s197 = scalar_select %p196, %s19, 0
      %s198 = smul.addr %s195, 4
      %s199 = sadd.s32 %s197, %s198
      %s200 = smul.addr %s199, 8
      %s201 = scalar_lea.vmem %s3, %s200
      %v202 = vld [vmem:[%s193] sm:$0xff]
      %v203 = vld [vmem:[%s193 + $0x8] sm:$0xff]
      %v204 = vld [vmem:[%s193 + $0x10] sm:$0xff]
      %v205 = vld [vmem:[%s193 + $0x18] sm:$0xff]
      %v206 = vld [vmem:[%s1] sm:$0xff]
      %v207 = vld [vmem:[%s1 + $0x8] sm:$0xff]
      %v208 = vld [vmem:[%s1 + $0x10] sm:$0xff]
      %v209 = vld [vmem:[%s1 + $0x18] sm:$0xff]
      %211 = vset.pattern.permute.xlu0 0
      %212 = vperm.xlu0 %211, %v206
      %v213 = vpop.permute.xlu0 %212
      %216 = vset.pattern.permute.xlu0 0
      %217 = vperm.xlu0 %216, %v207
      %v218 = vpop.permute.xlu0 %217
      %221 = vset.pattern.permute.xlu0 0
      %222 = vperm.xlu0 %221, %v208
      %v223 = vpop.permute.xlu0 %222
      %226 = vset.pattern.permute.xlu0 0
      %227 = vperm.xlu0 %226, %v209
      %v228 = vpop.permute.xlu0 %227
      %v230 = vmul.f32 %v202, %v213
      %v231 = vmul.f32 %v203, %v218
      %v232 = vmul.f32 %v204, %v223
      %v233 = vmul.f32 %v205, %v228
      %v234 = vld [vmem:[%s2] sm:$0xff]
      %v235 = vld [vmem:[%s2 + $0x8] sm:$0xff]
      %v236 = vld [vmem:[%s2 + $0x10] sm:$0xff]
      %v237 = vld [vmem:[%s2 + $0x18] sm:$0xff]
      %239 = vset.pattern.permute.xlu0 0
      %240 = vperm.xlu0 %239, %v234
      %v241 = vpop.permute.xlu0 %240
      %244 = vset.pattern.permute.xlu0 0
      %245 = vperm.xlu0 %244, %v235
      %v246 = vpop.permute.xlu0 %245
      %249 = vset.pattern.permute.xlu0 0
      %250 = vperm.xlu0 %249, %v236
      %v251 = vpop.permute.xlu0 %250
      %254 = vset.pattern.permute.xlu0 0
      %255 = vperm.xlu0 %254, %v237
      %v256 = vpop.permute.xlu0 %255
      %v258 = vadd.f32 %v230, %v241
      %v259 = vadd.f32 %v231, %v246
      %v260 = vadd.f32 %v232, %v251
      %v261 = vadd.f32 %v233, %v256
      %v262 = vmax.f32 %v258, 0.0
      %v263 = vmax.f32 %v259, 0.0
      %v264 = vmax.f32 %v260, 0.0
      %v265 = vmax.f32 %v261, 0.0
      %vm266 = vcmask 326656
      %267 = vst.msk [vmem:[%s201] sm:$0xff] %vm266, %v262
      %268 = vst.msk [vmem:[%s201 + $0x8] sm:$0xff] %vm266, %v263
      %269 = vst.msk [vmem:[%s201 + $0x10] sm:$0xff] %vm266, %v264
      %270 = vst.msk [vmem:[%s201 + $0x18] sm:$0xff] %vm266, %v265
      %p271 = scmp.lt.s32.totalorder %s18, 1
      %s272 = scalar_select %p271, %s18, 1
      %p273 = scmp.lt.s32.totalorder %s19, 0
      %s274 = scalar_select %p273, %s19, 0
      %s275 = smul.addr %s272, 4
      %s276 = sadd.s32 %s274, %s275
      %s277 = smul.addr %s276, 8
      %s278 = scalar_lea.vmem %s3, %s277
      // Predicated region
      $region33: #{_lambda_.12} parent=31 // pred_check
        %p279 = pneg %p116
      $region34: #{_lambda_.12} parent=31 // pred_check_branch
        %281 = sbr.rel (%p279) target = $region36
      $region35: #{_lambda_.12} parent=31 // pred_region
        _
      $region36: #{_lambda_.12} parent=31 // pred_fallthru
        _
    $region32: #{_lambda_.12} parent=5 // pred_fallthru
      _
    %p282 = scmp.le.s32.totalorder 2, %s9
    // Predicated region
    $region37: #{_lambda_.12} parent=5 // pred_check
      %p283 = pneg %p282
    $region38: #{_lambda_.12} parent=5 // pred_check_branch
      %285 = sbr.rel (%p283) target = $region40
    $region39: #{_lambda_.12} parent=5 // pred_region
      %s286 = ssub.s32 %s9, 2
      // Predicated region
      $region41: #{_lambda_.12} parent=39 // pred_check
        %p287 = pneg %p122
      $region42: #{_lambda_.12} parent=39 // pred_check_branch
        %289 = sbr.rel (%p287) target = $region44
      $region43: #{_lambda_.12} parent=39 // pred_region
        %p290 = scmp.lt.s32.totalorder %s20, 1
        %s291 = scalar_select %p290, %s20, 1
        %p292 = scmp.lt.s32.totalorder %s21, 0
        %s293 = scalar_select %p292, %s21, 0
        %s294 = smul.addr %s291, 4
        %s295 = sadd.s32 %s293, %s294
        %s296 = smul.addr %s295, 8
        %s297 = scalar_lea.vmem %s3, %s296
      $region44: #{_lambda_.12} parent=39 // pred_fallthru
        _
    $region40: #{_lambda_.12} parent=5 // pred_fallthru
      _
  $region6: #{_lambda_.12} parent=0 // loop_footer
    %s13 = sadd.s32 1, %s9
  $region7: #{_lambda_.12} parent=0 // loop_footer_branch
    %8 = sbr.rel target = $region3
  $region8: #{_lambda_.12} parent=0 // loop_exit
    _

// kernel: reverse.3
$region0: #{reverse.3}
  #allocation0 [shape = 's32[1]{0}', space=sflag, size = 0x4, scoped, tag = 'scoped memory for reverse.3']
  %s0 = inlined_call_operand.vmem [shape: f32[2,16,8,3], index: 0, kind: input, shape index: {}]
  %s1 = inlined_call_operand.vmem [shape: f32[2,16,8,3], index: 1, kind: output, shape index: {}]
  %s2 = scalar_lea.vmem %s0, 16
  %v3 = vld [vmem:[%s2] sm:$0xff]
  %4 = vst [vmem:[%s1] sm:$0xff] %v3
  %s5 = scalar_lea.vmem %s0, 40
  %v6 = vld [vmem:[%s5] sm:$0xff]
  %s7 = scalar_lea.vmem %s1, 24
  %8 = vst [vmem:[%s7] sm:$0xff] %v6
  %s9 = scalar_lea.vmem %s0, 8
  %v10 = vld [vmem:[%s9] sm:$0xff]
  %s11 = scalar_lea.vmem %s1, 8
  %12 = vst [vmem:[%s11] sm:$0xff] %v10
  %s13 = scalar_lea.vmem %s0, 32
  %v14 = vld [vmem:[%s13] sm:$0xff]
  %s15 = scalar_lea.vmem %s1, 32
  %16 = vst [vmem:[%s15] sm:$0xff] %v14
  %v17 = vld [vmem:[%s0] sm:$0xff]
  %s18 = scalar_lea.vmem %s1, 16
  %19 = vst [vmem:[%s18] sm:$0xff] %v17
  %s20 = scalar_lea.vmem %s0, 24
  %v21 = vld [vmem:[%s20] sm:$0xff]
  %s22 = scalar_lea.vmem %s1, 40
  %23 = vst [vmem:[%s22] sm:$0xff] %v21

// kernel: _lambda_.9
$region0: #{_lambda_.9}
  #allocation0 [shape = 'u32[]', space=smem, size = 0x4, offset = 0x4, fixed_abs, tag = 'smem constant byte address 0x4 - core index']
  #allocation1 [shape = 'u32[72,128]{1,0:T(1,128)}', space=vmem, size = 0x9000, scoped, tag = 'internal scratch']
  %s0 = inlined_call_operand.vmem [shape: f32[2,32,144], index: 0, kind: input, shape index: {}]
  %s1 = inlined_call_operand.vmem [shape: bf16[32,32], index: 1, kind: input, shape index: {}]
  %s2 = inlined_call_operand.vmem [shape: f32[2,32,144], index: 2, kind: output, shape index: {0}]
  %s3 = inlined_call_operand.vmem [shape: f32[2,32,128], index: 3, kind: output, shape index: {1}]
  %s4 = inlined_call_operand.vmem [shape: f32[2,32,128], index: 4, kind: output, shape index: {2}]
  %5 = xla_tuple %s2, %s3, %s4
  %s6 = sld [smem:[#allocation0]]
  $region57: #{_lambda_.9} parent=0
    _
  %s8 = ssub.s32 1, %s6
  %s9 = scalar_select 0, %s8, %s6
  loop: start=0, step=1, limit=4
  $region2: #{_lambda_.9} parent=0 // loop_pre_header
    _
  $region3: #{_lambda_.9} parent=0 // loop_header
    %s11 = sphi 0, %s15
    %p12 = scmp.ge.s32.totalorder %s11, 4
    %s18 = sphi 0, %s30
    %s19 = sphi 0, %s26
    %s20 = sphi 0, %s18
    %s21 = sphi 0, %s19
    %s22 = sphi 0, %s20
    %s23 = sphi 0, %s21
    %s35 = sphi 0, %s37
    %s38 = sphi 0, %s35
    %s39 = sphi 0, %s38
    %s55 = sphi 0, %s39
    %s59 = sphi 0, %s59
    %s61 = sphi 0, %s59
    %s62 = sphi 0, %s61
    %s76 = sphi 0, %s62
    %s84 = sphi 0, %s86
    %s87 = sphi 0, %s84
    %s88 = sphi 0, %s87
    %s104 = sphi 0, %s88
    %s112 = sphi 0, %s114
    %s115 = sphi 0, %s112
    %s116 = sphi 0, %s115
    %s132 = sphi 0, %s116
    %s140 = sphi 0, %s142
    %s143 = sphi 0, %s140
    %s144 = sphi 0, %s143
    %s160 = sphi 0, %s144
  $region4: #{_lambda_.9} parent=0 // loop_header_branch
    %14 = sbr.rel (%p12) target = $region8
  $region5: #{_lambda_.9} parent=0 // loop_body
    %s16 = ssub.s32 %s11, 1
    %s17 = ssub.s32 %s11, 2
    %s24 = sadd.s32 1, %s19
    %p25 = scmp.ge.s32.totalorder %s24, 1
    %s26 = scalar_select %p25, 0, %s24
    %s27 = sadd.s32 1, %s18
    %s28 = scalar_select %p25, %s27, %s18
    %p29 = scmp.ge.s32.totalorder %s28, 2
    %s30 = scalar_select %p29, 0, %s28
    %s31 = ssub.s32 %s18, %s30
    %s32 = ssub.s32 %s19, %s26
    %s33 = sor.u32 %s31, %s32
    %p34 = scmp.eq.s32.totalorder %s33, 0
    %s36 = sadd.s32 %s35, 1
    %s37 = scalar_select %p34, %s35, %s36
    %p40 = pneg %p34
    %p41 = scmp.eq.s32.totalorder %s11, 1
    %p42 = por %p40, %p41
    %p43 = scmp.ne.s32.totalorder %s35, %s38
    %p44 = scmp.eq.s32.totalorder %s11, 0
    %p45 = por %p43, %p44
    %p46 = scmp.ne.s32.totalorder %s35, %s38
    %p47 = scmp.eq.s32.totalorder %s16, 1
    %p48 = por %p46, %p47
    %p49 = scmp.ne.s32.totalorder %s38, %s39
    %p50 = scmp.eq.s32.totalorder %s16, 0
    %p51 = por %p49, %p50
    %p52 = scmp.ne.s32.totalorder %s38, %s39
    %p53 = scmp.eq.s32.totalorder %s17, 1
    %p54 = por %p52, %p53
    %p56 = scmp.ne.s32.totalorder %s39, %s55
    %p57 = scmp.eq.s32.totalorder %s17, 0
    %p58 = por %p56, %p57
    %s60 = sadd.s32 %s59, 1
    %p63 = scmp.eq.s32.totalorder %s11, 1
    %p64 = scmp.ne.s32.totalorder %s59, %s61
    %p65 = scmp.eq.s32.totalorder %s11, 0
    %p66 = por %p64, %p65
    %p67 = scmp.ne.s32.totalorder %s59, %s61
    %p68 = scmp.eq.s32.totalorder %s16, 1
    %p69 = por %p67, %p68
    %p70 = scmp.ne.s32.totalorder %s61, %s62
    %p71 = scmp.eq.s32.totalorder %s16, 0
    %p72 = por %p70, %p71
    %p73 = scmp.ne.s32.totalorder %s61, %s62
    %p74 = scmp.eq.s32.totalorder %s17, 1
    %p75 = por %p73, %p74
    %p77 = scmp.ne.s32.totalorder %s62, %s76
    %p78 = scmp.eq.s32.totalorder %s17, 0
    %p79 = por %p77, %p78
    %s80 = ssub.s32 %s18, %s30
    %s81 = ssub.s32 %s19, %s26
    %s82 = sor.u32 %s80, %s81
    %p83 = scmp.eq.s32.totalorder %s82, 0
    %s85 = sadd.s32 %s84, 1
    %s86 = scalar_select %p83, %s84, %s85
    %p89 = pneg %p83
    %p90 = scmp.eq.s32.totalorder %s11, 1
    %p91 = por %p89, %p90
    %p92 = scmp.ne.s32.totalorder %s84, %s87
    %p93 = scmp.eq.s32.totalorder %s11, 0
    %p94 = por %p92, %p93
    %p95 = scmp.ne.s32.totalorder %s84, %s87
    %p96 = scmp.eq.s32.totalorder %s16, 1
    %p97 = por %p95, %p96
    %p98 = scmp.ne.s32.totalorder %s87, %s88
    %p99 = scmp.eq.s32.totalorder %s16, 0
    %p100 = por %p98, %p99
    %p101 = scmp.ne.s32.totalorder %s87, %s88
    %p102 = scmp.eq.s32.totalorder %s17, 1
    %p103 = por %p101, %p102
    %p105 = scmp.ne.s32.totalorder %s88, %s104
    %p106 = scmp.eq.s32.totalorder %s17, 0
    %p107 = por %p105, %p106
    %s108 = ssub.s32 %s18, %s30
    %s109 = ssub.s32 %s19, %s26
    %s110 = sor.u32 %s108, %s109
    %p111 = scmp.eq.s32.totalorder %s110, 0
    %s113 = sadd.s32 %s112, 1
    %s114 = scalar_select %p111, %s112, %s113
    %p117 = pneg %p111
    %p118 = scmp.eq.s32.totalorder %s11, 1
    %p119 = por %p117, %p118
    %p120 = scmp.ne.s32.totalorder %s112, %s115
    %p121 = scmp.eq.s32.totalorder %s11, 0
    %p122 = por %p120, %p121
    %p123 = scmp.ne.s32.totalorder %s112, %s115
    %p124 = scmp.eq.s32.totalorder %s16, 1
    %p125 = por %p123, %p124
    %p126 = scmp.ne.s32.totalorder %s115, %s116
    %p127 = scmp.eq.s32.totalorder %s16, 0
    %p128 = por %p126, %p127
    %p129 = scmp.ne.s32.totalorder %s115, %s116
    %p130 = scmp.eq.s32.totalorder %s17, 1
    %p131 = por %p129, %p130
    %p133 = scmp.ne.s32.totalorder %s116, %s132
    %p134 = scmp.eq.s32.totalorder %s17, 0
    %p135 = por %p133, %p134
    %s136 = ssub.s32 %s18, %s30
    %s137 = ssub.s32 %s19, %s26
    %s138 = sor.u32 %s136, %s137
    %p139 = scmp.eq.s32.totalorder %s138, 0
    %s141 = sadd.s32 %s140, 1
    %s142 = scalar_select %p139, %s140, %s141
    %p145 = pneg %p139
    %p146 = scmp.eq.s32.totalorder %s11, 1
    %p147 = por %p145, %p146
    %p148 = scmp.ne.s32.totalorder %s140, %s143
    %p149 = scmp.eq.s32.totalorder %s11, 0
    %p150 = por %p148, %p149
    %p151 = scmp.ne.s32.totalorder %s140, %s143
    %p152 = scmp.eq.s32.totalorder %s16, 1
    %p153 = por %p151, %p152
    %p154 = scmp.ne.s32.totalorder %s143, %s144
    %p155 = scmp.eq.s32.totalorder %s16, 0
    %p156 = por %p154, %p155
    %p157 = scmp.ne.s32.totalorder %s143, %s144
    %p158 = scmp.eq.s32.totalorder %s17, 1
    %p159 = por %p157, %p158
    %p161 = scmp.ne.s32.totalorder %s144, %s160
    %p162 = scmp.eq.s32.totalorder %s17, 0
    %p163 = por %p161, %p162
    %p164 = scmp.le.s32.totalorder 1, %s11
    %p165 = scmp.lt.s32.totalorder %s11, 3
    %p166 = pnand %p164, %p165
    %p167 = pneg %p166
    // Predicated region
    $region9: #{_lambda_.9} parent=5 // pred_check
      _
    $region10: #{_lambda_.9} parent=5 // pred_check_branch
      %169 = sbr.rel (%p166) target = $region12
    $region11: #{_lambda_.9} parent=5 // pred_region
      %s170 = ssub.s32 %s11, 1
      // Predicated region
      $region13: #{_lambda_.9} parent=11 // pred_check
        %p171 = pneg %p72
      $region14: #{_lambda_.9} parent=11 // pred_check_branch
        %173 = sbr.rel (%p171) target = $region16
      $region15: #{_lambda_.9} parent=11 // pred_region
        _
      $region16: #{_lambda_.9} parent=11 // pred_fallthru
        _
    $region12: #{_lambda_.9} parent=5 // pred_fallthru
      _
    %p174 = scmp.lt.s32.totalorder %s11, 2
    // Predicated region
    $region17: #{_lambda_.9} parent=5 // pred_check
      %p175 = pneg %p174
    $region18: #{_lambda_.9} parent=5 // pred_check_branch
      %177 = sbr.rel (%p175) target = $region20
    $region19: #{_lambda_.9} parent=5 // pred_region
      // Predicated region
      $region21: #{_lambda_.9} parent=19 // pred_check
        %p178 = pneg %p45
      $region22: #{_lambda_.9} parent=19 // pred_check_branch
        %180 = sbr.rel (%p178) target = $region24
      $region23: #{_lambda_.9} parent=19 // pred_region
        %s181 = smul.u32 2, %s19
        %p182 = scmp.lt.s32.totalorder %s18, 1
        %s183 = scalar_select %p182, %s18, 1
        %p184 = scmp.lt.s32.totalorder %s181, 1
        %s185 = scalar_select %p184, %s181, 1
        %s186 = smul.addr %s183, 8
        %s187 = sadd.s32 %s185, %s186
        %s188 = smul.addr %s187, 8
        %s189 = scalar_lea.vmem %s0, %s188
        %s190 = smul.u32 2, %s19
      $region24: #{_lambda_.9} parent=19 // pred_fallthru
        _
    $region20: #{_lambda_.9} parent=5 // pred_fallthru
      _
    %p191 = scmp.le.s32.totalorder 1, %s11
    %p192 = scmp.lt.s32.totalorder %s11, 3
    %p193 = pnand %p191, %p192
    %p194 = pneg %p193
    // Predicated region
    $region25: #{_lambda_.9} parent=5 // pred_check
      _
    $region26: #{_lambda_.9} parent=5 // pred_check_branch
      %196 = sbr.rel (%p193) target = $region28
    $region27: #{_lambda_.9} parent=5 // pred_region
      %s197 = ssub.s32 %s11, 1
      %s198 = smul.u32 2, %s21
      %p199 = scmp.lt.s32.totalorder %s20, 1
      %s200 = scalar_select %p199, %s20, 1
      %p201 = scmp.lt.s32.totalorder %s198, 1
      %s202 = scalar_select %p201, %s198, 1
      %s203 = smul.addr %s200, 8
      %s204 = sadd.s32 %s202, %s203
      %s205 = smul.addr %s204, 8
      %s206 = scalar_lea.vmem %s0, %s205
      %p207 = pneg %p51
      %p208 = pneg %p48
      %p209 = pneg %p72
      %p210 = pneg %p69
      %p211 = pneg %p100
      %p212 = pneg %p97
      %s213 = smul.u32 2, %s21
      %p214 = scmp.lt.s32.totalorder %s20, 1
      %s215 = scalar_select %p214, %s20, 1
      %p216 = scmp.lt.s32.totalorder %s213, 1
      %s217 = scalar_select %p216, %s213, 1
      %s218 = smul.addr %s215, 8
      %s219 = sadd.s32 %s217, %s218
      %s220 = smul.addr %s219, 8
      %s221 = scalar_lea.vmem %s2, %s220
      %p222 = pneg %p128
      %p223 = pneg %p125
      %p224 = scmp.lt.s32.totalorder %s20, 1
      %s225 = scalar_select %p224, %s20, 1
      %p226 = scmp.lt.s32.totalorder %s21, 0
      %s227 = scalar_select %p226, %s21, 0
      %s228 = smul.addr %s225, 4
      %s229 = sadd.s32 %s227, %s228
      %s230 = smul.addr %s229, 8
      %s231 = scalar_lea.vmem %s3, %s230
      %p232 = pneg %p156
      %p233 = pneg %p153
      %p234 = scmp.lt.s32.totalorder %s20, 1
      %s235 = scalar_select %p234, %s20, 1
      %p236 = scmp.lt.s32.totalorder %s21, 0
      %s237 = scalar_select %p236, %s21, 0
      %s238 = smul.addr %s235, 4
      %s239 = sadd.s32 %s237, %s238
      %s240 = smul.addr %s239, 8
      %s241 = scalar_lea.vmem %s4, %s240
      %s242 = smul.u32 2, %s21
      %p243 = scmp.lt.s32.totalorder %s20, 1
      %s244 = scalar_select %p243, %s20, 1
      %p245 = scmp.lt.s32.totalorder %s242, 1
      %s246 = scalar_select %p245, %s242, 1
      %s247 = smul.addr %s244, 8
      %s248 = sadd.s32 %s246, %s247
      %s249 = smul.addr %s248, 8
      %s250 = scalar_lea.vmem %s0, %s249
      %s251 = smul.u32 2, %s21
      %s252 = smul.u32 2, %s21
      %p253 = scmp.lt.s32.totalorder %s20, 1
      %s254 = scalar_select %p253, %s20, 1
      %p255 = scmp.lt.s32.totalorder %s252, 1
      %s256 = scalar_select %p255, %s252, 1
      %s257 = smul.addr %s254, 8
      %s258 = sadd.s32 %s256, %s257
      %s259 = smul.addr %s258, 8
      %s260 = scalar_lea.vmem %s2, %s259
      %s261 = smul.u32 2, %s21
      %p262 = scmp.lt.s32.totalorder %s20, 1
      %s263 = scalar_select %p262, %s20, 1
      %p264 = scmp.lt.s32.totalorder %s21, 0
      %s265 = scalar_select %p264, %s21, 0
      %s266 = smul.addr %s263, 4
      %s267 = sadd.s32 %s265, %s266
      %s268 = smul.addr %s267, 8
      %s269 = scalar_lea.vmem %s3, %s268
      %p270 = scmp.lt.s32.totalorder %s20, 1
      %s271 = scalar_select %p270, %s20, 1
      %p272 = scmp.lt.s32.totalorder %s21, 0
      %s273 = scalar_select %p272, %s21, 0
      %s274 = smul.addr %s271, 4
      %s275 = sadd.s32 %s273, %s274
      %s276 = smul.addr %s275, 8
      %s277 = scalar_lea.vmem %s4, %s276
      %v279 = vld [vmem:[%s250] sm:$0xff]
      %v280 = vld [vmem:[%s250 + $0x8] sm:$0xff]
      %v281 = vld [vmem:[%s250 + $0x10] sm:$0xff]
      %v282 = vld [vmem:[%s250 + $0x18] sm:$0xff]
      %v283 = vld [vmem:[%s250 + $0x20] sm:$0xff]
      %v284 = vld [vmem:[%s250 + $0x28] sm:$0xff]
      %v285 = vld [vmem:[%s250 + $0x30] sm:$0xff]
      %v286 = vld [vmem:[%s250 + $0x38] sm:$0xff]
      %v287 = vld [vmem:[%s1] sm:$0xf]
      %v288 = vld [vmem:[%s1 + $0x4] sm:$0xf]
      %v289 = vld [vmem:[%s1 + $0x8] sm:$0xf]
      %v290 = vld [vmem:[%s1 + $0xc] sm:$0xf]
      %v291 = vpack.c.bf16 %v281, %v279
      %v292 = vpack.c.bf16 %v282, %v280
      %v293 = vpack.c.bf16 %v285, %v283
      %v294 = vpack.c.bf16 %v286, %v284
      %v299 = vunpack.c.l.b16 %v287
      %v300 = vunpack.c.l.b16 %v288
      %v301 = vunpack.c.l.b16 %v289
      %v302 = vunpack.c.l.b16 %v290
      %v303 = vpack.c.b16 %v300, %v299
      %v304 = vpack.c.b16 %v302, %v301
      %vm305 = vcmask 261120
      %v307 = vsel %vm305, %v303, 0
      %v310 = vsel %vm305, %v304, 0
      %312 = vmatpush.bf16.msra.mxu0 0
      %313 = vmatpush.bf16.msra.mxu0 0
      %314 = vmatpush.bf16.msra.mxu0 0
      %315 = vmatpush.bf16.msra.mxu0 0
      %316 = vmatpush.bf16.msra.mxu0 0
      %317 = vmatpush.bf16.msra.mxu0 0
      %318 = vmatpush.bf16.msra.mxu0 %v293
      %319 = vmatpush.bf16.msra.mxu0 %v291
      %320 = vmatmul.bf16.gmra.mxu0 %v307
      %v321 = vpop.f32.mrf.mxu0
      %v322 = vadd.f32 0.0, %v321
      %v323 = vpop.f32.mrf.mxu0
      %v324 = vadd.f32 0.0, %v323
      %325 = vmatmul.bf16.gmra.mxu0 %v310
      %v326 = vpop.f32.mrf.mxu0
      %v327 = vadd.f32 0.0, %v326
      %v328 = vpop.f32.mrf.mxu0
      %v329 = vadd.f32 0.0, %v328
      %330 = vdwg.mxu0
      %331 = vmatpush.bf16.msra.mxu0 0
      %332 = vmatpush.bf16.msra.mxu0 0
      %333 = vmatpush.bf16.msra.mxu0 0
      %334 = vmatpush.bf16.msra.mxu0 0
      %335 = vmatpush.bf16.msra.mxu0 0
      %336 = vmatpush.bf16.msra.mxu0 0
      %337 = vmatpush.bf16.msra.mxu0 %v294
      %338 = vmatpush.bf16.msra.mxu0 %v292
      %339 = vmatmul.bf16.gmra.mxu0 %v307
      %v340 = vpop.f32.mrf.mxu0
      %v341 = vadd.f32 0.0, %v340
      %v342 = vpop.f32.mrf.mxu0
      %v343 = vadd.f32 0.0, %v342
      %344 = vmatmul.bf16.gmra.mxu0 %v310
      %v345 = vpop.f32.mrf.mxu0
      %v346 = vadd.f32 0.0, %v345
      %v347 = vpop.f32.mrf.mxu0
      %v348 = vadd.f32 0.0, %v347
      %349 = vdwg.mxu0
      %350 = vst [vmem:[%s260] sm:$0xff] %v322
      %vm351 = vcmask 130048
      %352 = vst.msk [vmem:[%s260 + $0x8] sm:$0xff] %vm351, %v341
      %353 = vst [vmem:[%s260 + $0x10] sm:$0xff] %v324
      %354 = vst.msk [vmem:[%s260 + $0x18] sm:$0xff] %vm351, %v343
      %355 = vst [vmem:[%s260 + $0x20] sm:$0xff] %v327
      %356 = vst.msk [vmem:[%s260 + $0x28] sm:$0xff] %vm351, %v346
      %357 = vst [vmem:[%s260 + $0x30] sm:$0xff] %v329
      %358 = vst.msk [vmem:[%s260 + $0x38] sm:$0xff] %vm351, %v348
      %v359 = vsel %vm351, %v341, 0.0
      %v360 = vadd.f32 %v322, %v359
      %361 = vadd.xlane.f32.xlu0 %v360
      %v362 = vpop.xlane.xlu0 %361
      %v363 = vsel %vm351, %v343, 0.0
      %v364 = vadd.f32 %v324, %v363
      %365 = vadd.xlane.f32.xlu0 %v364
      %v366 = vpop.xlane.xlu0 %365
      %v367 = vsel %vm351, %v346, 0.0
      %v368 = vadd.f32 %v327, %v367
      %369 = vadd.xlane.f32.xlu0 %v368
      %v370 = vpop.xlane.xlu0 %369
      %v371 = vsel %vm351, %v348, 0.0
      %v372 = vadd.f32 %v329, %v371
      %373 = vadd.xlane.f32.xlu0 %v372
      %v374 = vpop.xlane.xlu0 %373
      %v375 = vmul.f32 %v322, %v322
      %v376 = vmul.f32 %v341, %v341
      %v377 = vmul.f32 %v324, %v324
      %v378 = vmul.f32 %v343, %v343
      %v379 = vmul.f32 %v327, %v327
      %v380 = vmul.f32 %v346, %v346
      %v381 = vmul.f32 %v329, %v329
      %v382 = vmul.f32 %v348, %v348
      %v383 = vsel %vm351, %v376, 0.0
      %v384 = vadd.f32 %v375, %v383
      %385 = vadd.xlane.f32.xlu0 %v384
      %v386 = vpop.xlane.xlu0 %385
      %v387 = vsel %vm351, %v378, 0.0
      %v388 = vadd.f32 %v377, %v387
      %389 = vadd.xlane.f32.xlu0 %v388
      %v390 = vpop.xlane.xlu0 %389
      %v391 = vsel %vm351, %v380, 0.0
      %v392 = vadd.f32 %v379, %v391
      %393 = vadd.xlane.f32.xlu0 %v392
      %v394 = vpop.xlane.xlu0 %393
      %v395 = vsel %vm351, %v382, 0.0
      %v396 = vadd.f32 %v381, %v395
      %397 = vadd.xlane.f32.xlu0 %v396
      %v398 = vpop.xlane.xlu0 %397
      %399 = vst [vmem:[%s269] sm:$0xff] %v362
      %400 = vst [vmem:[%s269 + $0x8] sm:$0xff] %v366
      %401 = vst [vmem:[%s269 + $0x10] sm:$0xff] %v370
      %402 = vst [vmem:[%s269 + $0x18] sm:$0xff] %v374
      %403 = vst [vmem:[%s277] sm:$0xff] %v386
      %404 = vst [vmem:[%s277 + $0x8] sm:$0xff] %v390
      %405 = vst [vmem:[%s277 + $0x10] sm:$0xff] %v394
      %406 = vst [vmem:[%s277 + $0x18] sm:$0xff] %v398
      %s407 = smul.u32 2, %s21
      %p408 = scmp.lt.s32.totalorder %s20, 1
      %s409 = scalar_select %p408, %s20, 1
      %p410 = scmp.lt.s32.totalorder %s407, 1
      %s411 = scalar_select %p410, %s407, 1
      %s412 = smul.addr %s409, 8
      %s413 = sadd.s32 %s411, %s412
      %s414 = smul.addr %s413, 8
      %s415 = scalar_lea.vmem %s2, %s414
      %p416 = scmp.lt.s32.totalorder %s20, 1
      %s417 = scalar_select %p416, %s20, 1
      %p418 = scmp.lt.s32.totalorder %s21, 0
      %s419 = scalar_select %p418, %s21, 0
      %s420 = smul.addr %s417, 4
      %s421 = sadd.s32 %s419, %s420
      %s422 = smul.addr %s421, 8
      %s423 = scalar_lea.vmem %s3, %s422
      %p424 = scmp.lt.s32.totalorder %s20, 1
      %s425 = scalar_select %p424, %s20, 1
      %p426 = scmp.lt.s32.totalorder %s21, 0
      %s427 = scalar_select %p426, %s21, 0
      %s428 = smul.addr %s425, 4
      %s429 = sadd.s32 %s427, %s428
      %s430 = smul.addr %s429, 8
      %s431 = scalar_lea.vmem %s4, %s430
      // Predicated region
      $region29: #{_lambda_.9} parent=27 // pred_check
        %p432 = pneg %p97
      $region30: #{_lambda_.9} parent=27 // pred_check_branch
        %434 = sbr.rel (%p432) target = $region32
      $region31: #{_lambda_.9} parent=27 // pred_region
        %s435 = smul.u32 2, %s21
      $region32: #{_lambda_.9} parent=27 // pred_fallthru
        _
      // Predicated region
      $region33: #{_lambda_.9} parent=27 // pred_check
        %p436 = pneg %p125
      $region34: #{_lambda_.9} parent=27 // pred_check_branch
        %438 = sbr.rel (%p436) target = $region36
      $region35: #{_lambda_.9} parent=27 // pred_region
        _
      $region36: #{_lambda_.9} parent=27 // pred_fallthru
        _
      // Predicated region
      $region37: #{_lambda_.9} parent=27 // pred_check
        %p439 = pneg %p153
      $region38: #{_lambda_.9} parent=27 // pred_check_branch
        %441 = sbr.rel (%p439) target = $region40
      $region39: #{_lambda_.9} parent=27 // pred_region
        _
      $region40: #{_lambda_.9} parent=27 // pred_fallthru
        _
    $region28: #{_lambda_.9} parent=5 // pred_fallthru
      _
    %p442 = scmp.le.s32.totalorder 2, %s11
    // Predicated region
    $region41: #{_lambda_.9} parent=5 // pred_check
      %p443 = pneg %p442
    $region42: #{_lambda_.9} parent=5 // pred_check_branch
      %445 = sbr.rel (%p443) target = $region44
    $region43: #{_lambda_.9} parent=5 // pred_region
      %s446 = ssub.s32 %s11, 2
      // Predicated region
      $region45: #{_lambda_.9} parent=43 // pred_check
        %p447 = pneg %p103
      $region46: #{_lambda_.9} parent=43 // pred_check_branch
        %449 = sbr.rel (%p447) target = $region48
      $region47: #{_lambda_.9} parent=43 // pred_region
        %s450 = smul.u32 2, %s23
        %p451 = scmp.lt.s32.totalorder %s22, 1
        %s452 = scalar_select %p451, %s22, 1
        %p453 = scmp.lt.s32.totalorder %s450, 1
        %s454 = scalar_select %p453, %s450, 1
        %s455 = smul.addr %s452, 8
        %s456 = sadd.s32 %s454, %s455
        %s457 = smul.addr %s456, 8
        %s458 = scalar_lea.vmem %s2, %s457
      $region48: #{_lambda_.9} parent=43 // pred_fallthru
        _
      // Predicated region
      $region49: #{_lambda_.9} parent=43 // pred_check
        %p459 = pneg %p131
      $region50: #{_lambda_.9} parent=43 // pred_check_branch
        %461 = sbr.rel (%p459) target = $region52
      $region51: #{_lambda_.9} parent=43 // pred_region
        %p462 = scmp.lt.s32.totalorder %s22, 1
        %s463 = scalar_select %p462, %s22, 1
        %p464 = scmp.lt.s32.totalorder %s23, 0
        %s465 = scalar_select %p464, %s23, 0
        %s466 = smul.addr %s463, 4
        %s467 = sadd.s32 %s465, %s466
        %s468 = smul.addr %s467, 8
        %s469 = scalar_lea.vmem %s3, %s468
      $region52: #{_lambda_.9} parent=43 // pred_fallthru
        _
      // Predicated region
      $region53: #{_lambda_.9} parent=43 // pred_check
        %p470 = pneg %p159
      $region54: #{_lambda_.9} parent=43 // pred_check_branch
        %472 = sbr.rel (%p470) target = $region56
      $region55: #{_lambda_.9} parent=43 // pred_region
        %p473 = scmp.lt.s32.totalorder %s22, 1
        %s474 = scalar_select %p473, %s22, 1
        %p475 = scmp.lt.s32.totalorder %s23, 0
        %s476 = scalar_select %p475, %s23, 0
        %s477 = smul.addr %s474, 4
        %s478 = sadd.s32 %s476, %s477
        %s479 = smul.addr %s478, 8
        %s480 = scalar_lea.vmem %s4, %s479
      $region56: #{_lambda_.9} parent=43 // pred_fallthru
        _
    $region44: #{_lambda_.9} parent=5 // pred_fallthru
      _
  $region6: #{_lambda_.9} parent=0 // loop_footer
    %s15 = sadd.s32 1, %s11
  $region7: #{_lambda_.9} parent=0 // loop_footer_branch
    %10 = sbr.rel target = $region3
  $region8: #{_lambda_.9} parent=0 // loop_exit
    _

// kernel: _lambda_.10
$region0: #{_lambda_.10}
  #allocation0 [shape = 'u32[]', space=smem, size = 0x4, offset = 0x4, fixed_abs, tag = 'smem constant byte address 0x4 - core index']
  #allocation1 [shape = 'u32[72,128]{1,0:T(1,128)}', space=vmem, size = 0x9000, scoped, tag = 'internal scratch']
  %s0 = inlined_call_operand.vmem [shape: f32[2,32,144], index: 0, kind: input, shape index: {}]
  %s1 = inlined_call_operand.vmem [shape: f32[32,1], index: 1, kind: input, shape index: {}]
  %s2 = inlined_call_operand.vmem [shape: f32[32,1], index: 2, kind: input, shape index: {}]
  %s3 = inlined_call_operand.vmem [shape: f32[2,32,144], index: 3, kind: output, shape index: {}]
  %s4 = sld [smem:[#allocation0]]
  $region45: #{_lambda_.10} parent=0
    _
  %s6 = ssub.s32 1, %s4
  %s7 = scalar_select 0, %s6, %s4
  loop: start=0, step=1, limit=4
  $region2: #{_lambda_.10} parent=0 // loop_pre_header
    _
  $region3: #{_lambda_.10} parent=0 // loop_header
    %s9 = sphi 0, %s13
    %p10 = scmp.ge.s32.totalorder %s9, 4
    %s16 = sphi 0, %s28
    %s17 = sphi 0, %s24
    %s18 = sphi 0, %s16
    %s19 = sphi 0, %s17
    %s20 = sphi 0, %s18
    %s21 = sphi 0, %s19
    %s33 = sphi 0, %s35
    %s36 = sphi 0, %s33
    %s37 = sphi 0, %s36
    %s53 = sphi 0, %s37
    %s57 = sphi 0, %s57
    %s59 = sphi 0, %s57
    %s60 = sphi 0, %s59
    %s74 = sphi 0, %s60
    %s78 = sphi 0, %s78
    %s80 = sphi 0, %s78
    %s81 = sphi 0, %s80
    %s95 = sphi 0, %s81
    %s103 = sphi 0, %s105
    %s106 = sphi 0, %s103
    %s107 = sphi 0, %s106
    %s123 = sphi 0, %s107
  $region4: #{_lambda_.10} parent=0 // loop_header_branch
    %12 = sbr.rel (%p10) target = $region8
  $region5: #{_lambda_.10} parent=0 // loop_body
    %s14 = ssub.s32 %s9, 1
    %s15 = ssub.s32 %s9, 2
    %s22 = sadd.s32 1, %s17
    %p23 = scmp.ge.s32.totalorder %s22, 1
    %s24 = scalar_select %p23, 0, %s22
    %s25 = sadd.s32 1, %s16
    %s26 = scalar_select %p23, %s25, %s16
    %p27 = scmp.ge.s32.totalorder %s26, 2
    %s28 = scalar_select %p27, 0, %s26
    %s29 = ssub.s32 %s16, %s28
    %s30 = ssub.s32 %s17, %s24
    %s31 = sor.u32 %s29, %s30
    %p32 = scmp.eq.s32.totalorder %s31, 0
    %s34 = sadd.s32 %s33, 1
    %s35 = scalar_select %p32, %s33, %s34
    %p38 = pneg %p32
    %p39 = scmp.eq.s32.totalorder %s9, 1
    %p40 = por %p38, %p39
    %p41 = scmp.ne.s32.totalorder %s33, %s36
    %p42 = scmp.eq.s32.totalorder %s9, 0
    %p43 = por %p41, %p42
    %p44 = scmp.ne.s32.totalorder %s33, %s36
    %p45 = scmp.eq.s32.totalorder %s14, 1
    %p46 = por %p44, %p45
    %p47 = scmp.ne.s32.totalorder %s36, %s37
    %p48 = scmp.eq.s32.totalorder %s14, 0
    %p49 = por %p47, %p48
    %p50 = scmp.ne.s32.totalorder %s36, %s37
    %p51 = scmp.eq.s32.totalorder %s15, 1
    %p52 = por %p50, %p51
    %p54 = scmp.ne.s32.totalorder %s37, %s53
    %p55 = scmp.eq.s32.totalorder %s15, 0
    %p56 = por %p54, %p55
    %s58 = sadd.s32 %s57, 1
    %p61 = scmp.eq.s32.totalorder %s9, 1
    %p62 = scmp.ne.s32.totalorder %s57, %s59
    %p63 = scmp.eq.s32.totalorder %s9, 0
    %p64 = por %p62, %p63
    %p65 = scmp.ne.s32.totalorder %s57, %s59
    %p66 = scmp.eq.s32.totalorder %s14, 1
    %p67 = por %p65, %p66
    %p68 = scmp.ne.s32.totalorder %s59, %s60
    %p69 = scmp.eq.s32.totalorder %s14, 0
    %p70 = por %p68, %p69
    %p71 = scmp.ne.s32.totalorder %s59, %s60
    %p72 = scmp.eq.s32.totalorder %s15, 1
    %p73 = por %p71, %p72
    %p75 = scmp.ne.s32.totalorder %s60, %s74
    %p76 = scmp.eq.s32.totalorder %s15, 0
    %p77 = por %p75, %p76
    %s79 = sadd.s32 %s78, 1
    %p82 = scmp.eq.s32.totalorder %s9, 1
    %p83 = scmp.ne.s32.totalorder %s78, %s80
    %p84 = scmp.eq.s32.totalorder %s9, 0
    %p85 = por %p83, %p84
    %p86 = scmp.ne.s32.totalorder %s78, %s80
    %p87 = scmp.eq.s32.totalorder %s14, 1
    %p88 = por %p86, %p87
    %p89 = scmp.ne.s32.totalorder %s80, %s81
    %p90 = scmp.eq.s32.totalorder %s14, 0
    %p91 = por %p89, %p90
    %p92 = scmp.ne.s32.totalorder %s80, %s81
    %p93 = scmp.eq.s32.totalorder %s15, 1
    %p94 = por %p92, %p93
    %p96 = scmp.ne.s32.totalorder %s81, %s95
    %p97 = scmp.eq.s32.totalorder %s15, 0
    %p98 = por %p96, %p97
    %s99 = ssub.s32 %s16, %s28
    %s100 = ssub.s32 %s17, %s24
    %s101 = sor.u32 %s99, %s100
    %p102 = scmp.eq.s32.totalorder %s101, 0
    %s104 = sadd.s32 %s103, 1
    %s105 = scalar_select %p102, %s103, %s104
    %p108 = pneg %p102
    %p109 = scmp.eq.s32.totalorder %s9, 1
    %p110 = por %p108, %p109
    %p111 = scmp.ne.s32.totalorder %s103, %s106
    %p112 = scmp.eq.s32.totalorder %s9, 0
    %p113 = por %p111, %p112
    %p114 = scmp.ne.s32.totalorder %s103, %s106
    %p115 = scmp.eq.s32.totalorder %s14, 1
    %p116 = por %p114, %p115
    %p117 = scmp.ne.s32.totalorder %s106, %s107
    %p118 = scmp.eq.s32.totalorder %s14, 0
    %p119 = por %p117, %p118
    %p120 = scmp.ne.s32.totalorder %s106, %s107
    %p121 = scmp.eq.s32.totalorder %s15, 1
    %p122 = por %p120, %p121
    %p124 = scmp.ne.s32.totalorder %s107, %s123
    %p125 = scmp.eq.s32.totalorder %s15, 0
    %p126 = por %p124, %p125
    %p127 = scmp.le.s32.totalorder 1, %s9
    %p128 = scmp.lt.s32.totalorder %s9, 3
    %p129 = pnand %p127, %p128
    %p130 = pneg %p129
    // Predicated region
    $region9: #{_lambda_.10} parent=5 // pred_check
      _
    $region10: #{_lambda_.10} parent=5 // pred_check_branch
      %132 = sbr.rel (%p129) target = $region12
    $region11: #{_lambda_.10} parent=5 // pred_region
      %s133 = ssub.s32 %s9, 1
      // Predicated region
      $region13: #{_lambda_.10} parent=11 // pred_check
        %p134 = pneg %p70
      $region14: #{_lambda_.10} parent=11 // pred_check_branch
        %136 = sbr.rel (%p134) target = $region16
      $region15: #{_lambda_.10} parent=11 // pred_region
        _
      $region16: #{_lambda_.10} parent=11 // pred_fallthru
        _
      // Predicated region
      $region17: #{_lambda_.10} parent=11 // pred_check
        %p137 = pneg %p91
      $region18: #{_lambda_.10} parent=11 // pred_check_branch
        %139 = sbr.rel (%p137) target = $region20
      $region19: #{_lambda_.10} parent=11 // pred_region
        _
      $region20: #{_lambda_.10} parent=11 // pred_fallthru
        _
    $region12: #{_lambda_.10} parent=5 // pred_fallthru
      _
    %p140 = scmp.lt.s32.totalorder %s9, 2
    // Predicated region
    $region21: #{_lambda_.10} parent=5 // pred_check
      %p141 = pneg %p140
    $region22: #{_lambda_.10} parent=5 // pred_check_branch
      %143 = sbr.rel (%p141) target = $region24
    $region23: #{_lambda_.10} parent=5 // pred_region
      // Predicated region
      $region25: #{_lambda_.10} parent=23 // pred_check
        %p144 = pneg %p43
      $region26: #{_lambda_.10} parent=23 // pred_check_branch
        %146 = sbr.rel (%p144) target = $region28
      $region27: #{_lambda_.10} parent=23 // pred_region
        %s147 = smul.u32 2, %s17
        %p148 = scmp.lt.s32.totalorder %s16, 1
        %s149 = scalar_select %p148, %s16, 1
        %p150 = scmp.lt.s32.totalorder %s147, 1
        %s151 = scalar_select %p150, %s147, 1
        %s152 = smul.addr %s149, 8
        %s153 = sadd.s32 %s151, %s152
        %s154 = smul.addr %s153, 8
        %s155 = scalar_lea.vmem %s0, %s154
        %s156 = smul.u32 2, %s17
      $region28: #{_lambda_.10} parent=23 // pred_fallthru
        _
    $region24: #{_lambda_.10} parent=5 // pred_fallthru
      _
    %p157 = scmp.le.s32.totalorder 1, %s9
    %p158 = scmp.lt.s32.totalorder %s9, 3
    %p159 = pnand %p157, %p158
    %p160 = pneg %p159
    // Predicated region
    $region29: #{_lambda_.10} parent=5 // pred_check
      _
    $region30: #{_lambda_.10} parent=5 // pred_check_branch
      %162 = sbr.rel (%p159) target = $region32
    $region31: #{_lambda_.10} parent=5 // pred_region
      %s163 = ssub.s32 %s9, 1
      %s164 = smul.u32 2, %s19
      %p165 = scmp.lt.s32.totalorder %s18, 1
      %s166 = scalar_select %p165, %s18, 1
      %p167 = scmp.lt.s32.totalorder %s164, 1
      %s168 = scalar_select %p167, %s164, 1
      %s169 = smul.addr %s166, 8
      %s170 = sadd.s32 %s168, %s169
      %s171 = smul.addr %s170, 8
      %s172 = scalar_lea.vmem %s0, %s171
      %p173 = pneg %p49
      %p174 = pneg %p46
      %p175 = pneg %p70
      %p176 = pneg %p67
      %p177 = pneg %p91
      %p178 = pneg %p88
      %p179 = pneg %p119
      %p180 = pneg %p116
      %s181 = smul.u32 2, %s19
      %p182 = scmp.lt.s32.totalorder %s18, 1
      %s183 = scalar_select %p182, %s18, 1
      %p184 = scmp.lt.s32.totalorder %s181, 1
      %s185 = scalar_select %p184, %s181, 1
      %s186 = smul.addr %s183, 8
      %s187 = sadd.s32 %s185, %s186
      %s188 = smul.addr %s187, 8
      %s189 = scalar_lea.vmem %s3, %s188
      %s190 = smul.u32 2, %s19
      %p191 = scmp.lt.s32.totalorder %s18, 1
      %s192 = scalar_select %p191, %s18, 1
      %p193 = scmp.lt.s32.totalorder %s190, 1
      %s194 = scalar_select %p193, %s190, 1
      %s195 = smul.addr %s192, 8
      %s196 = sadd.s32 %s194, %s195
      %s197 = smul.addr %s196, 8
      %s198 = scalar_lea.vmem %s0, %s197
      %s199 = smul.u32 2, %s19
      %s200 = smul.u32 2, %s19
      %p201 = scmp.lt.s32.totalorder %s18, 1
      %s202 = scalar_select %p201, %s18, 1
      %p203 = scmp.lt.s32.totalorder %s200, 1
      %s204 = scalar_select %p203, %s200, 1
      %s205 = smul.addr %s202, 8
      %s206 = sadd.s32 %s204, %s205
      %s207 = smul.addr %s206, 8
      %s208 = scalar_lea.vmem %s3, %s207
      %s209 = smul.u32 2, %s19
      %v210 = vld [vmem:[%s198] sm:$0xff]
      %v211 = vld [vmem:[%s198 + $0x8] sm:$0xff]
      %v212 = vld [vmem:[%s198 + $0x10] sm:$0xff]
      %v213 = vld [vmem:[%s198 + $0x18] sm:$0xff]
      %v214 = vld [vmem:[%s198 + $0x20] sm:$0xff]
      %v215 = vld [vmem:[%s198 + $0x28] sm:$0xff]
      %v216 = vld [vmem:[%s198 + $0x30] sm:$0xff]
      %v217 = vld [vmem:[%s198 + $0x38] sm:$0xff]
      %v218 = vld [vmem:[%s1] sm:$0xff]
      %v219 = vld [vmem:[%s1 + $0x8] sm:$0xff]
      %v220 = vld [vmem:[%s1 + $0x10] sm:$0xff]
      %v221 = vld [vmem:[%s1 + $0x18] sm:$0xff]
      %223 = vset.pattern.permute.xlu0 0
      %224 = vperm.xlu0 %223, %v218
      %v225 = vpop.permute.xlu0 %224
      %228 = vset.pattern.permute.xlu0 0
      %229 = vperm.xlu0 %228, %v219
      %v230 = vpop.permute.xlu0 %229
      %233 = vset.pattern.permute.xlu0 0
      %234 = vperm.xlu0 %233, %v220
      %v235 = vpop.permute.xlu0 %234
      %238 = vset.pattern.permute.xlu0 0
      %239 = vperm.xlu0 %238, %v221
      %v240 = vpop.permute.xlu0 %239
      %v242 = vmul.f32 %v210, %v225
      %v243 = vmul.f32 %v211, %v225
      %v244 = vmul.f32 %v212, %v230
      %v245 = vmul.f32 %v213, %v230
      %v246 = vmul.f32 %v214, %v235
      %v247 = vmul.f32 %v215, %v235
      %v248 = vmul.f32 %v216, %v240
      %v249 = vmul.f32 %v217, %v240
      %v250 = vld [vmem:[%s2] sm:$0xff]
      %v251 = vld [vmem:[%s2 + $0x8] sm:$0xff]
      %v252 = vld [vmem:[%s2 + $0x10] sm:$0xff]
      %v253 = vld [vmem:[%s2 + $0x18] sm:$0xff]
      %255 = vset.pattern.permute.xlu0 0
      %256 = vperm.xlu0 %255, %v250
      %v257 = vpop.permute.xlu0 %256
      %260 = vset.pattern.permute.xlu0 0
      %261 = vperm.xlu0 %260, %v251
      %v262 = vpop.permute.xlu0 %261
      %265 = vset.pattern.permute.xlu0 0
      %266 = vperm.xlu0 %265, %v252
      %v267 = vpop.permute.xlu0 %266
      %270 = vset.pattern.permute.xlu0 0
      %271 = vperm.xlu0 %270, %v253
      %v272 = vpop.permute.xlu0 %271
      %v274 = vadd.f32 %v242, %v257
      %v275 = vadd.f32 %v243, %v257
      %v276 = vadd.f32 %v244, %v262
      %v277 = vadd.f32 %v245, %v262
      %v278 = vadd.f32 %v246, %v267
      %v279 = vadd.f32 %v247, %v267
      %v280 = vadd.f32 %v248, %v272
      %v281 = vadd.f32 %v249, %v272
      %v282 = vmax.f32 %v274, 0.0
      %v283 = vmax.f32 %v275, 0.0
      %v284 = vmax.f32 %v276, 0.0
      %v285 = vmax.f32 %v277, 0.0
      %v286 = vmax.f32 %v278, 0.0
      %v287 = vmax.f32 %v279, 0.0
      %v288 = vmax.f32 %v280, 0.0
      %v289 = vmax.f32 %v281, 0.0
      %290 = vst [vmem:[%s208] sm:$0xff] %v282
      %vm291 = vcmask 130048
      %292 = vst.msk [vmem:[%s208 + $0x8] sm:$0xff] %vm291, %v283
      %293 = vst [vmem:[%s208 + $0x10] sm:$0xff] %v284
      %294 = vst.msk [vmem:[%s208 + $0x18] sm:$0xff] %vm291, %v285
      %295 = vst [vmem:[%s208 + $0x20] sm:$0xff] %v286
      %296 = vst.msk [vmem:[%s208 + $0x28] sm:$0xff] %vm291, %v287
      %297 = vst [vmem:[%s208 + $0x30] sm:$0xff] %v288
      %298 = vst.msk [vmem:[%s208 + $0x38] sm:$0xff] %vm291, %v289
      %s299 = smul.u32 2, %s19
      %p300 = scmp.lt.s32.totalorder %s18, 1
      %s301 = scalar_select %p300, %s18, 1
      %p302 = scmp.lt.s32.totalorder %s299, 1
      %s303 = scalar_select %p302, %s299, 1
      %s304 = smul.addr %s301, 8
      %s305 = sadd.s32 %s303, %s304
      %s306 = smul.addr %s305, 8
      %s307 = scalar_lea.vmem %s3, %s306
      // Predicated region
      $region33: #{_lambda_.10} parent=31 // pred_check
        %p308 = pneg %p116
      $region34: #{_lambda_.10} parent=31 // pred_check_branch
        %310 = sbr.rel (%p308) target = $region36
      $region35: #{_lambda_.10} parent=31 // pred_region
        %s311 = smul.u32 2, %s19
      $region36: #{_lambda_.10} parent=31 // pred_fallthru
        _
    $region32: #{_lambda_.10} parent=5 // pred_fallthru
      _
    %p312 = scmp.le.s32.totalorder 2, %s9
    // Predicated region
    $region37: #{_lambda_.10} parent=5 // pred_check
      %p313 = pneg %p312
    $region38: #{_lambda_.10} parent=5 // pred_check_branch
      %315 = sbr.rel (%p313) target = $region40
    $region39: #{_lambda_.10} parent=5 // pred_region
      %s316 = ssub.s32 %s9, 2
      // Predicated region
      $region41: #{_lambda_.10} parent=39 // pred_check
        %p317 = pneg %p122
      $region42: #{_lambda_.10} parent=39 // pred_check_branch
        %319 = sbr.rel (%p317) target = $region44
      $region43: #{_lambda_.10} parent=39 // pred_region
        %s320 = smul.u32 2, %s21
        %p321 = scmp.lt.s32.totalorder %s20, 1
        %s322 = scalar_select %p321, %s20, 1
        %p323 = scmp.lt.s32.totalorder %s320, 1
        %s324 = scalar_select %p323, %s320, 1
        %s325 = smul.addr %s322, 8
        %s326 = sadd.s32 %s324, %s325
        %s327 = smul.addr %s326, 8
        %s328 = scalar_lea.vmem %s3, %s327
      $region44: #{_lambda_.10} parent=39 // pred_fallthru
        _
    $region40: #{_lambda_.10} parent=5 // pred_fallthru
      _
  $region6: #{_lambda_.10} parent=0 // loop_footer
    %s13 = sadd.s32 1, %s9
  $region7: #{_lambda_.10} parent=0 // loop_footer_branch
    %8 = sbr.rel target = $region3
  $region8: #{_lambda_.10} parent=0 // loop_exit
    _

// kernel: reverse.2
$region0: #{reverse.2}
  #allocation0 [shape = 's32[1]{0}', space=sflag, size = 0x4, scoped, tag = 'scoped memory for reverse.2']
  %s0 = inlined_call_operand.vmem [shape: f32[2,16,16,7], index: 0, kind: input, shape index: {}]
  %s1 = inlined_call_operand.vmem [shape: f32[2,16,16,7], index: 1, kind: output, shape index: {}]
  %s2 = scalar_lea.vmem %s0, 96
  %v3 = vld [vmem:[%s2] sm:$0xff]
  %4 = vst [vmem:[%s1] sm:$0xff] %v3
  %s5 = scalar_lea.vmem %s0, 208
  %v6 = vld [vmem:[%s5] sm:$0xff]
  %s7 = scalar_lea.vmem %s1, 112
  %8 = vst [vmem:[%s7] sm:$0xff] %v6
  %s9 = scalar_lea.vmem %s0, 80
  %v10 = vld [vmem:[%s9] sm:$0xff]
  %s11 = scalar_lea.vmem %s1, 16
  %12 = vst [vmem:[%s11] sm:$0xff] %v10
  %s13 = scalar_lea.vmem %s0, 192
  %v14 = vld [vmem:[%s13] sm:$0xff]
  %s15 = scalar_lea.vmem %s1, 128
  %16 = vst [vmem:[%s15] sm:$0xff] %v14
  %s17 = scalar_lea.vmem %s0, 64
  %v18 = vld [vmem:[%s17] sm:$0xff]
  %s19 = scalar_lea.vmem %s1, 32
  %20 = vst [vmem:[%s19] sm:$0xff] %v18
  %s21 = scalar_lea.vmem %s0, 176
  %v22 = vld [vmem:[%s21] sm:$0xff]
  %s23 = scalar_lea.vmem %s1, 144
  %24 = vst [vmem:[%s23] sm:$0xff] %v22
  %s25 = scalar_lea.vmem %s0, 48
  %v26 = vld [vmem:[%s25] sm:$0xff]
  %s27 = scalar_lea.vmem %s1, 48
  %28 = vst [vmem:[%s27] sm:$0xff] %v26
  %s29 = scalar_lea.vmem %s0, 160
  %v30 = vld [vmem:[%s29] sm:$0xff]
  %s31 = scalar_lea.vmem %s1, 160
  %32 = vst [vmem:[%s31] sm:$0xff] %v30
  %s33 = scalar_lea.vmem %s0, 32
  %v34 = vld [vmem:[%s33] sm:$0xff]
  %s35 = scalar_lea.vmem %s1, 64
  %36 = vst [vmem:[%s35] sm:$0xff] %v34
  %s37 = scalar_lea.vmem %s0, 144
  %v38 = vld [vmem:[%s37] sm:$0xff]
  %s39 = scalar_lea.vmem %s1, 176
  %40 = vst [vmem:[%s39] sm:$0xff] %v38
  %s41 = scalar_lea.vmem %s0, 16
  %v42 = vld [vmem:[%s41] sm:$0xff]
  %s43 = scalar_lea.vmem %s1, 80
  %44 = vst [vmem:[%s43] sm:$0xff] %v42
  %s45 = scalar_lea.vmem %s0, 128
  %v46 = vld [vmem:[%s45] sm:$0xff]
  %s47 = scalar_lea.vmem %s1, 192
  %48 = vst [vmem:[%s47] sm:$0xff] %v46
  %v49 = vld [vmem:[%s0] sm:$0xff]
  %s50 = scalar_lea.vmem %s1, 96
  %51 = vst [vmem:[%s50] sm:$0xff] %v49
  %s52 = scalar_lea.vmem %s0, 112
  %v53 = vld [vmem:[%s52] sm:$0xff]
  %s54 = scalar_lea.vmem %s1, 208
  %55 = vst [vmem:[%s54] sm:$0xff] %v53
  %s56 = scalar_lea.vmem %s0, 104
  %v57 = vld [vmem:[%s56] sm:$0xff]
  %s58 = scalar_lea.vmem %s1, 8
  %59 = vst [vmem:[%s58] sm:$0xff] %v57
  %s60 = scalar_lea.vmem %s0, 216
  %v61 = vld [vmem:[%s60] sm:$0xff]
  %s62 = scalar_lea.vmem %s1, 120
  %63 = vst [vmem:[%s62] sm:$0xff] %v61
  %s64 = scalar_lea.vmem %s0, 88
  %v65 = vld [vmem:[%s64] sm:$0xff]
  %s66 = scalar_lea.vmem %s1, 24
  %67 = vst [vmem:[%s66] sm:$0xff] %v65
  %s68 = scalar_lea.vmem %s0, 200
  %v69 = vld [vmem:[%s68] sm:$0xff]
  %s70 = scalar_lea.vmem %s1, 136
  %71 = vst [vmem:[%s70] sm:$0xff] %v69
  %s72 = scalar_lea.vmem %s0, 72
  %v73 = vld [vmem:[%s72] sm:$0xff]
  %s74 = scalar_lea.vmem %s1, 40
  %75 = vst [vmem:[%s74] sm:$0xff] %v73
  %s76 = scalar_lea.vmem %s0, 184
  %v77 = vld [vmem:[%s76] sm:$0xff]
  %s78 = scalar_lea.vmem %s1, 152
  %79 = vst [vmem:[%s78] sm:$0xff] %v77
  %s80 = scalar_lea.vmem %s0, 56
  %v81 = vld [vmem:[%s80] sm:$0xff]
  %s82 = scalar_lea.vmem %s1, 56
  %83 = vst [vmem:[%s82] sm:$0xff] %v81
  %s84 = scalar_lea.vmem %s0, 168
  %v85 = vld [vmem:[%s84] sm:$0xff]
  %s86 = scalar_lea.vmem %s1, 168
  %87 = vst [vmem:[%s86] sm:$0xff] %v85
  %s88 = scalar_lea.vmem %s0, 40
  %v89 = vld [vmem:[%s88] sm:$0xff]
  %s90 = scalar_lea.vmem %s1, 72
  %91 = vst [vmem:[%s90] sm:$0xff] %v89
  %s92 = scalar_lea.vmem %s0, 152
  %v93 = vld [vmem:[%s92] sm:$0xff]
  %s94 = scalar_lea.vmem %s1, 184
  %95 = vst [vmem:[%s94] sm:$0xff] %v93
  %s96 = scalar_lea.vmem %s0, 24
  %v97 = vld [vmem:[%s96] sm:$0xff]
  %s98 = scalar_lea.vmem %s1, 88
  %99 = vst [vmem:[%s98] sm:$0xff] %v97
  %s100 = scalar_lea.vmem %s0, 136
  %v101 = vld [vmem:[%s100] sm:$0xff]
  %s102 = scalar_lea.vmem %s1, 200
  %103 = vst [vmem:[%s102] sm:$0xff] %v101
  %s104 = scalar_lea.vmem %s0, 8
  %v105 = vld [vmem:[%s104] sm:$0xff]
  %s106 = scalar_lea.vmem %s1, 104
  %107 = vst [vmem:[%s106] sm:$0xff] %v105
  %s108 = scalar_lea.vmem %s0, 120
  %v109 = vld [vmem:[%s108] sm:$0xff]
  %s110 = scalar_lea.vmem %s1, 216
  %111 = vst [vmem:[%s110] sm:$0xff] %v109

// kernel: _lambda_.13
$region0: #{_lambda_.13}
  #allocation0 [shape = 'u32[]', space=smem, size = 0x4, offset = 0x4, fixed_abs, tag = 'smem constant byte address 0x4 - core index']
  #allocation1 [shape = 'u32[72,128]{1,0:T(1,128)}', space=vmem, size = 0x9000, scoped, tag = 'internal scratch']
  %s0 = inlined_call_operand.vmem [shape: f32[2,16,256], index: 0, kind: input, shape index: {}]
  %s1 = inlined_call_operand.vmem [shape: f32[2,16,256], index: 1, kind: input, shape index: {}]
  %s2 = inlined_call_operand.vmem [shape: bf16[2,16,256], index: 2, kind: input, shape index: {}]
  %s3 = inlined_call_operand.vmem [shape: bf16[32,16], index: 3, kind: input, shape index: {}]
  %s4 = inlined_call_operand.vmem [shape: f32[2,32,256], index: 4, kind: output, shape index: {}]
  %s5 = sld [smem:[#allocation0]]
  $region49: #{_lambda_.13} parent=0
    _
  %s7 = ssub.s32 1, %s5
  %s8 = scalar_select 0, %s7, %s5
  loop: start=0, step=1, limit=4
  $region2: #{_lambda_.13} parent=0 // loop_pre_header
    _
  $region3: #{_lambda_.13} parent=0 // loop_header
    %s10 = sphi 0, %s14
    %p11 = scmp.ge.s32.totalorder %s10, 4
    %s17 = sphi 0, %s29
    %s18 = sphi 0, %s25
    %s19 = sphi 0, %s17
    %s20 = sphi 0, %s18
    %s21 = sphi 0, %s19
    %s22 = sphi 0, %s20
    %s34 = sphi 0, %s36
    %s37 = sphi 0, %s34
    %s38 = sphi 0, %s37
    %s54 = sphi 0, %s38
    %s62 = sphi 0, %s64
    %s65 = sphi 0, %s62
    %s66 = sphi 0, %s65
    %s82 = sphi 0, %s66
    %s90 = sphi 0, %s92
    %s93 = sphi 0, %s90
    %s94 = sphi 0, %s93
    %s110 = sphi 0, %s94
    %s114 = sphi 0, %s114
    %s116 = sphi 0, %s114
    %s117 = sphi 0, %s116
    %s131 = sphi 0, %s117
    %s139 = sphi 0, %s141
    %s142 = sphi 0, %s139
    %s143 = sphi 0, %s142
    %s159 = sphi 0, %s143
  $region4: #{_lambda_.13} parent=0 // loop_header_branch
    %13 = sbr.rel (%p11) target = $region8
  $region5: #{_lambda_.13} parent=0 // loop_body
    %s15 = ssub.s32 %s10, 1
    %s16 = ssub.s32 %s10, 2
    %s23 = sadd.s32 1, %s18
    %p24 = scmp.ge.s32.totalorder %s23, 1
    %s25 = scalar_select %p24, 0, %s23
    %s26 = sadd.s32 1, %s17
    %s27 = scalar_select %p24, %s26, %s17
    %p28 = scmp.ge.s32.totalorder %s27, 2
    %s29 = scalar_select %p28, 0, %s27
    %s30 = ssub.s32 %s17, %s29
    %s31 = ssub.s32 %s18, %s25
    %s32 = sor.u32 %s30, %s31
    %p33 = scmp.eq.s32.totalorder %s32, 0
    %s35 = sadd.s32 %s34, 1
    %s36 = scalar_select %p33, %s34, %s35
    %p39 = pneg %p33
    %p40 = scmp.eq.s32.totalorder %s10, 1
    %p41 = por %p39, %p40
    %p42 = scmp.ne.s32.totalorder %s34, %s37
    %p43 = scmp.eq.s32.totalorder %s10, 0
    %p44 = por %p42, %p43
    %p45 = scmp.ne.s32.totalorder %s34, %s37
    %p46 = scmp.eq.s32.totalorder %s15, 1
    %p47 = por %p45, %p46
    %p48 = scmp.ne.s32.totalorder %s37, %s38
    %p49 = scmp.eq.s32.totalorder %s15, 0
    %p50 = por %p48, %p49
    %p51 = scmp.ne.s32.totalorder %s37, %s38
    %p52 = scmp.eq.s32.totalorder %s16, 1
    %p53 = por %p51, %p52
    %p55 = scmp.ne.s32.totalorder %s38, %s54
    %p56 = scmp.eq.s32.totalorder %s16, 0
    %p57 = por %p55, %p56
    %s58 = ssub.s32 %s17, %s29
    %s59 = ssub.s32 %s18, %s25
    %s60 = sor.u32 %s58, %s59
    %p61 = scmp.eq.s32.totalorder %s60, 0
    %s63 = sadd.s32 %s62, 1
    %s64 = scalar_select %p61, %s62, %s63
    %p67 = pneg %p61
    %p68 = scmp.eq.s32.totalorder %s10, 1
    %p69 = por %p67, %p68
    %p70 = scmp.ne.s32.totalorder %s62, %s65
    %p71 = scmp.eq.s32.totalorder %s10, 0
    %p72 = por %p70, %p71
    %p73 = scmp.ne.s32.totalorder %s62, %s65
    %p74 = scmp.eq.s32.totalorder %s15, 1
    %p75 = por %p73, %p74
    %p76 = scmp.ne.s32.totalorder %s65, %s66
    %p77 = scmp.eq.s32.totalorder %s15, 0
    %p78 = por %p76, %p77
    %p79 = scmp.ne.s32.totalorder %s65, %s66
    %p80 = scmp.eq.s32.totalorder %s16, 1
    %p81 = por %p79, %p80
    %p83 = scmp.ne.s32.totalorder %s66, %s82
    %p84 = scmp.eq.s32.totalorder %s16, 0
    %p85 = por %p83, %p84
    %s86 = ssub.s32 %s17, %s29
    %s87 = ssub.s32 %s18, %s25
    %s88 = sor.u32 %s86, %s87
    %p89 = scmp.eq.s32.totalorder %s88, 0
    %s91 = sadd.s32 %s90, 1
    %s92 = scalar_select %p89, %s90, %s91
    %p95 = pneg %p89
    %p96 = scmp.eq.s32.totalorder %s10, 1
    %p97 = por %p95, %p96
    %p98 = scmp.ne.s32.totalorder %s90, %s93
    %p99 = scmp.eq.s32.totalorder %s10, 0
    %p100 = por %p98, %p99
    %p101 = scmp.ne.s32.totalorder %s90, %s93
    %p102 = scmp.eq.s32.totalorder %s15, 1
    %p103 = por %p101, %p102
    %p104 = scmp.ne.s32.totalorder %s93, %s94
    %p105 = scmp.eq.s32.totalorder %s15, 0
    %p106 = por %p104, %p105
    %p107 = scmp.ne.s32.totalorder %s93, %s94
    %p108 = scmp.eq.s32.totalorder %s16, 1
    %p109 = por %p107, %p108
    %p111 = scmp.ne.s32.totalorder %s94, %s110
    %p112 = scmp.eq.s32.totalorder %s16, 0
    %p113 = por %p111, %p112
    %s115 = sadd.s32 %s114, 1
    %p118 = scmp.eq.s32.totalorder %s10, 1
    %p119 = scmp.ne.s32.totalorder %s114, %s116
    %p120 = scmp.eq.s32.totalorder %s10, 0
    %p121 = por %p119, %p120
    %p122 = scmp.ne.s32.totalorder %s114, %s116
    %p123 = scmp.eq.s32.totalorder %s15, 1
    %p124 = por %p122, %p123
    %p125 = scmp.ne.s32.totalorder %s116, %s117
    %p126 = scmp.eq.s32.totalorder %s15, 0
    %p127 = por %p125, %p126
    %p128 = scmp.ne.s32.totalorder %s116, %s117
    %p129 = scmp.eq.s32.totalorder %s16, 1
    %p130 = por %p128, %p129
    %p132 = scmp.ne.s32.totalorder %s117, %s131
    %p133 = scmp.eq.s32.totalorder %s16, 0
    %p134 = por %p132, %p133
    %s135 = ssub.s32 %s17, %s29
    %s136 = ssub.s32 %s18, %s25
    %s137 = sor.u32 %s135, %s136
    %p138 = scmp.eq.s32.totalorder %s137, 0
    %s140 = sadd.s32 %s139, 1
    %s141 = scalar_select %p138, %s139, %s140
    %p144 = pneg %p138
    %p145 = scmp.eq.s32.totalorder %s10, 1
    %p146 = por %p144, %p145
    %p147 = scmp.ne.s32.totalorder %s139, %s142
    %p148 = scmp.eq.s32.totalorder %s10, 0
    %p149 = por %p147, %p148
    %p150 = scmp.ne.s32.totalorder %s139, %s142
    %p151 = scmp.eq.s32.totalorder %s15, 1
    %p152 = por %p150, %p151
    %p153 = scmp.ne.s32.totalorder %s142, %s143
    %p154 = scmp.eq.s32.totalorder %s15, 0
    %p155 = por %p153, %p154
    %p156 = scmp.ne.s32.totalorder %s142, %s143
    %p157 = scmp.eq.s32.totalorder %s16, 1
    %p158 = por %p156, %p157
    %p160 = scmp.ne.s32.totalorder %s143, %s159
    %p161 = scmp.eq.s32.totalorder %s16, 0
    %p162 = por %p160, %p161
    %p163 = scmp.le.s32.totalorder 1, %s10
    %p164 = scmp.lt.s32.totalorder %s10, 3
    %p165 = pnand %p163, %p164
    %p166 = pneg %p165
    // Predicated region
    $region9: #{_lambda_.13} parent=5 // pred_check
      _
    $region10: #{_lambda_.13} parent=5 // pred_check_branch
      %168 = sbr.rel (%p165) target = $region12
    $region11: #{_lambda_.13} parent=5 // pred_region
      %s169 = ssub.s32 %s10, 1
      // Predicated region
      $region13: #{_lambda_.13} parent=11 // pred_check
        %p170 = pneg %p127
      $region14: #{_lambda_.13} parent=11 // pred_check_branch
        %172 = sbr.rel (%p170) target = $region16
      $region15: #{_lambda_.13} parent=11 // pred_region
        _
      $region16: #{_lambda_.13} parent=11 // pred_fallthru
        _
    $region12: #{_lambda_.13} parent=5 // pred_fallthru
      _
    %p173 = scmp.lt.s32.totalorder %s10, 2
    // Predicated region
    $region17: #{_lambda_.13} parent=5 // pred_check
      %p174 = pneg %p173
    $region18: #{_lambda_.13} parent=5 // pred_check_branch
      %176 = sbr.rel (%p174) target = $region20
    $region19: #{_lambda_.13} parent=5 // pred_region
      // Predicated region
      $region21: #{_lambda_.13} parent=19 // pred_check
        %p177 = pneg %p44
      $region22: #{_lambda_.13} parent=19 // pred_check_branch
        %179 = sbr.rel (%p177) target = $region24
      $region23: #{_lambda_.13} parent=19 // pred_region
        %s180 = smul.u32 2, %s18
        %p181 = scmp.lt.s32.totalorder %s17, 1
        %s182 = scalar_select %p181, %s17, 1
        %p183 = scmp.lt.s32.totalorder %s180, 1
        %s184 = scalar_select %p183, %s180, 1
        %s185 = smul.addr %s182, 4
        %s186 = sadd.s32 %s184, %s185
        %s187 = smul.addr %s186, 8
        %s188 = scalar_lea.vmem %s0, %s187
        %s189 = smul.u32 2, %s18
      $region24: #{_lambda_.13} parent=19 // pred_fallthru
        _
      // Predicated region
      $region25: #{_lambda_.13} parent=19 // pred_check
        %p190 = pneg %p72
      $region26: #{_lambda_.13} parent=19 // pred_check_branch
        %192 = sbr.rel (%p190) target = $region28
      $region27: #{_lambda_.13} parent=19 // pred_region
        %s193 = smul.u32 2, %s18
        %p194 = scmp.lt.s32.totalorder %s17, 1
        %s195 = scalar_select %p194, %s17, 1
        %p196 = scmp.lt.s32.totalorder %s193, 1
        %s197 = scalar_select %p196, %s193, 1
        %s198 = smul.addr %s195, 4
        %s199 = sadd.s32 %s197, %s198
        %s200 = smul.addr %s199, 8
        %s201 = scalar_lea.vmem %s1, %s200
        %s202 = smul.u32 2, %s18
      $region28: #{_lambda_.13} parent=19 // pred_fallthru
        _
      // Predicated region
      $region29: #{_lambda_.13} parent=19 // pred_check
        %p203 = pneg %p100
      $region30: #{_lambda_.13} parent=19 // pred_check_branch
        %205 = sbr.rel (%p203) target = $region32
      $region31: #{_lambda_.13} parent=19 // pred_region
        %s206 = smul.u32 2, %s18
        %p207 = scmp.lt.s32.totalorder %s17, 1
        %s208 = scalar_select %p207, %s17, 1
        %p209 = scmp.lt.s32.totalorder %s206, 1
        %s210 = scalar_select %p209, %s206, 1
        %s211 = smul.addr %s208, 4
        %s212 = sadd.s32 %s210, %s211
        %s213 = smul.addr %s212, 4
        %s214 = scalar_lea.vmem %s2, %s213
        %s215 = smul.u32 2, %s18
      $region32: #{_lambda_.13} parent=19 // pred_fallthru
        _
    $region20: #{_lambda_.13} parent=5 // pred_fallthru
      _
    %p216 = scmp.le.s32.totalorder 1, %s10
    %p217 = scmp.lt.s32.totalorder %s10, 3
    %p218 = pnand %p216, %p217
    %p219 = pneg %p218
    // Predicated region
    $region33: #{_lambda_.13} parent=5 // pred_check
      _
    $region34: #{_lambda_.13} parent=5 // pred_check_branch
      %221 = sbr.rel (%p218) target = $region36
    $region35: #{_lambda_.13} parent=5 // pred_region
      %s222 = ssub.s32 %s10, 1
      %s223 = smul.u32 2, %s20
      %p224 = scmp.lt.s32.totalorder %s19, 1
      %s225 = scalar_select %p224, %s19, 1
      %p226 = scmp.lt.s32.totalorder %s223, 1
      %s227 = scalar_select %p226, %s223, 1
      %s228 = smul.addr %s225, 4
      %s229 = sadd.s32 %s227, %s228
      %s230 = smul.addr %s229, 8
      %s231 = scalar_lea.vmem %s0, %s230
      %p232 = pneg %p50
      %p233 = pneg %p47
      %s234 = smul.u32 2, %s20
      %p235 = scmp.lt.s32.totalorder %s19, 1
      %s236 = scalar_select %p235, %s19, 1
      %p237 = scmp.lt.s32.totalorder %s234, 1
      %s238 = scalar_select %p237, %s234, 1
      %s239 = smul.addr %s236, 4
      %s240 = sadd.s32 %s238, %s239
      %s241 = smul.addr %s240, 8
      %s242 = scalar_lea.vmem %s1, %s241
      %p243 = pneg %p78
      %p244 = pneg %p75
      %s245 = smul.u32 2, %s20
      %p246 = scmp.lt.s32.totalorder %s19, 1
      %s247 = scalar_select %p246, %s19, 1
      %p248 = scmp.lt.s32.totalorder %s245, 1
      %s249 = scalar_select %p248, %s245, 1
      %s250 = smul.addr %s247, 4
      %s251 = sadd.s32 %s249, %s250
      %s252 = smul.addr %s251, 4
      %s253 = scalar_lea.vmem %s2, %s252
      %p254 = pneg %p106
      %p255 = pneg %p103
      %p256 = pneg %p127
      %p257 = pneg %p124
      %p258 = pneg %p155
      %p259 = pneg %p152
      %s260 = smul.u32 2, %s20
      %p261 = scmp.lt.s32.totalorder %s19, 1
      %s262 = scalar_select %p261, %s19, 1
      %p263 = scmp.lt.s32.totalorder %s260, 1
      %s264 = scalar_select %p263, %s260, 1
      %s265 = smul.addr %s262, 8
      %s266 = sadd.s32 %s264, %s265
      %s267 = smul.addr %s266, 8
      %s268 = scalar_lea.vmem %s4, %s267
      %s269 = smul.u32 2, %s20
      %p270 = scmp.lt.s32.totalorder %s19, 1
      %s271 = scalar_select %p270, %s19, 1
      %p272 = scmp.lt.s32.totalorder %s269, 1
      %s273 = scalar_select %p272, %s269, 1
      %s274 = smul.addr %s271, 4
      %s275 = sadd.s32 %s273, %s274
      %s276 = smul.addr %s275, 8
      %s277 = scalar_lea.vmem %s0, %s276
      %s278 = smul.u32 2, %s20
      %s279 = smul.u32 2, %s20
      %p280 = scmp.lt.s32.totalorder %s19, 1
      %s281 = scalar_select %p280, %s19, 1
      %p282 = scmp.lt.s32.totalorder %s279, 1
      %s283 = scalar_select %p282, %s279, 1
      %s284 = smul.addr %s281, 4
      %s285 = sadd.s32 %s283, %s284
      %s286 = smul.addr %s285, 8
      %s287 = scalar_lea.vmem %s1, %s286
      %s288 = smul.u32 2, %s20
      %s289 = smul.u32 2, %s20
      %p290 = scmp.lt.s32.totalorder %s19, 1
      %s291 = scalar_select %p290, %s19, 1
      %p292 = scmp.lt.s32.totalorder %s289, 1
      %s293 = scalar_select %p292, %s289, 1
      %s294 = smul.addr %s291, 4
      %s295 = sadd.s32 %s293, %s294
      %s296 = smul.addr %s295, 4
      %s297 = scalar_lea.vmem %s2, %s296
      %s298 = smul.u32 2, %s20
      %s299 = smul.u32 2, %s20
      %p300 = scmp.lt.s32.totalorder %s19, 1
      %s301 = scalar_select %p300, %s19, 1
      %p302 = scmp.lt.s32.totalorder %s299, 1
      %s303 = scalar_select %p302, %s299, 1
      %s304 = smul.addr %s301, 8
      %s305 = sadd.s32 %s303, %s304
      %s306 = smul.addr %s305, 8
      %s307 = scalar_lea.vmem %s4, %s306
      %s308 = smul.u32 2, %s20
      %v310 = vld [vmem:[%s277] sm:$0xff]
      %v311 = vld [vmem:[%s277 + $0x8] sm:$0xff]
      %v312 = vld [vmem:[%s277 + $0x10] sm:$0xff]
      %v313 = vld [vmem:[%s277 + $0x18] sm:$0xff]
      %v314 = vld [vmem:[%s287] sm:$0xff]
      %v315 = vld [vmem:[%s287 + $0x8] sm:$0xff]
      %v316 = vld [vmem:[%s287 + $0x10] sm:$0xff]
      %v317 = vld [vmem:[%s287 + $0x18] sm:$0xff]
      %v318 = vadd.f32 %v310, %v314
      %v319 = vadd.f32 %v311, %v315
      %v320 = vadd.f32 %v312, %v316
      %v321 = vadd.f32 %v313, %v317
      %v322 = vld [vmem:[%s297] sm:$0xff]
      %v323 = vld [vmem:[%s297 + $0x8] sm:$0xff]
      %v324 = vunpack.c.l.bf16 %v322
      %v325 = vunpack.c.h.bf16 %v322
      %v326 = vunpack.c.l.bf16 %v323
      %v327 = vunpack.c.h.bf16 %v323
      %v328 = vadd.f32 %v318, %v324
      %v329 = vadd.f32 %v319, %v325
      %v330 = vadd.f32 %v320, %v326
      %v331 = vadd.f32 %v321, %v327
      %v332 = vld [vmem:[%s3] sm:$0xf]
      %v333 = vld [vmem:[%s3 + $0x4] sm:$0xf]
      %v334 = vld [vmem:[%s3 + $0x8] sm:$0xf]
      %v335 = vld [vmem:[%s3 + $0xc] sm:$0xf]
      %v336 = vpack.c.bf16 %v330, %v328
      %v337 = vpack.c.bf16 %v331, %v329
      %v342 = vunpack.c.l.b16 %v332
      %v343 = vunpack.c.l.b16 %v333
      %v344 = vunpack.c.l.b16 %v334
      %v345 = vunpack.c.l.b16 %v335
      %v346 = vpack.c.b16 %v343, %v342
      %v347 = vpack.c.b16 %v345, %v344
      %vm348 = vcmask 130048
      %v350 = vsel %vm348, %v346, 0
      %v353 = vsel %vm348, %v347, 0
      %355 = vmatpush.bf16.msra.mxu0 0
      %356 = vmatpush.bf16.msra.mxu0 0
      %357 = vmatpush.bf16.msra.mxu0 0
      %358 = vmatpush.bf16.msra.mxu0 0
      %359 = vmatpush.bf16.msra.mxu0 0
      %360 = vmatpush.bf16.msra.mxu0 0
      %361 = vmatpush.bf16.msra.mxu0 0
      %362 = vmatpush.bf16.msra.mxu0 %v336
      %363 = vmatmul.bf16.gmra.mxu0 %v350
      %v364 = vpop.f32.mrf.mxu0
      %v365 = vadd.f32 0.0, %v364
      %v366 = vpop.f32.mrf.mxu0
      %v367 = vadd.f32 0.0, %v366
      %368 = vmatmul.bf16.gmra.mxu0 %v353
      %v369 = vpop.f32.mrf.mxu0
      %v370 = vadd.f32 0.0, %v369
      %v371 = vpop.f32.mrf.mxu0
      %v372 = vadd.f32 0.0, %v371
      %373 = vdwg.mxu0
      %374 = vmatpush.bf16.msra.mxu0 0
      %375 = vmatpush.bf16.msra.mxu0 0
      %376 = vmatpush.bf16.msra.mxu0 0
      %377 = vmatpush.bf16.msra.mxu0 0
      %378 = vmatpush.bf16.msra.mxu0 0
      %379 = vmatpush.bf16.msra.mxu0 0
      %380 = vmatpush.bf16.msra.mxu0 0
      %381 = vmatpush.bf16.msra.mxu0 %v337
      %382 = vmatmul.bf16.gmra.mxu0 %v350
      %v383 = vpop.f32.mrf.mxu0
      %v384 = vadd.f32 0.0, %v383
      %v385 = vpop.f32.mrf.mxu0
      %v386 = vadd.f32 0.0, %v385
      %387 = vmatmul.bf16.gmra.mxu0 %v353
      %v388 = vpop.f32.mrf.mxu0
      %v389 = vadd.f32 0.0, %v388
      %v390 = vpop.f32.mrf.mxu0
      %v391 = vadd.f32 0.0, %v390
      %392 = vdwg.mxu0
      %393 = vst [vmem:[%s307] sm:$0xff] %v365
      %394 = vst [vmem:[%s307 + $0x8] sm:$0xff] %v384
      %395 = vst [vmem:[%s307 + $0x10] sm:$0xff] %v367
      %396 = vst [vmem:[%s307 + $0x18] sm:$0xff] %v386
      %397 = vst [vmem:[%s307 + $0x20] sm:$0xff] %v370
      %398 = vst [vmem:[%s307 + $0x28] sm:$0xff] %v389
      %399 = vst [vmem:[%s307 + $0x30] sm:$0xff] %v372
      %400 = vst [vmem:[%s307 + $0x38] sm:$0xff] %v391
      %s401 = smul.u32 2, %s20
      %p402 = scmp.lt.s32.totalorder %s19, 1
      %s403 = scalar_select %p402, %s19, 1
      %p404 = scmp.lt.s32.totalorder %s401, 1
      %s405 = scalar_select %p404, %s401, 1
      %s406 = smul.addr %s403, 8
      %s407 = sadd.s32 %s405, %s406
      %s408 = smul.addr %s407, 8
      %s409 = scalar_lea.vmem %s4, %s408
      // Predicated region
      $region37: #{_lambda_.13} parent=35 // pred_check
        %p410 = pneg %p152
      $region38: #{_lambda_.13} parent=35 // pred_check_branch
        %412 = sbr.rel (%p410) target = $region40
      $region39: #{_lambda_.13} parent=35 // pred_region
        %s413 = smul.u32 2, %s20
      $region40: #{_lambda_.13} parent=35 // pred_fallthru
        _
    $region36: #{_lambda_.13} parent=5 // pred_fallthru
      _
    %p414 = scmp.le.s32.totalorder 2, %s10
    // Predicated region
    $region41: #{_lambda_.13} parent=5 // pred_check
      %p415 = pneg %p414
    $region42: #{_lambda_.13} parent=5 // pred_check_branch
      %417 = sbr.rel (%p415) target = $region44
    $region43: #{_lambda_.13} parent=5 // pred_region
      %s418 = ssub.s32 %s10, 2
      // Predicated region
      $region45: #{_lambda_.13} parent=43 // pred_check
        %p419 = pneg %p158
      $region46: #{_lambda_.13} parent=43 // pred_check_branch
        %421 = sbr.rel (%p419) target = $region48
      $region47: #{_lambda_.13} parent=43 // pred_region
        %s422 = smul.u32 2, %s22
        %p423 = scmp.lt.s32.totalorder %s21, 1
        %s424 = scalar_select %p423, %s21, 1
        %p425 = scmp.lt.s32.totalorder %s422, 1
        %s426 = scalar_select %p425, %s422, 1
        %s427 = smul.addr %s424, 8
        %s428 = sadd.s32 %s426, %s427
        %s429 = smul.addr %s428, 8
        %s430 = scalar_lea.vmem %s4, %s429
      $region48: #{_lambda_.13} parent=43 // pred_fallthru
        _
    $region44: #{_lambda_.13} parent=5 // pred_fallthru
      _
  $region6: #{_lambda_.13} parent=0 // loop_footer
    %s14 = sadd.s32 1, %s10
  $region7: #{_lambda_.13} parent=0 // loop_footer_branch
    %9 = sbr.rel target = $region3
  $region8: #{_lambda_.13} parent=0 // loop_exit
    _

</llo_original>
